<compile_context>
chip_gen: v5e
topology: v5e:2x2
jax: 0.10.0
libtpu: 0.0.40
codegen_flags: <defaults>
</compile_context>

<pallas_src>
import math
from functools import partial

import jax
import jax.numpy as jnp
from jax.experimental import pallas as pl
from jax.experimental.pallas import tpu as pltpu

LN_EPS = 1e-5                    # torch.nn.LayerNorm default
LOGITS_DTYPE = jnp.float32       # set to jnp.bfloat16 to halve logit HBM writeback
EXACT_SOFTMAX_DIV = False        # True -> exact division instead of EUP approx recip


# ----------------------------- small helpers ---------------------------------
def _nbytes(*arrays):
    return sum(int(a.size) * a.dtype.itemsize for a in arrays)


_VMEM_CAP = [None]


def _vmem_capacity_bytes():
    """Per-core VMEM capacity; conservative 64 MiB fallback if the query fails."""
    if _VMEM_CAP[0] is None:
        cap = None
        try:
            cap = getattr(pltpu.get_tpu_info(), "vmem_capacity_bytes", None)
        except Exception:
            cap = None
        _VMEM_CAP[0] = int(cap) if cap else (64 << 20)
    return _VMEM_CAP[0]


def _row_tile_target():
    # 512-row tiles on 128-MiB-VMEM chips (v5e/v6e); 256 on v7x (64 MiB).
    return 512 if _vmem_capacity_bytes() >= (96 << 20) else 256


def _mosaic_params(dim_semantics, working_bytes):
    # Chip-gated scoped-VMEM budget: ~2x working set + headroom, capped at ~85%
    # of the actual per-core capacity (so v5e/v6e get ~108 MiB, v7x ~54 MiB).
    ceiling = int(_vmem_capacity_bytes() * 0.85)
    limit = int(min(max(2 * working_bytes + (8 << 20), 32 << 20), ceiling))
    return pltpu.CompilerParams(dimension_semantics=dim_semantics,
                                vmem_limit_bytes=limit)


def _pick_tile(dim, target, step):
    """Largest multiple-of-`step` tile <= target that evenly divides dim (else dim)."""
    if dim <= target:
        return dim
    t = (target // step) * step
    while t > step and dim % t != 0:
        t -= step
    return t if (t > 0 and dim % t == 0) else dim


def _num_query_tiles(B, S):
    """Enough parallel grid steps to feed both v7x TensorCores; more query tiles
    only add K/V-projection recompute in this fused (non-flash) kernel."""
    if B >= 2:
        return 1
    for nq in (2, 4):
        if S % nq == 0 and (S // nq) % 8 == 0:
            return nq
    return 1


def _layernorm(x, w, b):
    # f32 statistics; only matmul operands are cast to bf16.
    mu = jnp.mean(x, axis=-1, keepdims=True)
    var = jnp.mean((x - mu) ** 2, axis=-1, keepdims=True)
    return (x - mu) * jax.lax.rsqrt(var + LN_EPS) * w + b


def _const_spec(shape, single_buffer):
    nd = len(shape)
    index_map = lambda *_: (0,) * nd
    if single_buffer:
        # Resident weights never change block index -> no double-buffering needed.
        return pl.BlockSpec(shape, index_map, pipeline_mode=pl.Buffered(1))
    return pl.BlockSpec(shape, index_map)


_SINGLE_BUFFER_OK = [None]   # None = untested, then True / False


def _call_single_buffered_weights(build, args):
    """Try pipeline_mode=pl.Buffered(1) on resident-weight specs; fall back to the
    default (double-buffered) specs if this JAX/Mosaic build rejects it."""
    if _SINGLE_BUFFER_OK[0] is not False:
        try:
            out = build(True)(*args)
            _SINGLE_BUFFER_OK[0] = True
            return out
        except Exception:
            _SINGLE_BUFFER_OK[0] = False
    return build(False)(*args)


# ----------------------------- fused decoder-block kernel ---------------------
def decoder_block_kernel(x_ref, n1w_ref, n1b_ref, wq_ref, wk_ref, wv_ref, wo_ref,
                         n2w_ref, n2b_ref, w1_ref, b1_ref, w2_ref, b2_ref,
                         o_ref, *, n_heads, tq):
    x = x_ref[0]                                   # (S, D) f32 — full sequence
    S, D = x.shape
    H = n_heads
    dh = D // H
    scale = 1.0 / math.sqrt(float(dh))

    q_start = pl.multiple_of(pl.program_id(1) * tq, tq)
    x_q = x_ref[0, pl.ds(q_start, tq), :]          # (tq, D) query rows (residual)

    # ---- LN1 + full-width projections (MXU output width = D, not dh) ----------
    xn_kv = _layernorm(x, n1w_ref[...], n1b_ref[...]).astype(jnp.bfloat16)   # (S, D)
    xn_q = _layernorm(x_q, n1w_ref[...], n1b_ref[...]).astype(jnp.bfloat16)  # (tq, D)

    # 1/sqrt(dh) folded into Q (tq*D multiplies instead of H*tq*S).
    q = jnp.dot(xn_q, wq_ref[...], preferred_element_type=jnp.float32) * scale
    k = jnp.dot(xn_kv, wk_ref[...], preferred_element_type=jnp.float32)
    v = jnp.dot(xn_kv, wv_ref[...], preferred_element_type=jnp.float32)

    q3 = q.reshape(tq, H, dh).astype(jnp.bfloat16)
    k3 = k.reshape(S, H, dh).astype(jnp.bfloat16)
    v3 = v.reshape(S, H, dh).astype(jnp.bfloat16)

    # ---- head-batched scores / causal softmax / PV -----------------------------
    # TODO(synk): for long sequences (S >~ 1K) block this flash-style over kv
    # tiles with a running max/sum and skip blocks above the causal diagonal so
    # the (H, tq, S) score tensor is never materialized.
    s = jnp.einsum('qhd,khd->hqk', q3, k3,
                   preferred_element_type=jnp.float32)            # (H, tq, S) f32

    rows = q_start + jax.lax.broadcasted_iota(jnp.int32, (tq, S), 0)
    cols = jax.lax.broadcasted_iota(jnp.int32, (tq, S), 1)
    causal = rows >= cols                                          # (tq, S) bool
    # Faithful to the torch quirk: masked OR exactly-zero scores -> -inf.
    s = jnp.where(causal[None, :, :] & (s != 0.0), s, -jnp.inf)

    m = jnp.max(s, axis=-1, keepdims=True)                         # f32 stats
    e = jnp.exp(s - m)
    denom = jnp.sum(e, axis=-1, keepdims=True)
    if EXACT_SOFTMAX_DIV:
        p = e / denom
    else:
        p = e * pl.reciprocal(denom, approx=True)
    p = p.astype(jnp.bfloat16)

    ctx = jnp.einsum('hqk,khd->hqd', p, v3,
                     preferred_element_type=jnp.float32)           # (H, tq, dh)

    # ---- per-head output projection accumulated into the residual (no concat) --
    ctx_b = ctx.astype(jnp.bfloat16)
    y = x_q
    for h in range(H):                               # H static & small
        y = y + jnp.dot(ctx_b[h], wo_ref[h], preferred_element_type=jnp.float32)

    # ---- fused MLP tail: LN2 -> fc1 -> ReLU -> fc2 -> residual -----------------
    yn = _layernorm(y, n2w_ref[...], n2b_ref[...]).astype(jnp.bfloat16)
    h1 = jnp.dot(yn, w1_ref[...], preferred_element_type=jnp.float32) + b1_ref[...]
    h1 = jnp.maximum(h1, 0.0).astype(jnp.bfloat16)
    # TODO(synk): torch.nn.Dropout(0.1) implemented as identity (eval-mode).
    o_ref[0] = y + jnp.dot(h1, w2_ref[...], preferred_element_type=jnp.float32) + b2_ref[...]


def decoder_block(x, lp, n_heads):
    B, S, D = x.shape
    H = n_heads
    dh = D // H
    Dff = lp["w1"].shape[1]
    nq = _num_query_tiles(B, S)
    tq = S // nq

    working = (_nbytes(lp["wq"], lp["wk"], lp["wv"], lp["wo"], lp["w1"], lp["w2"],
                       lp["b1"], lp["b2"], lp["n1w"], lp["n1b"], lp["n2w"], lp["n2b"])
               + 4 * S * D * 4                 # x, xn, k, v
               + 3 * H * tq * S * 4            # scores / exp / probs
               + tq * (D + Dff) * 4 + H * tq * dh * 4)

    # TODO(synk): for large D on v7x, add a Dff ("arbitrary") K-tile axis with an
    # f32 accumulator instead of keeping full (D,4D)/(4D,D) MLP weights resident.
    def build(single_buffer):
        def wspec(shape):   # resident weights: single-buffer when supported
            return _const_spec(shape, single_buffer)

        def cspec(shape):   # tiny LN params / biases: default pipelining
            return _const_spec(shape, False)

        return pl.pallas_call(
            partial(decoder_block_kernel, n_heads=H, tq=tq),
            out_shape=jax.ShapeDtypeStruct((B, S, D), jnp.float32),
            grid=(B, nq),
            in_specs=[pl.BlockSpec((1, S, D), lambda b, q: (b, 0, 0)),
                      cspec((1, D)), cspec((1, D)),
                      wspec((D, D)), wspec((D, D)), wspec((D, D)),
                      wspec((H, dh, D)),
                      cspec((1, D)), cspec((1, D)),
                      wspec((D, Dff)), cspec((1, Dff)),
                      wspec((Dff, D)), cspec((1, D))],
            out_specs=pl.BlockSpec((1, tq, D), lambda b, q: (b, q, 0)),
            compiler_params=_mosaic_params(("parallel", "parallel"), working),
        )

    args = (x, lp["n1w"], lp["n1b"], lp["wq"], lp["wk"], lp["wv"], lp["wo"],
            lp["n2w"], lp["n2b"], lp["w1"], lp["b1"], lp["w2"], lp["b2"])
    return _call_single_buffered_weights(build, args)


# ----------------------------- vocab projection --------------------------------
def vocab_kernel(x_ref, w_ref, b_ref, o_ref):
    # TODO(synk): add a K-tile grid axis + f32 accumulator for very large d_model,
    # and per-generation weight quantization (int8 on v5e/v6e, fp8 on v7x).
    o_ref[...] = (jnp.dot(x_ref[...], w_ref[...],
                          preferred_element_type=jnp.float32)
                  + b_ref[...]).astype(o_ref.dtype)


def vocab_projection(x2d_bf16, w_t, b, out_dtype=jnp.float32):
    M, D = x2d_bf16.shape
    V = w_t.shape[1]
    tm = _pick_tile(M, _row_tile_target(), 8)      # 512 on v5e/v6e, 256 on v7x
    tn = _pick_tile(V, 512, 128)

    working = tm * D * 2 + D * tn * 2 + tn * 4 + tm * tn * 4
    return pl.pallas_call(
        vocab_kernel,
        out_shape=jax.ShapeDtypeStruct((M, V), out_dtype),
        grid=(M // tm, V // tn),
        in_specs=[pl.BlockSpec((tm, D), lambda i, j: (i, 0)),
                  pl.BlockSpec((D, tn), lambda i, j: (0, j)),
                  pl.BlockSpec((1, tn), lambda i, j: (0, j))],
        out_specs=pl.BlockSpec((tm, tn), lambda i, j: (i, j)),
        compiler_params=_mosaic_params(("parallel", "parallel"), working),
    )(x2d_bf16, w_t, b)


# ----------------------------- weight preparation ------------------------------
def prepare_kernel_params(params):
    """One-time (outside the kernels): transpose weights to (in, out), reshape Wo
    to head-major (H, dh, D), cast matmul weights to bf16."""
    H = params["n_heads"]
    layers = []
    for (n1w, n1b, qkv, wo, n2w, n2b, f1w, f1b, f2w, f2b) in params["layers"]:
        D = wo.shape[0]
        dh = D // H
        layers.append({
            "n1w": n1w, "n1b": n1b,
            # Full-width (D_in, D_out) Q/K/V projections (MXU output width = D).
            "wq": qkv[0:D].T.astype(jnp.bfloat16),
            "wk": qkv[D:2 * D].T.astype(jnp.bfloat16),
            "wv": qkv[2 * D:3 * D].T.astype(jnp.bfloat16),
            # Head-major output projection (H, dh, D): per-head accumulation in
            # the kernel replaces the lane-dim head concat.
            "wo": wo.T.reshape(H, dh, D).astype(jnp.bfloat16),
            "n2w": n2w, "n2b": n2b,
            "w1": f1w.T.astype(jnp.bfloat16), "b1": f1b,     # (D, 4D), (1, 4D)
            "w2": f2w.T.astype(jnp.bfloat16), "b2": f2b,     # (4D, D), (1, D)
        })
    return {
        "n_heads": H,
        "word_emb": params["word_emb"],
        "pos_emb": params["pos_emb"],
        "layers": layers,
        "out_w": params["out_w"].T.astype(jnp.bfloat16),     # (D, V)
        "out_b": params["out_b"].reshape(1, -1),             # (1, V) f32
    }


# ----------------------------- model wrapper -----------------------------------
def gpt_forward(tokens, kp):
    B, S = tokens.shape
    h = kp["word_emb"][tokens] + kp["pos_emb"][jnp.arange(S)][None, :, :]
    for lp in kp["layers"]:
        h = decoder_block(h, lp, kp["n_heads"])
    D = h.shape[-1]
    # Cast once in the wrapper: halves x DMA into the HBM-bound vocab matmul and
    # avoids re-casting the resident row tile per vocab tile inside the kernel.
    x2d = h.reshape(B * S, D).astype(jnp.bfloat16)
    logits = vocab_projection(x2d, kp["out_w"], kp["out_b"], out_dtype=LOGITS_DTYPE)
    return logits.reshape(B, S, -1)


# ----------------------------- parameter init (torch layout, f32) --------------
def init_params(key, d_model, n_heads, n_layers, vocab_size, max_seq_len):
    kiter = iter(jax.random.split(key, 4 + 4 * n_layers))

    def randn(shape):
        return 0.01 * jax.random.normal(next(kiter), shape, dtype=jnp.float32)

    params = {
        "n_heads": n_heads,
        "word_emb": randn((vocab_size, d_model)),
        "pos_emb": randn((max_seq_len, d_model)),
        "layers": [],
        "out_w": randn((vocab_size, d_model)),
        "out_b": jnp.zeros((vocab_size,), jnp.float32),
    }
    for _ in range(n_layers):
        params["layers"].append((
            jnp.ones((1, d_model), jnp.float32),       # norm1 weight
            jnp.zeros((1, d_model), jnp.float32),      # norm1 bias
            randn((3 * d_model, d_model)),             # qkv  [out, in]
            randn((d_model, d_model)),                 # wo   [out, in]
            jnp.ones((1, d_model), jnp.float32),       # norm2 weight
            jnp.zeros((1, d_model), jnp.float32),      # norm2 bias
            randn((4 * d_model, d_model)),             # fc1 weight [out, in]
            jnp.zeros((1, 4 * d_model), jnp.float32),  # fc1 bias
            randn((d_model, 4 * d_model)),             # fc2 weight [out, in]
            jnp.zeros((1, d_model), jnp.float32),      # fc2 bias
        ))
    return params


# ----------------------------- pure-JAX reference ------------------------------
def _ln_ref(x, w, b):
    mu = jnp.mean(x, axis=-1, keepdims=True)
    var = jnp.mean((x - mu) ** 2, axis=-1, keepdims=True)
    return (x - mu) * jax.lax.rsqrt(var + LN_EPS) * w + b


def ref_forward(tokens, params):
    B, S = tokens.shape
    n_heads = params["n_heads"]
    h = params["word_emb"][tokens] + params["pos_emb"][jnp.arange(S)][None, :, :]
    D = h.shape[-1]
    dh = D // n_heads
    mask = jnp.tril(jnp.ones((S, S), jnp.float32))
    for (n1w, n1b, qkv, wo, n2w, n2b, f1w, f1b, f2w, f2b) in params["layers"]:
        xn = _ln_ref(h, n1w[0], n1b[0])
        QKV = xn @ qkv.T
        Q, K, V = jnp.split(QKV, 3, axis=-1)
        qh = Q.reshape(B, S, n_heads, dh).transpose(0, 2, 1, 3)
        kh = K.reshape(B, S, n_heads, dh).transpose(0, 2, 1, 3)
        vh = V.reshape(B, S, n_heads, dh).transpose(0, 2, 1, 3)
        s = jnp.einsum('bhqd,bhkd->bhqk', qh, kh) / math.sqrt(float(dh))
        s = s * mask
        s = jnp.where(s == 0.0, -jnp.inf, s)
        a = jax.nn.softmax(s, axis=-1)
        ctx = jnp.einsum('bhqk,bhkd->bhqd', a, vh)
        ctx = ctx.transpose(0, 2, 1, 3).reshape(B, S, D)
        h = h + ctx @ wo.T
        xn2 = _ln_ref(h, n2w[0], n2b[0])
        mlp = jnp.maximum(xn2 @ f1w.T + f1b[0], 0.0) @ f2w.T + f2b[0]
        h = h + mlp
    return h @ params["out_w"].T + params["out_b"]


# ----------------------------- main ---------------------------------------------
if __name__ == "__main__":
    d_model, n_heads, n_layers = 32, 4, 2
    vocab_size, max_seq_len = 64, 16
    B, S = 2, 8
    # NOTE: production shapes should use D (and dh) multiples of 128 and S a
    # multiple of 8 per tile for full lane/sublane utilization.

    key = jax.random.PRNGKey(0)
    pkey, tkey = jax.random.split(key)
    params = init_params(pkey, d_model, n_heads, n_layers, vocab_size, max_seq_len)
    kparams = prepare_kernel_params(params)
    tokens = jax.random.randint(tkey, (B, S), 0, vocab_size, dtype=jnp.int32)

    logits = gpt_forward(tokens, kparams)
    jax.block_until_ready(logits)
    assert logits.shape == (B, S, vocab_size)

    with jax.default_matmul_precision("float32"):
        ref = ref_forward(tokens, params)
    max_err = float(jnp.max(jnp.abs(logits - ref)))
    assert jnp.allclose(logits, ref, atol=2e-3, rtol=2e-2), max_err

    print("KERNEL_OK")
</pallas_src>

<mosaic_0001>
module attributes {stable_mosaic.version = 11 : i64} {
  func.func @decoder_block_kernel(%arg0: i32, %arg1: i32, %arg2: memref<1x8x32xf32, #tpu.memory_space<vmem>>, %arg3: memref<1x32xf32, #tpu.memory_space<vmem>>, %arg4: memref<1x32xf32, #tpu.memory_space<vmem>>, %arg5: memref<32x32xbf16, #tpu.memory_space<vmem>>, %arg6: memref<32x32xbf16, #tpu.memory_space<vmem>>, %arg7: memref<32x32xbf16, #tpu.memory_space<vmem>>, %arg8: memref<4x8x32xbf16, #tpu.memory_space<vmem>>, %arg9: memref<1x32xf32, #tpu.memory_space<vmem>>, %arg10: memref<1x32xf32, #tpu.memory_space<vmem>>, %arg11: memref<32x128xbf16, #tpu.memory_space<vmem>>, %arg12: memref<1x128xf32, #tpu.memory_space<vmem>>, %arg13: memref<128x32xbf16, #tpu.memory_space<vmem>>, %arg14: memref<1x32xf32, #tpu.memory_space<vmem>>, %arg15: memref<1x8x32xf32, #tpu.memory_space<vmem>>) attributes {dimension_semantics = [#tpu.dimension_semantics<parallel>, #tpu.dimension_semantics<parallel>], iteration_bounds = array<i64: 2, 1>, scalar_prefetch = 0 : i64, scratch_operands = 0 : i64, tpu.core_type = #tpu.core_type<tc>, window_params = [{transform_indices = @transform_0, window_bounds = array<i64: 1, 8, 32>}, {pipeline_mode = #tpu.pipeline_mode<synchronous>, transform_indices = @transform_1, window_bounds = array<i64: 1, 32>}, {pipeline_mode = #tpu.pipeline_mode<synchronous>, transform_indices = @transform_2, window_bounds = array<i64: 1, 32>}, {pipeline_mode = #tpu.pipeline_mode<synchronous>, transform_indices = @transform_3, window_bounds = array<i64: 32, 32>}, {pipeline_mode = #tpu.pipeline_mode<synchronous>, transform_indices = @transform_4, window_bounds = array<i64: 32, 32>}, {pipeline_mode = #tpu.pipeline_mode<synchronous>, transform_indices = @transform_5, window_bounds = array<i64: 32, 32>}, {pipeline_mode = #tpu.pipeline_mode<synchronous>, transform_indices = @transform_6, window_bounds = array<i64: 4, 8, 32>}, {pipeline_mode = #tpu.pipeline_mode<synchronous>, transform_indices = @transform_7, window_bounds = array<i64: 1, 32>}, {pipeline_mode = #tpu.pipeline_mode<synchronous>, transform_indices = @transform_8, window_bounds = array<i64: 1, 32>}, {pipeline_mode = #tpu.pipeline_mode<synchronous>, transform_indices = @transform_9, window_bounds = array<i64: 32, 128>}, {pipeline_mode = #tpu.pipeline_mode<synchronous>, transform_indices = @transform_10, window_bounds = array<i64: 1, 128>}, {pipeline_mode = #tpu.pipeline_mode<synchronous>, transform_indices = @transform_11, window_bounds = array<i64: 128, 32>}, {pipeline_mode = #tpu.pipeline_mode<synchronous>, transform_indices = @transform_12, window_bounds = array<i64: 1, 32>}, {transform_indices = @transform_13, window_bounds = array<i64: 1, 8, 32>}]} {
    %c0 = arith.constant 0 : index
    %c0_0 = arith.constant 0 : index
    %c0_1 = arith.constant 0 : index
    %0 = vector.load %arg2[%c0, %c0_0, %c0_1] : memref<1x8x32xf32, #tpu.memory_space<vmem>>, vector<1x8x32xf32>
    %1 = vector.shape_cast %0 : vector<1x8x32xf32> to vector<8x32xf32>
    %c8_i32 = arith.constant 8 : i32
    %2 = arith.muli %arg1, %c8_i32 : i32
    %3 = tpu.assume_multiple %2, 8 : i32
    %c0_2 = arith.constant 0 : index
    %4 = arith.index_cast %3 : i32 to index
    %c0_3 = arith.constant 0 : index
    %5 = vector.load %arg2[%c0_2, %4, %c0_3] : memref<1x8x32xf32, #tpu.memory_space<vmem>>, vector<1x8x32xf32>
    %6 = vector.shape_cast %5 : vector<1x8x32xf32> to vector<8x32xf32>
    %c0_4 = arith.constant 0 : index
    %c0_5 = arith.constant 0 : index
    %7 = vector.load %arg3[%c0_4, %c0_5] : memref<1x32xf32, #tpu.memory_space<vmem>>, vector<1x32xf32>
    %c0_6 = arith.constant 0 : index
    %c0_7 = arith.constant 0 : index
    %8 = vector.load %arg4[%c0_6, %c0_7] : memref<1x32xf32, #tpu.memory_space<vmem>>, vector<1x32xf32>
    %cst = arith.constant dense<0.000000e+00> : vector<8xf32>
    %9 = vector.multi_reduction <add>, %1, %cst [1] : vector<8x32xf32> to vector<8xf32>
    %10 = vector.shape_cast %9 : vector<8xf32> to vector<8x1xf32>
    %cst_8 = arith.constant 3.200000e+01 : f32
    %11 = vector.broadcast %cst_8 : f32 to vector<8x1xf32>
    %12 = arith.divf %10, %11 : vector<8x1xf32>
    %13 = vector.broadcast %12 : vector<8x1xf32> to vector<8x32xf32>
    %14 = arith.subf %1, %13 : vector<8x32xf32>
    %15 = arith.mulf %14, %14 : vector<8x32xf32>
    %cst_9 = arith.constant dense<0.000000e+00> : vector<8xf32>
    %16 = vector.multi_reduction <add>, %15, %cst_9 [1] : vector<8x32xf32> to vector<8xf32>
    %17 = vector.shape_cast %16 : vector<8xf32> to vector<8x1xf32>
    %cst_10 = arith.constant 3.200000e+01 : f32
    %18 = vector.broadcast %cst_10 : f32 to vector<8x1xf32>
    %19 = arith.divf %17, %18 : vector<8x1xf32>
    %20 = vector.broadcast %12 : vector<8x1xf32> to vector<8x32xf32>
    %21 = arith.subf %1, %20 : vector<8x32xf32>
    %cst_11 = arith.constant 9.99999974E-6 : f32
    %22 = vector.broadcast %cst_11 : f32 to vector<8x1xf32>
    %23 = arith.addf %19, %22 : vector<8x1xf32>
    %24 = math.rsqrt %23 : vector<8x1xf32>
    %25 = vector.broadcast %24 : vector<8x1xf32> to vector<8x32xf32>
    %26 = arith.mulf %21, %25 : vector<8x32xf32>
    %27 = vector.broadcast %7 : vector<1x32xf32> to vector<8x32xf32>
    %28 = arith.mulf %26, %27 : vector<8x32xf32>
    %29 = vector.broadcast %8 : vector<1x32xf32> to vector<8x32xf32>
    %30 = arith.addf %28, %29 : vector<8x32xf32>
    %31 = arith.truncf %30 : vector<8x32xf32> to vector<8x32xbf16>
    %c0_12 = arith.constant 0 : index
    %c0_13 = arith.constant 0 : index
    %32 = vector.load %arg3[%c0_12, %c0_13] : memref<1x32xf32, #tpu.memory_space<vmem>>, vector<1x32xf32>
    %c0_14 = arith.constant 0 : index
    %c0_15 = arith.constant 0 : index
    %33 = vector.load %arg4[%c0_14, %c0_15] : memref<1x32xf32, #tpu.memory_space<vmem>>, vector<1x32xf32>
    %cst_16 = arith.constant dense<0.000000e+00> : vector<8xf32>
    %34 = vector.multi_reduction <add>, %6, %cst_16 [1] : vector<8x32xf32> to vector<8xf32>
    %35 = vector.shape_cast %34 : vector<8xf32> to vector<8x1xf32>
    %cst_17 = arith.constant 3.200000e+01 : f32
    %36 = vector.broadcast %cst_17 : f32 to vector<8x1xf32>
    %37 = arith.divf %35, %36 : vector<8x1xf32>
    %38 = vector.broadcast %37 : vector<8x1xf32> to vector<8x32xf32>
    %39 = arith.subf %6, %38 : vector<8x32xf32>
    %40 = arith.mulf %39, %39 : vector<8x32xf32>
    %cst_18 = arith.constant dense<0.000000e+00> : vector<8xf32>
    %41 = vector.multi_reduction <add>, %40, %cst_18 [1] : vector<8x32xf32> to vector<8xf32>
    %42 = vector.shape_cast %41 : vector<8xf32> to vector<8x1xf32>
    %cst_19 = arith.constant 3.200000e+01 : f32
    %43 = vector.broadcast %cst_19 : f32 to vector<8x1xf32>
    %44 = arith.divf %42, %43 : vector<8x1xf32>
    %45 = vector.broadcast %37 : vector<8x1xf32> to vector<8x32xf32>
    %46 = arith.subf %6, %45 : vector<8x32xf32>
    %cst_20 = arith.constant 9.99999974E-6 : f32
    %47 = vector.broadcast %cst_20 : f32 to vector<8x1xf32>
    %48 = arith.addf %44, %47 : vector<8x1xf32>
    %49 = math.rsqrt %48 : vector<8x1xf32>
    %50 = vector.broadcast %49 : vector<8x1xf32> to vector<8x32xf32>
    %51 = arith.mulf %46, %50 : vector<8x32xf32>
    %52 = vector.broadcast %32 : vector<1x32xf32> to vector<8x32xf32>
    %53 = arith.mulf %51, %52 : vector<8x32xf32>
    %54 = vector.broadcast %33 : vector<1x32xf32> to vector<8x32xf32>
    %55 = arith.addf %53, %54 : vector<8x32xf32>
    %56 = arith.truncf %55 : vector<8x32xf32> to vector<8x32xbf16>
    %c0_21 = arith.constant 0 : index
    %c0_22 = arith.constant 0 : index
    %57 = vector.load %arg5[%c0_21, %c0_22] : memref<32x32xbf16, #tpu.memory_space<vmem>>, vector<32x32xbf16>
    %cst_23 = arith.constant dense<0.000000e+00> : vector<8x32xf32>
    %58 = tpu.matmul %56, %57, %cst_23 {dimension_numbers = #tpu.dot_dimension_numbers<[1], [0], [0], [1], [0, 0, 1, 1], [], []>} : vector<8x32xbf16>, vector<32x32xbf16>, vector<8x32xf32> -> vector<8x32xf32>
    %cst_24 = arith.constant 0.353553385 : f32
    %59 = vector.broadcast %cst_24 : f32 to vector<8x32xf32>
    %60 = arith.mulf %58, %59 : vector<8x32xf32>
    %c0_25 = arith.constant 0 : index
    %c0_26 = arith.constant 0 : index
    %61 = vector.load %arg6[%c0_25, %c0_26] : memref<32x32xbf16, #tpu.memory_space<vmem>>, vector<32x32xbf16>
    %cst_27 = arith.constant dense<0.000000e+00> : vector<8x32xf32>
    %62 = tpu.matmul %31, %61, %cst_27 {dimension_numbers = #tpu.dot_dimension_numbers<[1], [0], [0], [1], [0, 0, 1, 1], [], []>} : vector<8x32xbf16>, vector<32x32xbf16>, vector<8x32xf32> -> vector<8x32xf32>
    %c0_28 = arith.constant 0 : index
    %c0_29 = arith.constant 0 : index
    %63 = vector.load %arg7[%c0_28, %c0_29] : memref<32x32xbf16, #tpu.memory_space<vmem>>, vector<32x32xbf16>
    %cst_30 = arith.constant dense<0.000000e+00> : vector<8x32xf32>
    %64 = tpu.matmul %31, %63, %cst_30 {dimension_numbers = #tpu.dot_dimension_numbers<[1], [0], [0], [1], [0, 0, 1, 1], [], []>} : vector<8x32xbf16>, vector<32x32xbf16>, vector<8x32xf32> -> vector<8x32xf32>
    %65 = vector.shape_cast %60 : vector<8x32xf32> to vector<8x4x8xf32>
    %66 = arith.truncf %65 : vector<8x4x8xf32> to vector<8x4x8xbf16>
    %67 = vector.shape_cast %62 : vector<8x32xf32> to vector<8x4x8xf32>
    %68 = arith.truncf %67 : vector<8x4x8xf32> to vector<8x4x8xbf16>
    %69 = vector.shape_cast %64 : vector<8x32xf32> to vector<8x4x8xf32>
    %70 = arith.truncf %69 : vector<8x4x8xf32> to vector<8x4x8xbf16>
    "tpu.trace_start"() <{level = 10 : i32, message = "qhd,khd->hqk"}> : () -> ()
    %cst_31 = arith.constant dense<0.000000e+00> : vector<4x8x8xf32>
    %71 = tpu.matmul %66, %68, %cst_31 {dimension_numbers = #tpu.dot_dimension_numbers<[2], [2], [0], [0], [0, 1, 0, 0, 1, 0], [1], [1]>} : vector<8x4x8xbf16>, vector<8x4x8xbf16>, vector<4x8x8xf32> -> vector<4x8x8xf32>
    "tpu.trace_stop"() : () -> ()
    %72 = tpu.iota {dimensions = array<i32: 0>} : vector<8x8xi32>
    %73 = vector.broadcast %3 : i32 to vector<8x8xi32>
    %74 = arith.addi %73, %72 : vector<8x8xi32>
    %75 = tpu.iota {dimensions = array<i32: 1>} : vector<8x8xi32>
    %76 = arith.cmpi sge, %74, %75 : vector<8x8xi32>
    %77 = vector.shape_cast %76 : vector<8x8xi1> to vector<1x8x8xi1>
    %cst_32 = arith.constant 0.000000e+00 : f32
    %78 = vector.broadcast %cst_32 : f32 to vector<4x8x8xf32>
    %79 = arith.cmpf one, %71, %78 : vector<4x8x8xf32>
    %80 = vector.broadcast %77 : vector<1x8x8xi1> to vector<4x8x8xi1>
    %81 = arith.andi %80, %79 : vector<4x8x8xi1>
    %cst_33 = arith.constant 0xFF800000 : f32
    %82 = vector.broadcast %cst_33 : f32 to vector<4x8x8xf32>
    %83 = arith.select %81, %71, %82 : vector<4x8x8xi1>, vector<4x8x8xf32>
    %cst_34 = arith.constant dense<0xFF800000> : vector<4x8xf32>
    %84 = vector.multi_reduction <maximumf>, %83, %cst_34 [2] : vector<4x8x8xf32> to vector<4x8xf32>
    %85 = vector.shape_cast %84 : vector<4x8xf32> to vector<4x8x1xf32>
    %86 = vector.broadcast %85 : vector<4x8x1xf32> to vector<4x8x8xf32>
    %87 = arith.subf %83, %86 : vector<4x8x8xf32>
    %88 = math.exp %87 : vector<4x8x8xf32>
    %cst_35 = arith.constant dense<0.000000e+00> : vector<4x8xf32>
    %89 = vector.multi_reduction <add>, %88, %cst_35 [2] : vector<4x8x8xf32> to vector<4x8xf32>
    %90 = vector.shape_cast %89 : vector<4x8xf32> to vector<4x8x1xf32>
    %91 = tpu.reciprocal %90 {approx = true} : vector<4x8x1xf32> -> vector<4x8x1xf32>
    %92 = vector.broadcast %91 : vector<4x8x1xf32> to vector<4x8x8xf32>
    %93 = arith.mulf %88, %92 : vector<4x8x8xf32>
    %94 = arith.truncf %93 : vector<4x8x8xf32> to vector<4x8x8xbf16>
    "tpu.trace_start"() <{level = 10 : i32, message = "hqk,khd->hqd"}> : () -> ()
    %cst_36 = arith.constant dense<0.000000e+00> : vector<4x8x8xf32>
    %95 = tpu.matmul %94, %70, %cst_36 {dimension_numbers = #tpu.dot_dimension_numbers<[2], [0], [1], [2], [0, 0, 0, 1, 1, 2], [0], [1]>} : vector<4x8x8xbf16>, vector<8x4x8xbf16>, vector<4x8x8xf32> -> vector<4x8x8xf32>
    "tpu.trace_stop"() : () -> ()
    %96 = arith.truncf %95 : vector<4x8x8xf32> to vector<4x8x8xbf16>
    %97 = vector.extract_strided_slice %96 {offsets = [0, 0, 0], sizes = [1, 8, 8], strides = [1, 1, 1]} : vector<4x8x8xbf16> to vector<1x8x8xbf16>
    %98 = vector.shape_cast %97 : vector<1x8x8xbf16> to vector<8x8xbf16>
    %c0_37 = arith.constant 0 : index
    %c0_38 = arith.constant 0 : index
    %c0_39 = arith.constant 0 : index
    %99 = vector.load %arg8[%c0_37, %c0_38, %c0_39] : memref<4x8x32xbf16, #tpu.memory_space<vmem>>, vector<1x8x32xbf16>
    %100 = vector.shape_cast %99 : vector<1x8x32xbf16> to vector<8x32xbf16>
    %cst_40 = arith.constant dense<0.000000e+00> : vector<8x32xf32>
    %101 = tpu.matmul %98, %100, %cst_40 {dimension_numbers = #tpu.dot_dimension_numbers<[1], [0], [0], [1], [0, 0, 1, 1], [], []>} : vector<8x8xbf16>, vector<8x32xbf16>, vector<8x32xf32> -> vector<8x32xf32>
    %102 = arith.addf %6, %101 : vector<8x32xf32>
    %103 = vector.extract_strided_slice %96 {offsets = [1, 0, 0], sizes = [1, 8, 8], strides = [1, 1, 1]} : vector<4x8x8xbf16> to vector<1x8x8xbf16>
    %104 = vector.shape_cast %103 : vector<1x8x8xbf16> to vector<8x8xbf16>
    %c1 = arith.constant 1 : index
    %c0_41 = arith.constant 0 : index
    %c0_42 = arith.constant 0 : index
    %105 = vector.load %arg8[%c1, %c0_41, %c0_42] : memref<4x8x32xbf16, #tpu.memory_space<vmem>>, vector<1x8x32xbf16>
    %106 = vector.shape_cast %105 : vector<1x8x32xbf16> to vector<8x32xbf16>
    %cst_43 = arith.constant dense<0.000000e+00> : vector<8x32xf32>
    %107 = tpu.matmul %104, %106, %cst_43 {dimension_numbers = #tpu.dot_dimension_numbers<[1], [0], [0], [1], [0, 0, 1, 1], [], []>} : vector<8x8xbf16>, vector<8x32xbf16>, vector<8x32xf32> -> vector<8x32xf32>
    %108 = arith.addf %102, %107 : vector<8x32xf32>
    %109 = vector.extract_strided_slice %96 {offsets = [2, 0, 0], sizes = [1, 8, 8], strides = [1, 1, 1]} : vector<4x8x8xbf16> to vector<1x8x8xbf16>
    %110 = vector.shape_cast %109 : vector<1x8x8xbf16> to vector<8x8xbf16>
    %c2 = arith.constant 2 : index
    %c0_44 = arith.constant 0 : index
    %c0_45 = arith.constant 0 : index
    %111 = vector.load %arg8[%c2, %c0_44, %c0_45] : memref<4x8x32xbf16, #tpu.memory_space<vmem>>, vector<1x8x32xbf16>
    %112 = vector.shape_cast %111 : vector<1x8x32xbf16> to vector<8x32xbf16>
    %cst_46 = arith.constant dense<0.000000e+00> : vector<8x32xf32>
    %113 = tpu.matmul %110, %112, %cst_46 {dimension_numbers = #tpu.dot_dimension_numbers<[1], [0], [0], [1], [0, 0, 1, 1], [], []>} : vector<8x8xbf16>, vector<8x32xbf16>, vector<8x32xf32> -> vector<8x32xf32>
    %114 = arith.addf %108, %113 : vector<8x32xf32>
    %115 = vector.extract_strided_slice %96 {offsets = [3, 0, 0], sizes = [1, 8, 8], strides = [1, 1, 1]} : vector<4x8x8xbf16> to vector<1x8x8xbf16>
    %116 = vector.shape_cast %115 : vector<1x8x8xbf16> to vector<8x8xbf16>
    %c3 = arith.constant 3 : index
    %c0_47 = arith.constant 0 : index
    %c0_48 = arith.constant 0 : index
    %117 = vector.load %arg8[%c3, %c0_47, %c0_48] : memref<4x8x32xbf16, #tpu.memory_space<vmem>>, vector<1x8x32xbf16>
    %118 = vector.shape_cast %117 : vector<1x8x32xbf16> to vector<8x32xbf16>
    %cst_49 = arith.constant dense<0.000000e+00> : vector<8x32xf32>
    %119 = tpu.matmul %116, %118, %cst_49 {dimension_numbers = #tpu.dot_dimension_numbers<[1], [0], [0], [1], [0, 0, 1, 1], [], []>} : vector<8x8xbf16>, vector<8x32xbf16>, vector<8x32xf32> -> vector<8x32xf32>
    %120 = arith.addf %114, %119 : vector<8x32xf32>
    %c0_50 = arith.constant 0 : index
    %c0_51 = arith.constant 0 : index
    %121 = vector.load %arg9[%c0_50, %c0_51] : memref<1x32xf32, #tpu.memory_space<vmem>>, vector<1x32xf32>
    %c0_52 = arith.constant 0 : index
    %c0_53 = arith.constant 0 : index
    %122 = vector.load %arg10[%c0_52, %c0_53] : memref<1x32xf32, #tpu.memory_space<vmem>>, vector<1x32xf32>
    %cst_54 = arith.constant dense<0.000000e+00> : vector<8xf32>
    %123 = vector.multi_reduction <add>, %120, %cst_54 [1] : vector<8x32xf32> to vector<8xf32>
    %124 = vector.shape_cast %123 : vector<8xf32> to vector<8x1xf32>
    %cst_55 = arith.constant 3.200000e+01 : f32
    %125 = vector.broadcast %cst_55 : f32 to vector<8x1xf32>
    %126 = arith.divf %124, %125 : vector<8x1xf32>
    %127 = vector.broadcast %126 : vector<8x1xf32> to vector<8x32xf32>
    %128 = arith.subf %120, %127 : vector<8x32xf32>
    %129 = arith.mulf %128, %128 : vector<8x32xf32>
    %cst_56 = arith.constant dense<0.000000e+00> : vector<8xf32>
    %130 = vector.multi_reduction <add>, %129, %cst_56 [1] : vector<8x32xf32> to vector<8xf32>
    %131 = vector.shape_cast %130 : vector<8xf32> to vector<8x1xf32>
    %cst_57 = arith.constant 3.200000e+01 : f32
    %132 = vector.broadcast %cst_57 : f32 to vector<8x1xf32>
    %133 = arith.divf %131, %132 : vector<8x1xf32>
    %134 = vector.broadcast %126 : vector<8x1xf32> to vector<8x32xf32>
    %135 = arith.subf %120, %134 : vector<8x32xf32>
    %cst_58 = arith.constant 9.99999974E-6 : f32
    %136 = vector.broadcast %cst_58 : f32 to vector<8x1xf32>
    %137 = arith.addf %133, %136 : vector<8x1xf32>
    %138 = math.rsqrt %137 : vector<8x1xf32>
    %139 = vector.broadcast %138 : vector<8x1xf32> to vector<8x32xf32>
    %140 = arith.mulf %135, %139 : vector<8x32xf32>
    %141 = vector.broadcast %121 : vector<1x32xf32> to vector<8x32xf32>
    %142 = arith.mulf %140, %141 : vector<8x32xf32>
    %143 = vector.broadcast %122 : vector<1x32xf32> to vector<8x32xf32>
    %144 = arith.addf %142, %143 : vector<8x32xf32>
    %145 = arith.truncf %144 : vector<8x32xf32> to vector<8x32xbf16>
    %c0_59 = arith.constant 0 : index
    %c0_60 = arith.constant 0 : index
    %146 = vector.load %arg11[%c0_59, %c0_60] : memref<32x128xbf16, #tpu.memory_space<vmem>>, vector<32x128xbf16>
    %cst_61 = arith.constant dense<0.000000e+00> : vector<8x128xf32>
    %147 = tpu.matmul %145, %146, %cst_61 {dimension_numbers = #tpu.dot_dimension_numbers<[1], [0], [0], [1], [0, 0, 1, 1], [], []>} : vector<8x32xbf16>, vector<32x128xbf16>, vector<8x128xf32> -> vector<8x128xf32>
    %c0_62 = arith.constant 0 : index
    %c0_63 = arith.constant 0 : index
    %148 = vector.load %arg12[%c0_62, %c0_63] : memref<1x128xf32, #tpu.memory_space<vmem>>, vector<1x128xf32>
    %149 = vector.broadcast %148 : vector<1x128xf32> to vector<8x128xf32>
    %150 = arith.addf %147, %149 : vector<8x128xf32>
    %cst_64 = arith.constant 0.000000e+00 : f32
    %151 = vector.broadcast %cst_64 : f32 to vector<8x128xf32>
    %152 = arith.maximumf %150, %151 : vector<8x128xf32>
    %153 = arith.truncf %152 : vector<8x128xf32> to vector<8x128xbf16>
    %c0_65 = arith.constant 0 : index
    %c0_66 = arith.constant 0 : index
    %154 = vector.load %arg13[%c0_65, %c0_66] : memref<128x32xbf16, #tpu.memory_space<vmem>>, vector<128x32xbf16>
    %cst_67 = arith.constant dense<0.000000e+00> : vector<8x32xf32>
    %155 = tpu.matmul %153, %154, %cst_67 {dimension_numbers = #tpu.dot_dimension_numbers<[1], [0], [0], [1], [0, 0, 1, 1], [], []>} : vector<8x128xbf16>, vector<128x32xbf16>, vector<8x32xf32> -> vector<8x32xf32>
    %156 = arith.addf %120, %155 : vector<8x32xf32>
    %c0_68 = arith.constant 0 : index
    %c0_69 = arith.constant 0 : index
    %157 = vector.load %arg14[%c0_68, %c0_69] : memref<1x32xf32, #tpu.memory_space<vmem>>, vector<1x32xf32>
    %158 = vector.broadcast %157 : vector<1x32xf32> to vector<8x32xf32>
    %159 = arith.addf %156, %158 : vector<8x32xf32>
    %c0_70 = arith.constant 0 : index
    %c0_71 = arith.constant 0 : index
    %c0_72 = arith.constant 0 : index
    %160 = vector.load %arg15[%c0_70, %c0_71, %c0_72] : memref<1x8x32xf32, #tpu.memory_space<vmem>>, vector<1x8x32xf32>
    %161 = vector.shape_cast %160 : vector<1x8x32xf32> to vector<8x32xf32>
    %162 = vector.shape_cast %159 : vector<8x32xf32> to vector<1x8x32xf32>
    tpu.vector_store %arg15[%c0_70, %c0_71, %c0_72], %162 {strides = array<i32>} : memref<1x8x32xf32, #tpu.memory_space<vmem>>, vector<1x8x32xf32>,
    return
  }
  func.func @transform_0(%arg0: i32, %arg1: i32) -> (i32, i32, i32) {
    %c0_i32 = arith.constant 0 : i32
    %c0_i32_0 = arith.constant 0 : i32
    %c0_i32_1 = arith.constant 0 : i32
    return %arg0, %c0_i32, %c0_i32_0 : i32, i32, i32
  }
  func.func @transform_1(%arg0: i32, %arg1: i32) -> (i32, i32) {
    %c0_i32 = arith.constant 0 : i32
    %c0_i32_0 = arith.constant 0 : i32
    %c0_i32_1 = arith.constant 0 : i32
    return %c0_i32, %c0_i32_0 : i32, i32
  }
  func.func @transform_2(%arg0: i32, %arg1: i32) -> (i32, i32) {
    %c0_i32 = arith.constant 0 : i32
    %c0_i32_0 = arith.constant 0 : i32
    %c0_i32_1 = arith.constant 0 : i32
    return %c0_i32, %c0_i32_0 : i32, i32
  }
  func.func @transform_3(%arg0: i32, %arg1: i32) -> (i32, i32) {
    %c0_i32 = arith.constant 0 : i32
    %c0_i32_0 = arith.constant 0 : i32
    %c0_i32_1 = arith.constant 0 : i32
    return %c0_i32, %c0_i32_0 : i32, i32
  }
  func.func @transform_4(%arg0: i32, %arg1: i32) -> (i32, i32) {
    %c0_i32 = arith.constant 0 : i32
    %c0_i32_0 = arith.constant 0 : i32
    %c0_i32_1 = arith.constant 0 : i32
    return %c0_i32, %c0_i32_0 : i32, i32
  }
  func.func @transform_5(%arg0: i32, %arg1: i32) -> (i32, i32) {
    %c0_i32 = arith.constant 0 : i32
    %c0_i32_0 = arith.constant 0 : i32
    %c0_i32_1 = arith.constant 0 : i32
    return %c0_i32, %c0_i32_0 : i32, i32
  }
  func.func @transform_6(%arg0: i32, %arg1: i32) -> (i32, i32, i32) {
    %c0_i32 = arith.constant 0 : i32
    %c0_i32_0 = arith.constant 0 : i32
    %c0_i32_1 = arith.constant 0 : i32
    %c0_i32_2 = arith.constant 0 : i32
    return %c0_i32, %c0_i32_0, %c0_i32_1 : i32, i32, i32
  }
  func.func @transform_7(%arg0: i32, %arg1: i32) -> (i32, i32) {
    %c0_i32 = arith.constant 0 : i32
    %c0_i32_0 = arith.constant 0 : i32
    %c0_i32_1 = arith.constant 0 : i32
    return %c0_i32, %c0_i32_0 : i32, i32
  }
  func.func @transform_8(%arg0: i32, %arg1: i32) -> (i32, i32) {
    %c0_i32 = arith.constant 0 : i32
    %c0_i32_0 = arith.constant 0 : i32
    %c0_i32_1 = arith.constant 0 : i32
    return %c0_i32, %c0_i32_0 : i32, i32
  }
  func.func @transform_9(%arg0: i32, %arg1: i32) -> (i32, i32) {
    %c0_i32 = arith.constant 0 : i32
    %c0_i32_0 = arith.constant 0 : i32
    %c0_i32_1 = arith.constant 0 : i32
    return %c0_i32, %c0_i32_0 : i32, i32
  }
  func.func @transform_10(%arg0: i32, %arg1: i32) -> (i32, i32) {
    %c0_i32 = arith.constant 0 : i32
    %c0_i32_0 = arith.constant 0 : i32
    %c0_i32_1 = arith.constant 0 : i32
    return %c0_i32, %c0_i32_0 : i32, i32
  }
  func.func @transform_11(%arg0: i32, %arg1: i32) -> (i32, i32) {
    %c0_i32 = arith.constant 0 : i32
    %c0_i32_0 = arith.constant 0 : i32
    %c0_i32_1 = arith.constant 0 : i32
    return %c0_i32, %c0_i32_0 : i32, i32
  }
  func.func @transform_12(%arg0: i32, %arg1: i32) -> (i32, i32) {
    %c0_i32 = arith.constant 0 : i32
    %c0_i32_0 = arith.constant 0 : i32
    %c0_i32_1 = arith.constant 0 : i32
    return %c0_i32, %c0_i32_0 : i32, i32
  }
  func.func @transform_13(%arg0: i32, %arg1: i32) -> (i32, i32, i32) {
    %c0_i32 = arith.constant 0 : i32
    %c0_i32_0 = arith.constant 0 : i32
    return %arg0, %arg1, %c0_i32 : i32, i32, i32
  }
}

module attributes {stable_mosaic.version = 11 : i64} {
  func.func @decoder_block_kernel(%arg0: i32, %arg1: i32, %arg2: memref<1x8x32xf32, #tpu.memory_space<vmem>>, %arg3: memref<1x32xf32, #tpu.memory_space<vmem>>, %arg4: memref<1x32xf32, #tpu.memory_space<vmem>>, %arg5: memref<32x32xbf16, #tpu.memory_space<vmem>>, %arg6: memref<32x32xbf16, #tpu.memory_space<vmem>>, %arg7: memref<32x32xbf16, #tpu.memory_space<vmem>>, %arg8: memref<4x8x32xbf16, #tpu.memory_space<vmem>>, %arg9: memref<1x32xf32, #tpu.memory_space<vmem>>, %arg10: memref<1x32xf32, #tpu.memory_space<vmem>>, %arg11: memref<32x128xbf16, #tpu.memory_space<vmem>>, %arg12: memref<1x128xf32, #tpu.memory_space<vmem>>, %arg13: memref<128x32xbf16, #tpu.memory_space<vmem>>, %arg14: memref<1x32xf32, #tpu.memory_space<vmem>>, %arg15: memref<1x8x32xf32, #tpu.memory_space<vmem>>) attributes {dimension_semantics = [#tpu.dimension_semantics<parallel>, #tpu.dimension_semantics<parallel>], iteration_bounds = array<i64: 2, 1>, scalar_prefetch = 0 : i64, scratch_operands = 0 : i64, tpu.core_type = #tpu.core_type<tc>, window_params = [{transform_indices = @transform_0, window_bounds = array<i64: 1, 8, 32>}, {pipeline_mode = #tpu.pipeline_mode<synchronous>, transform_indices = @transform_1, window_bounds = array<i64: 1, 32>}, {pipeline_mode = #tpu.pipeline_mode<synchronous>, transform_indices = @transform_2, window_bounds = array<i64: 1, 32>}, {pipeline_mode = #tpu.pipeline_mode<synchronous>, transform_indices = @transform_3, window_bounds = array<i64: 32, 32>}, {pipeline_mode = #tpu.pipeline_mode<synchronous>, transform_indices = @transform_4, window_bounds = array<i64: 32, 32>}, {pipeline_mode = #tpu.pipeline_mode<synchronous>, transform_indices = @transform_5, window_bounds = array<i64: 32, 32>}, {pipeline_mode = #tpu.pipeline_mode<synchronous>, transform_indices = @transform_6, window_bounds = array<i64: 4, 8, 32>}, {pipeline_mode = #tpu.pipeline_mode<synchronous>, transform_indices = @transform_7, window_bounds = array<i64: 1, 32>}, {pipeline_mode = #tpu.pipeline_mode<synchronous>, transform_indices = @transform_8, window_bounds = array<i64: 1, 32>}, {pipeline_mode = #tpu.pipeline_mode<synchronous>, transform_indices = @transform_9, window_bounds = array<i64: 32, 128>}, {pipeline_mode = #tpu.pipeline_mode<synchronous>, transform_indices = @transform_10, window_bounds = array<i64: 1, 128>}, {pipeline_mode = #tpu.pipeline_mode<synchronous>, transform_indices = @transform_11, window_bounds = array<i64: 128, 32>}, {pipeline_mode = #tpu.pipeline_mode<synchronous>, transform_indices = @transform_12, window_bounds = array<i64: 1, 32>}, {transform_indices = @transform_13, window_bounds = array<i64: 1, 8, 32>}]} {
    %c0 = arith.constant 0 : index
    %c0_0 = arith.constant 0 : index
    %c0_1 = arith.constant 0 : index
    %0 = vector.load %arg2[%c0, %c0_0, %c0_1] : memref<1x8x32xf32, #tpu.memory_space<vmem>>, vector<1x8x32xf32>
    %1 = vector.shape_cast %0 : vector<1x8x32xf32> to vector<8x32xf32>
    %c8_i32 = arith.constant 8 : i32
    %2 = arith.muli %arg1, %c8_i32 : i32
    %3 = tpu.assume_multiple %2, 8 : i32
    %c0_2 = arith.constant 0 : index
    %4 = arith.index_cast %3 : i32 to index
    %c0_3 = arith.constant 0 : index
    %5 = vector.load %arg2[%c0_2, %4, %c0_3] : memref<1x8x32xf32, #tpu.memory_space<vmem>>, vector<1x8x32xf32>
    %6 = vector.shape_cast %5 : vector<1x8x32xf32> to vector<8x32xf32>
    %c0_4 = arith.constant 0 : index
    %c0_5 = arith.constant 0 : index
    %7 = vector.load %arg3[%c0_4, %c0_5] : memref<1x32xf32, #tpu.memory_space<vmem>>, vector<1x32xf32>
    %c0_6 = arith.constant 0 : index
    %c0_7 = arith.constant 0 : index
    %8 = vector.load %arg4[%c0_6, %c0_7] : memref<1x32xf32, #tpu.memory_space<vmem>>, vector<1x32xf32>
    %cst = arith.constant dense<0.000000e+00> : vector<8xf32>
    %9 = vector.multi_reduction <add>, %1, %cst [1] : vector<8x32xf32> to vector<8xf32>
    %10 = vector.shape_cast %9 : vector<8xf32> to vector<8x1xf32>
    %cst_8 = arith.constant 3.200000e+01 : f32
    %11 = vector.broadcast %cst_8 : f32 to vector<8x1xf32>
    %12 = arith.divf %10, %11 : vector<8x1xf32>
    %13 = vector.broadcast %12 : vector<8x1xf32> to vector<8x32xf32>
    %14 = arith.subf %1, %13 : vector<8x32xf32>
    %15 = arith.mulf %14, %14 : vector<8x32xf32>
    %cst_9 = arith.constant dense<0.000000e+00> : vector<8xf32>
    %16 = vector.multi_reduction <add>, %15, %cst_9 [1] : vector<8x32xf32> to vector<8xf32>
    %17 = vector.shape_cast %16 : vector<8xf32> to vector<8x1xf32>
    %cst_10 = arith.constant 3.200000e+01 : f32
    %18 = vector.broadcast %cst_10 : f32 to vector<8x1xf32>
    %19 = arith.divf %17, %18 : vector<8x1xf32>
    %20 = vector.broadcast %12 : vector<8x1xf32> to vector<8x32xf32>
    %21 = arith.subf %1, %20 : vector<8x32xf32>
    %cst_11 = arith.constant 9.99999974E-6 : f32
    %22 = vector.broadcast %cst_11 : f32 to vector<8x1xf32>
    %23 = arith.addf %19, %22 : vector<8x1xf32>
    %24 = math.rsqrt %23 : vector<8x1xf32>
    %25 = vector.broadcast %24 : vector<8x1xf32> to vector<8x32xf32>
    %26 = arith.mulf %21, %25 : vector<8x32xf32>
    %27 = vector.broadcast %7 : vector<1x32xf32> to vector<8x32xf32>
    %28 = arith.mulf %26, %27 : vector<8x32xf32>
    %29 = vector.broadcast %8 : vector<1x32xf32> to vector<8x32xf32>
    %30 = arith.addf %28, %29 : vector<8x32xf32>
    %31 = arith.truncf %30 : vector<8x32xf32> to vector<8x32xbf16>
    %c0_12 = arith.constant 0 : index
    %c0_13 = arith.constant 0 : index
    %32 = vector.load %arg3[%c0_12, %c0_13] : memref<1x32xf32, #tpu.memory_space<vmem>>, vector<1x32xf32>
    %c0_14 = arith.constant 0 : index
    %c0_15 = arith.constant 0 : index
    %33 = vector.load %arg4[%c0_14, %c0_15] : memref<1x32xf32, #tpu.memory_space<vmem>>, vector<1x32xf32>
    %cst_16 = arith.constant dense<0.000000e+00> : vector<8xf32>
    %34 = vector.multi_reduction <add>, %6, %cst_16 [1] : vector<8x32xf32> to vector<8xf32>
    %35 = vector.shape_cast %34 : vector<8xf32> to vector<8x1xf32>
    %cst_17 = arith.constant 3.200000e+01 : f32
    %36 = vector.broadcast %cst_17 : f32 to vector<8x1xf32>
    %37 = arith.divf %35, %36 : vector<8x1xf32>
    %38 = vector.broadcast %37 : vector<8x1xf32> to vector<8x32xf32>
    %39 = arith.subf %6, %38 : vector<8x32xf32>
    %40 = arith.mulf %39, %39 : vector<8x32xf32>
    %cst_18 = arith.constant dense<0.000000e+00> : vector<8xf32>
    %41 = vector.multi_reduction <add>, %40, %cst_18 [1] : vector<8x32xf32> to vector<8xf32>
    %42 = vector.shape_cast %41 : vector<8xf32> to vector<8x1xf32>
    %cst_19 = arith.constant 3.200000e+01 : f32
    %43 = vector.broadcast %cst_19 : f32 to vector<8x1xf32>
    %44 = arith.divf %42, %43 : vector<8x1xf32>
    %45 = vector.broadcast %37 : vector<8x1xf32> to vector<8x32xf32>
    %46 = arith.subf %6, %45 : vector<8x32xf32>
    %cst_20 = arith.constant 9.99999974E-6 : f32
    %47 = vector.broadcast %cst_20 : f32 to vector<8x1xf32>
    %48 = arith.addf %44, %47 : vector<8x1xf32>
    %49 = math.rsqrt %48 : vector<8x1xf32>
    %50 = vector.broadcast %49 : vector<8x1xf32> to vector<8x32xf32>
    %51 = arith.mulf %46, %50 : vector<8x32xf32>
    %52 = vector.broadcast %32 : vector<1x32xf32> to vector<8x32xf32>
    %53 = arith.mulf %51, %52 : vector<8x32xf32>
    %54 = vector.broadcast %33 : vector<1x32xf32> to vector<8x32xf32>
    %55 = arith.addf %53, %54 : vector<8x32xf32>
    %56 = arith.truncf %55 : vector<8x32xf32> to vector<8x32xbf16>
    %c0_21 = arith.constant 0 : index
    %c0_22 = arith.constant 0 : index
    %57 = vector.load %arg5[%c0_21, %c0_22] : memref<32x32xbf16, #tpu.memory_space<vmem>>, vector<32x32xbf16>
    %cst_23 = arith.constant dense<0.000000e+00> : vector<8x32xf32>
    %58 = tpu.matmul %56, %57, %cst_23 {dimension_numbers = #tpu.dot_dimension_numbers<[1], [0], [0], [1], [0, 0, 1, 1], [], []>} : vector<8x32xbf16>, vector<32x32xbf16>, vector<8x32xf32> -> vector<8x32xf32>
    %cst_24 = arith.constant 0.353553385 : f32
    %59 = vector.broadcast %cst_24 : f32 to vector<8x32xf32>
    %60 = arith.mulf %58, %59 : vector<8x32xf32>
    %c0_25 = arith.constant 0 : index
    %c0_26 = arith.constant 0 : index
    %61 = vector.load %arg6[%c0_25, %c0_26] : memref<32x32xbf16, #tpu.memory_space<vmem>>, vector<32x32xbf16>
    %cst_27 = arith.constant dense<0.000000e+00> : vector<8x32xf32>
    %62 = tpu.matmul %31, %61, %cst_27 {dimension_numbers = #tpu.dot_dimension_numbers<[1], [0], [0], [1], [0, 0, 1, 1], [], []>} : vector<8x32xbf16>, vector<32x32xbf16>, vector<8x32xf32> -> vector<8x32xf32>
    %c0_28 = arith.constant 0 : index
    %c0_29 = arith.constant 0 : index
    %63 = vector.load %arg7[%c0_28, %c0_29] : memref<32x32xbf16, #tpu.memory_space<vmem>>, vector<32x32xbf16>
    %cst_30 = arith.constant dense<0.000000e+00> : vector<8x32xf32>
    %64 = tpu.matmul %31, %63, %cst_30 {dimension_numbers = #tpu.dot_dimension_numbers<[1], [0], [0], [1], [0, 0, 1, 1], [], []>} : vector<8x32xbf16>, vector<32x32xbf16>, vector<8x32xf32> -> vector<8x32xf32>
    %65 = vector.shape_cast %60 : vector<8x32xf32> to vector<8x4x8xf32>
    %66 = arith.truncf %65 : vector<8x4x8xf32> to vector<8x4x8xbf16>
    %67 = vector.shape_cast %62 : vector<8x32xf32> to vector<8x4x8xf32>
    %68 = arith.truncf %67 : vector<8x4x8xf32> to vector<8x4x8xbf16>
    %69 = vector.shape_cast %64 : vector<8x32xf32> to vector<8x4x8xf32>
    %70 = arith.truncf %69 : vector<8x4x8xf32> to vector<8x4x8xbf16>
    "tpu.trace_start"() <{level = 10 : i32, message = "qhd,khd->hqk"}> : () -> ()
    %cst_31 = arith.constant dense<0.000000e+00> : vector<4x8x8xf32>
    %71 = tpu.matmul %66, %68, %cst_31 {dimension_numbers = #tpu.dot_dimension_numbers<[2], [2], [0], [0], [0, 1, 0, 0, 1, 0], [1], [1]>} : vector<8x4x8xbf16>, vector<8x4x8xbf16>, vector<4x8x8xf32> -> vector<4x8x8xf32>
    "tpu.trace_stop"() : () -> ()
    %72 = tpu.iota {dimensions = array<i32: 0>} : vector<8x8xi32>
    %73 = vector.broadcast %3 : i32 to vector<8x8xi32>
    %74 = arith.addi %73, %72 : vector<8x8xi32>
    %75 = tpu.iota {dimensions = array<i32: 1>} : vector<8x8xi32>
    %76 = arith.cmpi sge, %74, %75 : vector<8x8xi32>
    %77 = vector.shape_cast %76 : vector<8x8xi1> to vector<1x8x8xi1>
    %cst_32 = arith.constant 0.000000e+00 : f32
    %78 = vector.broadcast %cst_32 : f32 to vector<4x8x8xf32>
    %79 = arith.cmpf one, %71, %78 : vector<4x8x8xf32>
    %80 = vector.broadcast %77 : vector<1x8x8xi1> to vector<4x8x8xi1>
    %81 = arith.andi %80, %79 : vector<4x8x8xi1>
    %cst_33 = arith.constant 0xFF800000 : f32
    %82 = vector.broadcast %cst_33 : f32 to vector<4x8x8xf32>
    %83 = arith.select %81, %71, %82 : vector<4x8x8xi1>, vector<4x8x8xf32>
    %cst_34 = arith.constant dense<0xFF800000> : vector<4x8xf32>
    %84 = vector.multi_reduction <maximumf>, %83, %cst_34 [2] : vector<4x8x8xf32> to vector<4x8xf32>
    %85 = vector.shape_cast %84 : vector<4x8xf32> to vector<4x8x1xf32>
    %86 = vector.broadcast %85 : vector<4x8x1xf32> to vector<4x8x8xf32>
    %87 = arith.subf %83, %86 : vector<4x8x8xf32>
    %88 = math.exp %87 : vector<4x8x8xf32>
    %cst_35 = arith.constant dense<0.000000e+00> : vector<4x8xf32>
    %89 = vector.multi_reduction <add>, %88, %cst_35 [2] : vector<4x8x8xf32> to vector<4x8xf32>
    %90 = vector.shape_cast %89 : vector<4x8xf32> to vector<4x8x1xf32>
    %91 = tpu.reciprocal %90 {approx = true} : vector<4x8x1xf32> -> vector<4x8x1xf32>
    %92 = vector.broadcast %91 : vector<4x8x1xf32> to vector<4x8x8xf32>
    %93 = arith.mulf %88, %92 : vector<4x8x8xf32>
    %94 = arith.truncf %93 : vector<4x8x8xf32> to vector<4x8x8xbf16>
    "tpu.trace_start"() <{level = 10 : i32, message = "hqk,khd->hqd"}> : () -> ()
    %cst_36 = arith.constant dense<0.000000e+00> : vector<4x8x8xf32>
    %95 = tpu.matmul %94, %70, %cst_36 {dimension_numbers = #tpu.dot_dimension_numbers<[2], [0], [1], [2], [0, 0, 0, 1, 1, 2], [0], [1]>} : vector<4x8x8xbf16>, vector<8x4x8xbf16>, vector<4x8x8xf32> -> vector<4x8x8xf32>
    "tpu.trace_stop"() : () -> ()
    %96 = arith.truncf %95 : vector<4x8x8xf32> to vector<4x8x8xbf16>
    %97 = vector.extract_strided_slice %96 {offsets = [0, 0, 0], sizes = [1, 8, 8], strides = [1, 1, 1]} : vector<4x8x8xbf16> to vector<1x8x8xbf16>
    %98 = vector.shape_cast %97 : vector<1x8x8xbf16> to vector<8x8xbf16>
    %c0_37 = arith.constant 0 : index
    %c0_38 = arith.constant 0 : index
    %c0_39 = arith.constant 0 : index
    %99 = vector.load %arg8[%c0_37, %c0_38, %c0_39] : memref<4x8x32xbf16, #tpu.memory_space<vmem>>, vector<1x8x32xbf16>
    %100 = vector.shape_cast %99 : vector<1x8x32xbf16> to vector<8x32xbf16>
    %cst_40 = arith.constant dense<0.000000e+00> : vector<8x32xf32>
    %101 = tpu.matmul %98, %100, %cst_40 {dimension_numbers = #tpu.dot_dimension_numbers<[1], [0], [0], [1], [0, 0, 1, 1], [], []>} : vector<8x8xbf16>, vector<8x32xbf16>, vector<8x32xf32> -> vector<8x32xf32>
    %102 = arith.addf %6, %101 : vector<8x32xf32>
    %103 = vector.extract_strided_slice %96 {offsets = [1, 0, 0], sizes = [1, 8, 8], strides = [1, 1, 1]} : vector<4x8x8xbf16> to vector<1x8x8xbf16>
    %104 = vector.shape_cast %103 : vector<1x8x8xbf16> to vector<8x8xbf16>
    %c1 = arith.constant 1 : index
    %c0_41 = arith.constant 0 : index
    %c0_42 = arith.constant 0 : index
    %105 = vector.load %arg8[%c1, %c0_41, %c0_42] : memref<4x8x32xbf16, #tpu.memory_space<vmem>>, vector<1x8x32xbf16>
    %106 = vector.shape_cast %105 : vector<1x8x32xbf16> to vector<8x32xbf16>
    %cst_43 = arith.constant dense<0.000000e+00> : vector<8x32xf32>
    %107 = tpu.matmul %104, %106, %cst_43 {dimension_numbers = #tpu.dot_dimension_numbers<[1], [0], [0], [1], [0, 0, 1, 1], [], []>} : vector<8x8xbf16>, vector<8x32xbf16>, vector<8x32xf32> -> vector<8x32xf32>
    %108 = arith.addf %102, %107 : vector<8x32xf32>
    %109 = vector.extract_strided_slice %96 {offsets = [2, 0, 0], sizes = [1, 8, 8], strides = [1, 1, 1]} : vector<4x8x8xbf16> to vector<1x8x8xbf16>
    %110 = vector.shape_cast %109 : vector<1x8x8xbf16> to vector<8x8xbf16>
    %c2 = arith.constant 2 : index
    %c0_44 = arith.constant 0 : index
    %c0_45 = arith.constant 0 : index
    %111 = vector.load %arg8[%c2, %c0_44, %c0_45] : memref<4x8x32xbf16, #tpu.memory_space<vmem>>, vector<1x8x32xbf16>
    %112 = vector.shape_cast %111 : vector<1x8x32xbf16> to vector<8x32xbf16>
    %cst_46 = arith.constant dense<0.000000e+00> : vector<8x32xf32>
    %113 = tpu.matmul %110, %112, %cst_46 {dimension_numbers = #tpu.dot_dimension_numbers<[1], [0], [0], [1], [0, 0, 1, 1], [], []>} : vector<8x8xbf16>, vector<8x32xbf16>, vector<8x32xf32> -> vector<8x32xf32>
    %114 = arith.addf %108, %113 : vector<8x32xf32>
    %115 = vector.extract_strided_slice %96 {offsets = [3, 0, 0], sizes = [1, 8, 8], strides = [1, 1, 1]} : vector<4x8x8xbf16> to vector<1x8x8xbf16>
    %116 = vector.shape_cast %115 : vector<1x8x8xbf16> to vector<8x8xbf16>
    %c3 = arith.constant 3 : index
    %c0_47 = arith.constant 0 : index
    %c0_48 = arith.constant 0 : index
    %117 = vector.load %arg8[%c3, %c0_47, %c0_48] : memref<4x8x32xbf16, #tpu.memory_space<vmem>>, vector<1x8x32xbf16>
    %118 = vector.shape_cast %117 : vector<1x8x32xbf16> to vector<8x32xbf16>
    %cst_49 = arith.constant dense<0.000000e+00> : vector<8x32xf32>
    %119 = tpu.matmul %116, %118, %cst_49 {dimension_numbers = #tpu.dot_dimension_numbers<[1], [0], [0], [1], [0, 0, 1, 1], [], []>} : vector<8x8xbf16>, vector<8x32xbf16>, vector<8x32xf32> -> vector<8x32xf32>
    %120 = arith.addf %114, %119 : vector<8x32xf32>
    %c0_50 = arith.constant 0 : index
    %c0_51 = arith.constant 0 : index
    %121 = vector.load %arg9[%c0_50, %c0_51] : memref<1x32xf32, #tpu.memory_space<vmem>>, vector<1x32xf32>
    %c0_52 = arith.constant 0 : index
    %c0_53 = arith.constant 0 : index
    %122 = vector.load %arg10[%c0_52, %c0_53] : memref<1x32xf32, #tpu.memory_space<vmem>>, vector<1x32xf32>
    %cst_54 = arith.constant dense<0.000000e+00> : vector<8xf32>
    %123 = vector.multi_reduction <add>, %120, %cst_54 [1] : vector<8x32xf32> to vector<8xf32>
    %124 = vector.shape_cast %123 : vector<8xf32> to vector<8x1xf32>
    %cst_55 = arith.constant 3.200000e+01 : f32
    %125 = vector.broadcast %cst_55 : f32 to vector<8x1xf32>
    %126 = arith.divf %124, %125 : vector<8x1xf32>
    %127 = vector.broadcast %126 : vector<8x1xf32> to vector<8x32xf32>
    %128 = arith.subf %120, %127 : vector<8x32xf32>
    %129 = arith.mulf %128, %128 : vector<8x32xf32>
    %cst_56 = arith.constant dense<0.000000e+00> : vector<8xf32>
    %130 = vector.multi_reduction <add>, %129, %cst_56 [1] : vector<8x32xf32> to vector<8xf32>
    %131 = vector.shape_cast %130 : vector<8xf32> to vector<8x1xf32>
    %cst_57 = arith.constant 3.200000e+01 : f32
    %132 = vector.broadcast %cst_57 : f32 to vector<8x1xf32>
    %133 = arith.divf %131, %132 : vector<8x1xf32>
    %134 = vector.broadcast %126 : vector<8x1xf32> to vector<8x32xf32>
    %135 = arith.subf %120, %134 : vector<8x32xf32>
    %cst_58 = arith.constant 9.99999974E-6 : f32
    %136 = vector.broadcast %cst_58 : f32 to vector<8x1xf32>
    %137 = arith.addf %133, %136 : vector<8x1xf32>
    %138 = math.rsqrt %137 : vector<8x1xf32>
    %139 = vector.broadcast %138 : vector<8x1xf32> to vector<8x32xf32>
    %140 = arith.mulf %135, %139 : vector<8x32xf32>
    %141 = vector.broadcast %121 : vector<1x32xf32> to vector<8x32xf32>
    %142 = arith.mulf %140, %141 : vector<8x32xf32>
    %143 = vector.broadcast %122 : vector<1x32xf32> to vector<8x32xf32>
    %144 = arith.addf %142, %143 : vector<8x32xf32>
    %145 = arith.truncf %144 : vector<8x32xf32> to vector<8x32xbf16>
    %c0_59 = arith.constant 0 : index
    %c0_60 = arith.constant 0 : index
    %146 = vector.load %arg11[%c0_59, %c0_60] : memref<32x128xbf16, #tpu.memory_space<vmem>>, vector<32x128xbf16>
    %cst_61 = arith.constant dense<0.000000e+00> : vector<8x128xf32>
    %147 = tpu.matmul %145, %146, %cst_61 {dimension_numbers = #tpu.dot_dimension_numbers<[1], [0], [0], [1], [0, 0, 1, 1], [], []>} : vector<8x32xbf16>, vector<32x128xbf16>, vector<8x128xf32> -> vector<8x128xf32>
    %c0_62 = arith.constant 0 : index
    %c0_63 = arith.constant 0 : index
    %148 = vector.load %arg12[%c0_62, %c0_63] : memref<1x128xf32, #tpu.memory_space<vmem>>, vector<1x128xf32>
    %149 = vector.broadcast %148 : vector<1x128xf32> to vector<8x128xf32>
    %150 = arith.addf %147, %149 : vector<8x128xf32>
    %cst_64 = arith.constant 0.000000e+00 : f32
    %151 = vector.broadcast %cst_64 : f32 to vector<8x128xf32>
    %152 = arith.maximumf %150, %151 : vector<8x128xf32>
    %153 = arith.truncf %152 : vector<8x128xf32> to vector<8x128xbf16>
    %c0_65 = arith.constant 0 : index
    %c0_66 = arith.constant 0 : index
    %154 = vector.load %arg13[%c0_65, %c0_66] : memref<128x32xbf16, #tpu.memory_space<vmem>>, vector<128x32xbf16>
    %cst_67 = arith.constant dense<0.000000e+00> : vector<8x32xf32>
    %155 = tpu.matmul %153, %154, %cst_67 {dimension_numbers = #tpu.dot_dimension_numbers<[1], [0], [0], [1], [0, 0, 1, 1], [], []>} : vector<8x128xbf16>, vector<128x32xbf16>, vector<8x32xf32> -> vector<8x32xf32>
    %156 = arith.addf %120, %155 : vector<8x32xf32>
    %c0_68 = arith.constant 0 : index
    %c0_69 = arith.constant 0 : index
    %157 = vector.load %arg14[%c0_68, %c0_69] : memref<1x32xf32, #tpu.memory_space<vmem>>, vector<1x32xf32>
    %158 = vector.broadcast %157 : vector<1x32xf32> to vector<8x32xf32>
    %159 = arith.addf %156, %158 : vector<8x32xf32>
    %c0_70 = arith.constant 0 : index
    %c0_71 = arith.constant 0 : index
    %c0_72 = arith.constant 0 : index
    %160 = vector.load %arg15[%c0_70, %c0_71, %c0_72] : memref<1x8x32xf32, #tpu.memory_space<vmem>>, vector<1x8x32xf32>
    %161 = vector.shape_cast %160 : vector<1x8x32xf32> to vector<8x32xf32>
    %162 = vector.shape_cast %159 : vector<8x32xf32> to vector<1x8x32xf32>
    tpu.vector_store %arg15[%c0_70, %c0_71, %c0_72], %162 {strides = array<i32>} : memref<1x8x32xf32, #tpu.memory_space<vmem>>, vector<1x8x32xf32>,
    return
  }
  func.func @transform_0(%arg0: i32, %arg1: i32) -> (i32, i32, i32) {
    %c0_i32 = arith.constant 0 : i32
    %c0_i32_0 = arith.constant 0 : i32
    %c0_i32_1 = arith.constant 0 : i32
    return %arg0, %c0_i32, %c0_i32_0 : i32, i32, i32
  }
  func.func @transform_1(%arg0: i32, %arg1: i32) -> (i32, i32) {
    %c0_i32 = arith.constant 0 : i32
    %c0_i32_0 = arith.constant 0 : i32
    %c0_i32_1 = arith.constant 0 : i32
    return %c0_i32, %c0_i32_0 : i32, i32
  }
  func.func @transform_2(%arg0: i32, %arg1: i32) -> (i32, i32) {
    %c0_i32 = arith.constant 0 : i32
    %c0_i32_0 = arith.constant 0 : i32
    %c0_i32_1 = arith.constant 0 : i32
    return %c0_i32, %c0_i32_0 : i32, i32
  }
  func.func @transform_3(%arg0: i32, %arg1: i32) -> (i32, i32) {
    %c0_i32 = arith.constant 0 : i32
    %c0_i32_0 = arith.constant 0 : i32
    %c0_i32_1 = arith.constant 0 : i32
    return %c0_i32, %c0_i32_0 : i32, i32
  }
  func.func @transform_4(%arg0: i32, %arg1: i32) -> (i32, i32) {
    %c0_i32 = arith.constant 0 : i32
    %c0_i32_0 = arith.constant 0 : i32
    %c0_i32_1 = arith.constant 0 : i32
    return %c0_i32, %c0_i32_0 : i32, i32
  }
  func.func @transform_5(%arg0: i32, %arg1: i32) -> (i32, i32) {
    %c0_i32 = arith.constant 0 : i32
    %c0_i32_0 = arith.constant 0 : i32
    %c0_i32_1 = arith.constant 0 : i32
    return %c0_i32, %c0_i32_0 : i32, i32
  }
  func.func @transform_6(%arg0: i32, %arg1: i32) -> (i32, i32, i32) {
    %c0_i32 = arith.constant 0 : i32
    %c0_i32_0 = arith.constant 0 : i32
    %c0_i32_1 = arith.constant 0 : i32
    %c0_i32_2 = arith.constant 0 : i32
    return %c0_i32, %c0_i32_0, %c0_i32_1 : i32, i32, i32
  }
  func.func @transform_7(%arg0: i32, %arg1: i32) -> (i32, i32) {
    %c0_i32 = arith.constant 0 : i32
    %c0_i32_0 = arith.constant 0 : i32
    %c0_i32_1 = arith.constant 0 : i32
    return %c0_i32, %c0_i32_0 : i32, i32
  }
  func.func @transform_8(%arg0: i32, %arg1: i32) -> (i32, i32) {
    %c0_i32 = arith.constant 0 : i32
    %c0_i32_0 = arith.constant 0 : i32
    %c0_i32_1 = arith.constant 0 : i32
    return %c0_i32, %c0_i32_0 : i32, i32
  }
  func.func @transform_9(%arg0: i32, %arg1: i32) -> (i32, i32) {
    %c0_i32 = arith.constant 0 : i32
    %c0_i32_0 = arith.constant 0 : i32
    %c0_i32_1 = arith.constant 0 : i32
    return %c0_i32, %c0_i32_0 : i32, i32
  }
  func.func @transform_10(%arg0: i32, %arg1: i32) -> (i32, i32) {
    %c0_i32 = arith.constant 0 : i32
    %c0_i32_0 = arith.constant 0 : i32
    %c0_i32_1 = arith.constant 0 : i32
    return %c0_i32, %c0_i32_0 : i32, i32
  }
  func.func @transform_11(%arg0: i32, %arg1: i32) -> (i32, i32) {
    %c0_i32 = arith.constant 0 : i32
    %c0_i32_0 = arith.constant 0 : i32
    %c0_i32_1 = arith.constant 0 : i32
    return %c0_i32, %c0_i32_0 : i32, i32
  }
  func.func @transform_12(%arg0: i32, %arg1: i32) -> (i32, i32) {
    %c0_i32 = arith.constant 0 : i32
    %c0_i32_0 = arith.constant 0 : i32
    %c0_i32_1 = arith.constant 0 : i32
    return %c0_i32, %c0_i32_0 : i32, i32
  }
  func.func @transform_13(%arg0: i32, %arg1: i32) -> (i32, i32, i32) {
    %c0_i32 = arith.constant 0 : i32
    %c0_i32_0 = arith.constant 0 : i32
    return %arg0, %arg1, %c0_i32 : i32, i32, i32
  }
}

</mosaic_0001>

<llo_original>
// kernel: tpu_custom_call.1
$region0: #{tpu_custom_call.1}
  #allocation0 [shape = 'u32[]', space=smem, size = 0x4, offset = 0x4, fixed_abs, tag = 'smem constant byte address 0x4 - core index']
  #allocation1 [shape = 'u32[72,128]{1,0:T(1,128)}', space=vmem, size = 0x9000, scoped, tag = 'internal scratch']
  %s0 = inlined_call_operand.vmem [shape: f32[2,8,32], index: 0, kind: input, shape index: {}]
  %s1 = inlined_call_operand.hbm [shape: f32[1,32], index: 1, kind: input, shape index: {}]
  %s2 = inlined_call_operand.vmem [shape: f32[1,32], index: 2, kind: input, shape index: {}]
  %s3 = inlined_call_operand.vmem [shape: bf16[32,32], index: 3, kind: input, shape index: {}]
  %s4 = inlined_call_operand.vmem [shape: bf16[32,32], index: 4, kind: input, shape index: {}]
  %s5 = inlined_call_operand.vmem [shape: bf16[32,32], index: 5, kind: input, shape index: {}]
  %s6 = inlined_call_operand.vmem [shape: bf16[4,8,32], index: 6, kind: input, shape index: {}]
  %s7 = inlined_call_operand.vmem [shape: f32[1,32], index: 7, kind: input, shape index: {}]
  %s8 = inlined_call_operand.vmem [shape: f32[1,32], index: 8, kind: input, shape index: {}]
  %s9 = inlined_call_operand.hbm [shape: bf16[32,128], index: 9, kind: input, shape index: {}]
  %s10 = inlined_call_operand.vmem [shape: f32[1,128], index: 10, kind: input, shape index: {}]
  %s11 = inlined_call_operand.vmem [shape: bf16[128,32], index: 11, kind: input, shape index: {}]
  %s12 = inlined_call_operand.vmem [shape: f32[1,32], index: 12, kind: input, shape index: {}]
  %s13 = inlined_call_operand.hbm [shape: f32[2,8,32], index: 13, kind: output, shape index: {}]
  %s14 = sld [smem:[#allocation0]]
  $region93: #{tpu_custom_call.1} parent=0
    _
  %s16 = ssub.s32 1, %s14
  %s17 = scalar_select 0, %s16, %s14
  $region1: #{tpu_custom_call.1} parent=0
    #allocation2 [shape = 'u8[512]{0}', space=vmem, size = 0x400, scoped, tag = 'input window, operand 1, single buffered']
    #allocation3 [shape = 's32[2]{0}', space=sflag, size = 0x8, scoped, tag = 'scoped memory for tpu_custom_call.1']
    #allocation4 [shape = 's32[2]{0}', space=sflag, size = 0x8, scoped, tag = 'scoped memory for tpu_custom_call.1']
    #allocation5 [shape = 'u8[8192]{0}', space=vmem, size = 0x2000, scoped, tag = 'input window, operand 9, single buffered']
    #allocation6 [shape = 's32[1]{0}', space=sflag, size = 0x4, scoped, tag = 'scoped memory for tpu_custom_call.1']
    #allocation7 [shape = 'u8[8192]{0}', space=vmem, size = 0x2000, scoped, tag = 'output window, operand 0']
    %18 = vsyncpa [#allocation3], 0
    %19 = vsyncpa [#allocation6], 0
    %20 = vsyncpa [#allocation4], 0
    %s21 = scalar_lea.sflag [#allocation4], 1
    %22 = vsyncpa %s21, 0
    loop: start=0, step=1, limit=4
    $region2: #{tpu_custom_call.1} parent=1 // loop_pre_header
      _
    $region3: #{tpu_custom_call.1} parent=1 // loop_header
      %s24 = sphi 0, %s28
      %p25 = scmp.ge.s32.totalorder %s24, 4
      %s31 = sphi 0, %s43
      %s32 = sphi 0, %s39
      %s33 = sphi 0, %s31
      %s34 = sphi 0, %s32
      %s35 = sphi 0, %s33
      %s36 = sphi 0, %s34
      %s46 = sphi 0, %s48
      %s49 = sphi 0, %s46
      %s50 = sphi 0, %s49
      %s66 = sphi 0, %s50
      %s70 = sphi 0, %s70
      %s72 = sphi 0, %s70
      %s73 = sphi 0, %s72
      %s87 = sphi 0, %s73
      %s91 = sphi 0, %s91
      %s93 = sphi 0, %s91
      %s94 = sphi 0, %s93
      %s108 = sphi 0, %s94
      %s112 = sphi 0, %s112
      %s114 = sphi 0, %s112
      %s115 = sphi 0, %s114
      %s129 = sphi 0, %s115
      %s133 = sphi 0, %s133
      %s135 = sphi 0, %s133
      %s136 = sphi 0, %s135
      %s150 = sphi 0, %s136
      %s154 = sphi 0, %s154
      %s156 = sphi 0, %s154
      %s157 = sphi 0, %s156
      %s171 = sphi 0, %s157
      %s175 = sphi 0, %s175
      %s177 = sphi 0, %s175
      %s178 = sphi 0, %s177
      %s192 = sphi 0, %s178
      %s196 = sphi 0, %s196
      %s198 = sphi 0, %s196
      %s199 = sphi 0, %s198
      %s213 = sphi 0, %s199
      %s217 = sphi 0, %s217
      %s219 = sphi 0, %s217
      %s220 = sphi 0, %s219
      %s234 = sphi 0, %s220
      %s238 = sphi 0, %s238
      %s240 = sphi 0, %s238
      %s241 = sphi 0, %s240
      %s255 = sphi 0, %s241
      %s259 = sphi 0, %s259
      %s261 = sphi 0, %s259
      %s262 = sphi 0, %s261
      %s276 = sphi 0, %s262
      %s280 = sphi 0, %s280
      %s282 = sphi 0, %s280
      %s283 = sphi 0, %s282
      %s297 = sphi 0, %s283
      %s301 = sphi 0, %s301
      %s303 = sphi 0, %s301
      %s304 = sphi 0, %s303
      %s318 = sphi 0, %s304
      %s326 = sphi 0, %s328
      %s329 = sphi 0, %s326
      %s330 = sphi 0, %s329
      %s346 = sphi 0, %s330
    $region4: #{tpu_custom_call.1} parent=1 // loop_header_branch
      %27 = sbr.rel (%p25) target = $region8
    $region5: #{tpu_custom_call.1} parent=1 // loop_body
      %s29 = ssub.s32 %s24, 1
      %s30 = ssub.s32 %s24, 2
      %s37 = sadd.s32 1, %s32
      %p38 = scmp.ge.s32.totalorder %s37, 1
      %s39 = scalar_select %p38, 0, %s37
      %s40 = sadd.s32 1, %s31
      %s41 = scalar_select %p38, %s40, %s31
      %p42 = scmp.ge.s32.totalorder %s41, 2
      %s43 = scalar_select %p42, 0, %s41
      %s44 = ssub.s32 %s31, %s43
      %p45 = scmp.eq.s32.totalorder %s44, 0
      %s47 = sadd.s32 %s46, 1
      %s48 = scalar_select %p45, %s46, %s47
      %p51 = pneg %p45
      %p52 = scmp.eq.s32.totalorder %s24, 1
      %p53 = por %p51, %p52
      %p54 = scmp.ne.s32.totalorder %s46, %s49
      %p55 = scmp.eq.s32.totalorder %s24, 0
      %p56 = por %p54, %p55
      %p57 = scmp.ne.s32.totalorder %s46, %s49
      %p58 = scmp.eq.s32.totalorder %s29, 1
      %p59 = por %p57, %p58
      %p60 = scmp.ne.s32.totalorder %s49, %s50
      %p61 = scmp.eq.s32.totalorder %s29, 0
      %p62 = por %p60, %p61
      %p63 = scmp.ne.s32.totalorder %s49, %s50
      %p64 = scmp.eq.s32.totalorder %s30, 1
      %p65 = por %p63, %p64
      %p67 = scmp.ne.s32.totalorder %s50, %s66
      %p68 = scmp.eq.s32.totalorder %s30, 0
      %p69 = por %p67, %p68
      %s71 = sadd.s32 %s70, 1
      %p74 = scmp.eq.s32.totalorder %s24, 1
      %p75 = scmp.ne.s32.totalorder %s70, %s72
      %p76 = scmp.eq.s32.totalorder %s24, 0
      %p77 = por %p75, %p76
      %p78 = scmp.ne.s32.totalorder %s70, %s72
      %p79 = scmp.eq.s32.totalorder %s29, 1
      %p80 = por %p78, %p79
      %p81 = scmp.ne.s32.totalorder %s72, %s73
      %p82 = scmp.eq.s32.totalorder %s29, 0
      %p83 = por %p81, %p82
      %p84 = scmp.ne.s32.totalorder %s72, %s73
      %p85 = scmp.eq.s32.totalorder %s30, 1
      %p86 = por %p84, %p85
      %p88 = scmp.ne.s32.totalorder %s73, %s87
      %p89 = scmp.eq.s32.totalorder %s30, 0
      %p90 = por %p88, %p89
      %s92 = sadd.s32 %s91, 1
      %p95 = scmp.eq.s32.totalorder %s24, 1
      %p96 = scmp.ne.s32.totalorder %s91, %s93
      %p97 = scmp.eq.s32.totalorder %s24, 0
      %p98 = por %p96, %p97
      %p99 = scmp.ne.s32.totalorder %s91, %s93
      %p100 = scmp.eq.s32.totalorder %s29, 1
      %p101 = por %p99, %p100
      %p102 = scmp.ne.s32.totalorder %s93, %s94
      %p103 = scmp.eq.s32.totalorder %s29, 0
      %p104 = por %p102, %p103
      %p105 = scmp.ne.s32.totalorder %s93, %s94
      %p106 = scmp.eq.s32.totalorder %s30, 1
      %p107 = por %p105, %p106
      %p109 = scmp.ne.s32.totalorder %s94, %s108
      %p110 = scmp.eq.s32.totalorder %s30, 0
      %p111 = por %p109, %p110
      %s113 = sadd.s32 %s112, 1
      %p116 = scmp.eq.s32.totalorder %s24, 1
      %p117 = scmp.ne.s32.totalorder %s112, %s114
      %p118 = scmp.eq.s32.totalorder %s24, 0
      %p119 = por %p117, %p118
      %p120 = scmp.ne.s32.totalorder %s112, %s114
      %p121 = scmp.eq.s32.totalorder %s29, 1
      %p122 = por %p120, %p121
      %p123 = scmp.ne.s32.totalorder %s114, %s115
      %p124 = scmp.eq.s32.totalorder %s29, 0
      %p125 = por %p123, %p124
      %p126 = scmp.ne.s32.totalorder %s114, %s115
      %p127 = scmp.eq.s32.totalorder %s30, 1
      %p128 = por %p126, %p127
      %p130 = scmp.ne.s32.totalorder %s115, %s129
      %p131 = scmp.eq.s32.totalorder %s30, 0
      %p132 = por %p130, %p131
      %s134 = sadd.s32 %s133, 1
      %p137 = scmp.eq.s32.totalorder %s24, 1
      %p138 = scmp.ne.s32.totalorder %s133, %s135
      %p139 = scmp.eq.s32.totalorder %s24, 0
      %p140 = por %p138, %p139
      %p141 = scmp.ne.s32.totalorder %s133, %s135
      %p142 = scmp.eq.s32.totalorder %s29, 1
      %p143 = por %p141, %p142
      %p144 = scmp.ne.s32.totalorder %s135, %s136
      %p145 = scmp.eq.s32.totalorder %s29, 0
      %p146 = por %p144, %p145
      %p147 = scmp.ne.s32.totalorder %s135, %s136
      %p148 = scmp.eq.s32.totalorder %s30, 1
      %p149 = por %p147, %p148
      %p151 = scmp.ne.s32.totalorder %s136, %s150
      %p152 = scmp.eq.s32.totalorder %s30, 0
      %p153 = por %p151, %p152
      %s155 = sadd.s32 %s154, 1
      %p158 = scmp.eq.s32.totalorder %s24, 1
      %p159 = scmp.ne.s32.totalorder %s154, %s156
      %p160 = scmp.eq.s32.totalorder %s24, 0
      %p161 = por %p159, %p160
      %p162 = scmp.ne.s32.totalorder %s154, %s156
      %p163 = scmp.eq.s32.totalorder %s29, 1
      %p164 = por %p162, %p163
      %p165 = scmp.ne.s32.totalorder %s156, %s157
      %p166 = scmp.eq.s32.totalorder %s29, 0
      %p167 = por %p165, %p166
      %p168 = scmp.ne.s32.totalorder %s156, %s157
      %p169 = scmp.eq.s32.totalorder %s30, 1
      %p170 = por %p168, %p169
      %p172 = scmp.ne.s32.totalorder %s157, %s171
      %p173 = scmp.eq.s32.totalorder %s30, 0
      %p174 = por %p172, %p173
      %s176 = sadd.s32 %s175, 1
      %p179 = scmp.eq.s32.totalorder %s24, 1
      %p180 = scmp.ne.s32.totalorder %s175, %s177
      %p181 = scmp.eq.s32.totalorder %s24, 0
      %p182 = por %p180, %p181
      %p183 = scmp.ne.s32.totalorder %s175, %s177
      %p184 = scmp.eq.s32.totalorder %s29, 1
      %p185 = por %p183, %p184
      %p186 = scmp.ne.s32.totalorder %s177, %s178
      %p187 = scmp.eq.s32.totalorder %s29, 0
      %p188 = por %p186, %p187
      %p189 = scmp.ne.s32.totalorder %s177, %s178
      %p190 = scmp.eq.s32.totalorder %s30, 1
      %p191 = por %p189, %p190
      %p193 = scmp.ne.s32.totalorder %s178, %s192
      %p194 = scmp.eq.s32.totalorder %s30, 0
      %p195 = por %p193, %p194
      %s197 = sadd.s32 %s196, 1
      %p200 = scmp.eq.s32.totalorder %s24, 1
      %p201 = scmp.ne.s32.totalorder %s196, %s198
      %p202 = scmp.eq.s32.totalorder %s24, 0
      %p203 = por %p201, %p202
      %p204 = scmp.ne.s32.totalorder %s196, %s198
      %p205 = scmp.eq.s32.totalorder %s29, 1
      %p206 = por %p204, %p205
      %p207 = scmp.ne.s32.totalorder %s198, %s199
      %p208 = scmp.eq.s32.totalorder %s29, 0
      %p209 = por %p207, %p208
      %p210 = scmp.ne.s32.totalorder %s198, %s199
      %p211 = scmp.eq.s32.totalorder %s30, 1
      %p212 = por %p210, %p211
      %p214 = scmp.ne.s32.totalorder %s199, %s213
      %p215 = scmp.eq.s32.totalorder %s30, 0
      %p216 = por %p214, %p215
      %s218 = sadd.s32 %s217, 1
      %p221 = scmp.eq.s32.totalorder %s24, 1
      %p222 = scmp.ne.s32.totalorder %s217, %s219
      %p223 = scmp.eq.s32.totalorder %s24, 0
      %p224 = por %p222, %p223
      %p225 = scmp.ne.s32.totalorder %s217, %s219
      %p226 = scmp.eq.s32.totalorder %s29, 1
      %p227 = por %p225, %p226
      %p228 = scmp.ne.s32.totalorder %s219, %s220
      %p229 = scmp.eq.s32.totalorder %s29, 0
      %p230 = por %p228, %p229
      %p231 = scmp.ne.s32.totalorder %s219, %s220
      %p232 = scmp.eq.s32.totalorder %s30, 1
      %p233 = por %p231, %p232
      %p235 = scmp.ne.s32.totalorder %s220, %s234
      %p236 = scmp.eq.s32.totalorder %s30, 0
      %p237 = por %p235, %p236
      %s239 = sadd.s32 %s238, 1
      %p242 = scmp.eq.s32.totalorder %s24, 1
      %p243 = scmp.ne.s32.totalorder %s238, %s240
      %p244 = scmp.eq.s32.totalorder %s24, 0
      %p245 = por %p243, %p244
      %p246 = scmp.ne.s32.totalorder %s238, %s240
      %p247 = scmp.eq.s32.totalorder %s29, 1
      %p248 = por %p246, %p247
      %p249 = scmp.ne.s32.totalorder %s240, %s241
      %p250 = scmp.eq.s32.totalorder %s29, 0
      %p251 = por %p249, %p250
      %p252 = scmp.ne.s32.totalorder %s240, %s241
      %p253 = scmp.eq.s32.totalorder %s30, 1
      %p254 = por %p252, %p253
      %p256 = scmp.ne.s32.totalorder %s241, %s255
      %p257 = scmp.eq.s32.totalorder %s30, 0
      %p258 = por %p256, %p257
      %s260 = sadd.s32 %s259, 1
      %p263 = scmp.eq.s32.totalorder %s24, 1
      %p264 = scmp.ne.s32.totalorder %s259, %s261
      %p265 = scmp.eq.s32.totalorder %s24, 0
      %p266 = por %p264, %p265
      %p267 = scmp.ne.s32.totalorder %s259, %s261
      %p268 = scmp.eq.s32.totalorder %s29, 1
      %p269 = por %p267, %p268
      %p270 = scmp.ne.s32.totalorder %s261, %s262
      %p271 = scmp.eq.s32.totalorder %s29, 0
      %p272 = por %p270, %p271
      %p273 = scmp.ne.s32.totalorder %s261, %s262
      %p274 = scmp.eq.s32.totalorder %s30, 1
      %p275 = por %p273, %p274
      %p277 = scmp.ne.s32.totalorder %s262, %s276
      %p278 = scmp.eq.s32.totalorder %s30, 0
      %p279 = por %p277, %p278
      %s281 = sadd.s32 %s280, 1
      %p284 = scmp.eq.s32.totalorder %s24, 1
      %p285 = scmp.ne.s32.totalorder %s280, %s282
      %p286 = scmp.eq.s32.totalorder %s24, 0
      %p287 = por %p285, %p286
      %p288 = scmp.ne.s32.totalorder %s280, %s282
      %p289 = scmp.eq.s32.totalorder %s29, 1
      %p290 = por %p288, %p289
      %p291 = scmp.ne.s32.totalorder %s282, %s283
      %p292 = scmp.eq.s32.totalorder %s29, 0
      %p293 = por %p291, %p292
      %p294 = scmp.ne.s32.totalorder %s282, %s283
      %p295 = scmp.eq.s32.totalorder %s30, 1
      %p296 = por %p294, %p295
      %p298 = scmp.ne.s32.totalorder %s283, %s297
      %p299 = scmp.eq.s32.totalorder %s30, 0
      %p300 = por %p298, %p299
      %s302 = sadd.s32 %s301, 1
      %p305 = scmp.eq.s32.totalorder %s24, 1
      %p306 = scmp.ne.s32.totalorder %s301, %s303
      %p307 = scmp.eq.s32.totalorder %s24, 0
      %p308 = por %p306, %p307
      %p309 = scmp.ne.s32.totalorder %s301, %s303
      %p310 = scmp.eq.s32.totalorder %s29, 1
      %p311 = por %p309, %p310
      %p312 = scmp.ne.s32.totalorder %s303, %s304
      %p313 = scmp.eq.s32.totalorder %s29, 0
      %p314 = por %p312, %p313
      %p315 = scmp.ne.s32.totalorder %s303, %s304
      %p316 = scmp.eq.s32.totalorder %s30, 1
      %p317 = por %p315, %p316
      %p319 = scmp.ne.s32.totalorder %s304, %s318
      %p320 = scmp.eq.s32.totalorder %s30, 0
      %p321 = por %p319, %p320
      %s322 = ssub.s32 %s31, %s43
      %s323 = ssub.s32 %s32, %s39
      %s324 = sor.u32 %s322, %s323
      %p325 = scmp.eq.s32.totalorder %s324, 0
      %s327 = sadd.s32 %s326, 1
      %s328 = scalar_select %p325, %s326, %s327
      %p331 = pneg %p325
      %p332 = scmp.eq.s32.totalorder %s24, 1
      %p333 = por %p331, %p332
      %p334 = scmp.ne.s32.totalorder %s326, %s329
      %p335 = scmp.eq.s32.totalorder %s24, 0
      %p336 = por %p334, %p335
      %p337 = scmp.ne.s32.totalorder %s326, %s329
      %p338 = scmp.eq.s32.totalorder %s29, 1
      %p339 = por %p337, %p338
      %p340 = scmp.ne.s32.totalorder %s329, %s330
      %p341 = scmp.eq.s32.totalorder %s29, 0
      %p342 = por %p340, %p341
      %p343 = scmp.ne.s32.totalorder %s329, %s330
      %p344 = scmp.eq.s32.totalorder %s30, 1
      %p345 = por %p343, %p344
      %p347 = scmp.ne.s32.totalorder %s330, %s346
      %p348 = scmp.eq.s32.totalorder %s30, 0
      %p349 = por %p347, %p348
      %p350 = scmp.le.s32.totalorder 1, %s24
      %p351 = scmp.lt.s32.totalorder %s24, 3
      %p352 = pnand %p350, %p351
      %p353 = pneg %p352
      // Predicated region
      $region9: #{tpu_custom_call.1} parent=5 // pred_check
        _
      $region10: #{tpu_custom_call.1} parent=5 // pred_check_branch
        %355 = sbr.rel (%p352) target = $region12
      $region11: #{tpu_custom_call.1} parent=5 // pred_region
        %s356 = ssub.s32 %s24, 1
        // Predicated region
        $region13: #{tpu_custom_call.1} parent=11 // pred_check
          %p357 = pneg %p83
        $region14: #{tpu_custom_call.1} parent=11 // pred_check_branch
          %359 = sbr.rel (%p357) target = $region16
        $region15: #{tpu_custom_call.1} parent=11 // pred_region
          %361 = vsyncadd [#allocation3], 0
          %s363 = sshll.u32 %s1, 4
          %s364 = int_to_ptr.hbm [resolvable:$true] %s363
          %s365 = sshll.u32 [#allocation2], 4
          %s366 = int_to_ptr.vmem [resolvable:$true] %s365
          %368 = dma.hbm_to_vmem [thread:$0]  %s364, 16, %s366, [#allocation3]
        $region16: #{tpu_custom_call.1} parent=11 // pred_fallthru
          _
        // Predicated region
        $region17: #{tpu_custom_call.1} parent=11 // pred_check
          %p369 = pneg %p104
        $region18: #{tpu_custom_call.1} parent=11 // pred_check_branch
          %371 = sbr.rel (%p369) target = $region20
        $region19: #{tpu_custom_call.1} parent=11 // pred_region
          _
        $region20: #{tpu_custom_call.1} parent=11 // pred_fallthru
          _
        // Predicated region
        $region21: #{tpu_custom_call.1} parent=11 // pred_check
          %p372 = pneg %p125
        $region22: #{tpu_custom_call.1} parent=11 // pred_check_branch
          %374 = sbr.rel (%p372) target = $region24
        $region23: #{tpu_custom_call.1} parent=11 // pred_region
          _
        $region24: #{tpu_custom_call.1} parent=11 // pred_fallthru
          _
        // Predicated region
        $region25: #{tpu_custom_call.1} parent=11 // pred_check
          %p375 = pneg %p146
        $region26: #{tpu_custom_call.1} parent=11 // pred_check_branch
          %377 = sbr.rel (%p375) target = $region28
        $region27: #{tpu_custom_call.1} parent=11 // pred_region
          _
        $region28: #{tpu_custom_call.1} parent=11 // pred_fallthru
          _
        // Predicated region
        $region29: #{tpu_custom_call.1} parent=11 // pred_check
          %p378 = pneg %p167
        $region30: #{tpu_custom_call.1} parent=11 // pred_check_branch
          %380 = sbr.rel (%p378) target = $region32
        $region31: #{tpu_custom_call.1} parent=11 // pred_region
          _
        $region32: #{tpu_custom_call.1} parent=11 // pred_fallthru
          _
        // Predicated region
        $region33: #{tpu_custom_call.1} parent=11 // pred_check
          %p381 = pneg %p188
        $region34: #{tpu_custom_call.1} parent=11 // pred_check_branch
          %383 = sbr.rel (%p381) target = $region36
        $region35: #{tpu_custom_call.1} parent=11 // pred_region
          _
        $region36: #{tpu_custom_call.1} parent=11 // pred_fallthru
          _
        // Predicated region
        $region37: #{tpu_custom_call.1} parent=11 // pred_check
          %p384 = pneg %p209
        $region38: #{tpu_custom_call.1} parent=11 // pred_check_branch
          %386 = sbr.rel (%p384) target = $region40
        $region39: #{tpu_custom_call.1} parent=11 // pred_region
          _
        $region40: #{tpu_custom_call.1} parent=11 // pred_fallthru
          _
        // Predicated region
        $region41: #{tpu_custom_call.1} parent=11 // pred_check
          %p387 = pneg %p230
        $region42: #{tpu_custom_call.1} parent=11 // pred_check_branch
          %389 = sbr.rel (%p387) target = $region44
        $region43: #{tpu_custom_call.1} parent=11 // pred_region
          _
        $region44: #{tpu_custom_call.1} parent=11 // pred_fallthru
          _
        // Predicated region
        $region45: #{tpu_custom_call.1} parent=11 // pred_check
          %p390 = pneg %p251
        $region46: #{tpu_custom_call.1} parent=11 // pred_check_branch
          %392 = sbr.rel (%p390) target = $region48
        $region47: #{tpu_custom_call.1} parent=11 // pred_region
          %394 = vsyncadd [#allocation6], 0
          %s395 = sshll.u32 %s9, 4
          %s396 = int_to_ptr.hbm [resolvable:$true] %s395
          %s397 = sshll.u32 [#allocation5], 4
          %s398 = int_to_ptr.vmem [resolvable:$true] %s397
          %403 = dma.hbm_to_vmem [thread:$0]  %s396, 256, %s398, [#allocation6], 64, 64, 4
        $region48: #{tpu_custom_call.1} parent=11 // pred_fallthru
          _
        // Predicated region
        $region49: #{tpu_custom_call.1} parent=11 // pred_check
          %p404 = pneg %p272
        $region50: #{tpu_custom_call.1} parent=11 // pred_check_branch
          %406 = sbr.rel (%p404) target = $region52
        $region51: #{tpu_custom_call.1} parent=11 // pred_region
          _
        $region52: #{tpu_custom_call.1} parent=11 // pred_fallthru
          _
        // Predicated region
        $region53: #{tpu_custom_call.1} parent=11 // pred_check
          %p407 = pneg %p293
        $region54: #{tpu_custom_call.1} parent=11 // pred_check_branch
          %409 = sbr.rel (%p407) target = $region56
        $region55: #{tpu_custom_call.1} parent=11 // pred_region
          _
        $region56: #{tpu_custom_call.1} parent=11 // pred_fallthru
          _
        // Predicated region
        $region57: #{tpu_custom_call.1} parent=11 // pred_check
          %p410 = pneg %p314
        $region58: #{tpu_custom_call.1} parent=11 // pred_check_branch
          %412 = sbr.rel (%p410) target = $region60
        $region59: #{tpu_custom_call.1} parent=11 // pred_region
          _
        $region60: #{tpu_custom_call.1} parent=11 // pred_fallthru
          _
      $region12: #{tpu_custom_call.1} parent=5 // pred_fallthru
        _
      %p413 = scmp.lt.s32.totalorder %s24, 2
      // Predicated region
      $region61: #{tpu_custom_call.1} parent=5 // pred_check
        %p414 = pneg %p413
      $region62: #{tpu_custom_call.1} parent=5 // pred_check_branch
        %416 = sbr.rel (%p414) target = $region64
      $region63: #{tpu_custom_call.1} parent=5 // pred_region
        // Predicated region
        $region65: #{tpu_custom_call.1} parent=63 // pred_check
          %p417 = pneg %p56
        $region66: #{tpu_custom_call.1} parent=63 // pred_check_branch
          %419 = sbr.rel (%p417) target = $region68
        $region67: #{tpu_custom_call.1} parent=63 // pred_region
          %p420 = scmp.lt.s32.totalorder %s31, 1
          %s421 = scalar_select %p420, %s31, 1
          %s422 = smul.addr %s421, 8
          %s423 = scalar_lea.vmem %s0, %s422
        $region68: #{tpu_custom_call.1} parent=63 // pred_fallthru
          _
      $region64: #{tpu_custom_call.1} parent=5 // pred_fallthru
        _
      %p424 = scmp.le.s32.totalorder 1, %s24
      %p425 = scmp.lt.s32.totalorder %s24, 3
      %p426 = pnand %p424, %p425
      %p427 = pneg %p426
      // Predicated region
      $region69: #{tpu_custom_call.1} parent=5 // pred_check
        _
      $region70: #{tpu_custom_call.1} parent=5 // pred_check_branch
        %429 = sbr.rel (%p426) target = $region72
      $region71: #{tpu_custom_call.1} parent=5 // pred_region
        %s430 = ssub.s32 %s24, 1
        // Predicated region
        $region73: #{tpu_custom_call.1} parent=71 // pred_check
          %p431 = pneg %p83
        $region74: #{tpu_custom_call.1} parent=71 // pred_check_branch
          %433 = sbr.rel (%p431) target = $region76
        $region75: #{tpu_custom_call.1} parent=71 // pred_region
          %435 = dma.done [#allocation3], 16
        $region76: #{tpu_custom_call.1} parent=71 // pred_fallthru
          _
        // Predicated region
        $region77: #{tpu_custom_call.1} parent=71 // pred_check
          %p436 = pneg %p251
        $region78: #{tpu_custom_call.1} parent=71 // pred_check_branch
          %438 = sbr.rel (%p436) target = $region80
        $region79: #{tpu_custom_call.1} parent=71 // pred_region
          %440 = dma.done [#allocation6], 256
        $region80: #{tpu_custom_call.1} parent=71 // pred_fallthru
          _
        %p441 = scmp.lt.s32.totalorder %s33, 1
        %s442 = scalar_select %p441, %s33, 1
        %s443 = smul.addr %s442, 8
        %s444 = scalar_lea.vmem %s0, %s443
        %p445 = pneg %p62
        %p446 = pneg %p59
        %p447 = pneg %p83
        %p448 = pneg %p80
        %p449 = pneg %p104
        %p450 = pneg %p101
        %p451 = pneg %p125
        %p452 = pneg %p122
        %p453 = pneg %p146
        %p454 = pneg %p143
        %p455 = pneg %p167
        %p456 = pneg %p164
        %p457 = pneg %p188
        %p458 = pneg %p185
        %p459 = pneg %p209
        %p460 = pneg %p206
        %p461 = pneg %p230
        %p462 = pneg %p227
        %p463 = pneg %p251
        %p464 = pneg %p248
        %p465 = pneg %p272
        %p466 = pneg %p269
        %p467 = pneg %p293
        %p468 = pneg %p290
        %p469 = pneg %p314
        %p470 = pneg %p311
        %p471 = pneg %p342
        %p472 = pneg %p339
        %s473 = sand.u32 %s329, 1
        %s474 = scalar_lea.sflag [#allocation4], %s473
        %s475 = sand.u32 %s329, 1
        %s476 = smul.addr %s475, 8
        %s477 = scalar_lea.vmem [#allocation7], %s476
        %p478 = scmp.lt.s32.totalorder %s33, 1
        %s479 = scalar_select %p478, %s33, 1
        %s480 = smul.addr %s479, 8
        %s481 = scalar_lea.vmem %s0, %s480
        %v483 = vld [vmem:[%s481] sm:$0xff]
        %s484 = smul.u32 %s34, 8
        %s485 = scalar_lea.vmem %s481, %s484
        %v486 = vld [vmem:[%s485] sm:$0xff]
        %v487 = vld [vmem:[#allocation2] sm:$0x1]
        %v488 = vld [vmem:[%s2] sm:$0x1]
        %vm489 = vcmask 261120
        %v490 = vsel %vm489, %v483, 0.0
        %491 = vadd.xlane.f32.xlu0 %v490
        %v492 = vpop.xlane.xlu0 %491
        %v493 = vrcp.pop 32.0
        %v494 = vmul.f32 32.0, %v493
        %v495 = vsub.f32 1.0, %v494
        %v496 = vmul.f32 %v493, %v495
        %v497 = vadd.f32 %v493, %v496
        %vm498 = vweird.f32 %v493
        %v499 = vsel %vm498, %v493, %v497
        %v500 = vmul.f32 %v492, %v499
        %v501 = vsub.f32 %v483, %v500
        %v502 = vmul.f32 %v501, %v501
        %v503 = vsel %vm489, %v502, 0.0
        %504 = vadd.xlane.f32.xlu0 %v503
        %v505 = vpop.xlane.xlu0 %504
        %v506 = vmul.f32 %v505, %v499
        %v507 = vadd.f32 %v506, 1e-05
        %v508 = vrsqrt.pop %v507
        %v509 = vmul.f32 %v508, %v507
        %v510 = vmul.f32 %v509, %v508
        %v511 = vmul.f32 0.5, %v510
        %v512 = vsub.f32 1.5, %v511
        %v513 = vmul.f32 %v508, %v512
        %vm514 = vweird.f32 %v507
        %vm515 = vweird.f32 %v508
        %vm516 = vmor %vm514, %vm515
        %v517 = vsel %vm516, %v508, %v513
        %v518 = vmul.f32 %v501, %v517
        %v520 = vperm.slane %v487, 0
        %v522 = vmul.f32 %v518, %v520
        %v524 = vperm.slane %v488, 0
        %v526 = vadd.f32 %v522, %v524
        %v527 = vpack.c.bf16 %v526, %v526
        %v528 = vsel %vm489, %v486, 0.0
        %529 = vadd.xlane.f32.xlu0 %v528
        %v530 = vpop.xlane.xlu0 %529
        %v531 = vmul.f32 %v530, %v499
        %v532 = vsub.f32 %v486, %v531
        %v533 = vmul.f32 %v532, %v532
        %v534 = vsel %vm489, %v533, 0.0
        %535 = vadd.xlane.f32.xlu0 %v534
        %v536 = vpop.xlane.xlu0 %535
        %v537 = vmul.f32 %v536, %v499
        %v538 = vadd.f32 %v537, 1e-05
        %v539 = vrsqrt.pop %v538
        %v540 = vmul.f32 %v539, %v538
        %v541 = vmul.f32 %v540, %v539
        %v542 = vmul.f32 0.5, %v541
        %v543 = vsub.f32 1.5, %v542
        %v544 = vmul.f32 %v539, %v543
        %vm545 = vweird.f32 %v538
        %vm546 = vweird.f32 %v539
        %vm547 = vmor %vm545, %vm546
        %v548 = vsel %vm547, %v539, %v544
        %v549 = vmul.f32 %v532, %v548
        %v550 = vmul.f32 %v549, %v520
        %v551 = vadd.f32 %v550, %v524
        %v552 = vpack.c.bf16 %v551, %v551
        %v553 = vld [vmem:[%s3] sm:$0xf]
        %v554 = vld [vmem:[%s3 + $0x4] sm:$0xf]
        %v555 = vld [vmem:[%s3 + $0x8] sm:$0xf]
        %v556 = vld [vmem:[%s3 + $0xc] sm:$0xf]
        %v561 = vunpack.c.l.b16 %v553
        %v562 = vunpack.c.l.b16 %v554
        %v563 = vunpack.c.l.b16 %v555
        %v564 = vunpack.c.l.b16 %v556
        %v565 = vpack.c.b16 %v562, %v561
        %v566 = vpack.c.b16 %v564, %v563
        %v570 = vsel %vm489, %v552, 0
        %572 = vmatpush.bf16.msra.mxu0 0
        %573 = vmatpush.bf16.msra.mxu0 0
        %574 = vmatpush.bf16.msra.mxu0 0
        %575 = vmatpush.bf16.msra.mxu0 0
        %576 = vmatpush.bf16.msra.mxu0 0
        %577 = vmatpush.bf16.msra.mxu0 0
        %578 = vmatpush.bf16.msra.mxu0 %v566
        %579 = vmatpush.bf16.msra.mxu0 %v565
        %580 = vmatmul.bf16.gmra.mxu0 %v570
        %v581 = vpop.f32.mrf.mxu0
        %v582 = vadd.f32 0.0, %v581
        %v583 = vpop.f32.mrf.mxu0
        %584 = vdwg.mxu0
        %v585 = vmul.f32 %v582, 0.35355338
        %v586 = vld [vmem:[%s4] sm:$0xf]
        %v587 = vld [vmem:[%s4 + $0x4] sm:$0xf]
        %v588 = vld [vmem:[%s4 + $0x8] sm:$0xf]
        %v589 = vld [vmem:[%s4 + $0xc] sm:$0xf]
        %v594 = vunpack.c.l.b16 %v586
        %v595 = vunpack.c.l.b16 %v587
        %v596 = vunpack.c.l.b16 %v588
        %v597 = vunpack.c.l.b16 %v589
        %v598 = vpack.c.b16 %v595, %v594
        %v599 = vpack.c.b16 %v597, %v596
        %v603 = vsel %vm489, %v527, 0
        %605 = vmatpush.bf16.msra.mxu0 0
        %606 = vmatpush.bf16.msra.mxu0 0
        %607 = vmatpush.bf16.msra.mxu0 0
        %608 = vmatpush.bf16.msra.mxu0 0
        %609 = vmatpush.bf16.msra.mxu0 0
        %610 = vmatpush.bf16.msra.mxu0 0
        %611 = vmatpush.bf16.msra.mxu0 %v599
        %612 = vmatpush.bf16.msra.mxu0 %v598
        %613 = vmatmul.bf16.gmra.mxu0 %v603
        %v614 = vpop.f32.mrf.mxu0
        %v615 = vadd.f32 0.0, %v614
        %v616 = vpop.f32.mrf.mxu0
        %617 = vdwg.mxu0
        %v618 = vld [vmem:[%s5] sm:$0xf]
        %v619 = vld [vmem:[%s5 + $0x4] sm:$0xf]
        %v620 = vld [vmem:[%s5 + $0x8] sm:$0xf]
        %v621 = vld [vmem:[%s5 + $0xc] sm:$0xf]
        %v626 = vunpack.c.l.b16 %v618
        %v627 = vunpack.c.l.b16 %v619
        %v628 = vunpack.c.l.b16 %v620
        %v629 = vunpack.c.l.b16 %v621
        %v630 = vpack.c.b16 %v627, %v626
        %v631 = vpack.c.b16 %v629, %v628
        %634 = vmatpush.bf16.msra.mxu0 0
        %635 = vmatpush.bf16.msra.mxu0 0
        %636 = vmatpush.bf16.msra.mxu0 0
        %637 = vmatpush.bf16.msra.mxu0 0
        %638 = vmatpush.bf16.msra.mxu0 0
        %639 = vmatpush.bf16.msra.mxu0 0
        %640 = vmatpush.bf16.msra.mxu0 %v631
        %641 = vmatpush.bf16.msra.mxu0 %v630
        %642 = vmatmul.bf16.gmra.mxu0 %v603
        %v643 = vpop.f32.mrf.mxu0
        %v644 = vadd.f32 0.0, %v643
        %v645 = vpop.f32.mrf.mxu0
        %646 = vdwg.mxu0
        %648 = vrot.lane.b32.xlu0 %v585, 120
        %v649 = vpop.permute.xlu0 %648
        %651 = vrot.lane.b32.xlu0 %v585, 112
        %v652 = vpop.permute.xlu0 %651
        %654 = vrot.lane.b32.xlu0 %v585, 104
        %v655 = vpop.permute.xlu0 %654
        %v657 = vrot.slane %v652, 4
        %vm658 = vcmask 1047556
        %v659 = vsel %vm658, %v657, %v585
        %v660 = vrot.slane %v585, 4
        %v661 = vsel %vm658, %v652, %v660
        %v663 = vunpack.c.l.s4 1983009808
        %v664 = vunpack.c.0.s8 %v663
        %v665 = vperm.slane %v659, %v664
        %v667 = vunpack.c.l.s4 1983009808
        %v668 = vunpack.c.0.s8 %v667
        %v669 = vperm.slane %v661, %v668
        %v670 = vrot.slane %v655, 4
        %v671 = vsel %vm658, %v670, %v649
        %v672 = vrot.slane %v649, 4
        %v673 = vsel %vm658, %v655, %v672
        %v675 = vunpack.c.l.s4 1983009808
        %v676 = vunpack.c.0.s8 %v675
        %v677 = vperm.slane %v671, %v676
        %v679 = vunpack.c.l.s4 1983009808
        %v680 = vunpack.c.0.s8 %v679
        %v681 = vperm.slane %v673, %v680
        %v682 = vrot.slane %v677, 4
        %v683 = vsel %vm658, %v682, %v665
        %v684 = vrot.slane %v665, 4
        %v685 = vsel %vm658, %v677, %v684
        %v687 = vunpack.c.l.s4 1934713408
        %v688 = vunpack.c.0.s8 %v687
        %v689 = vperm.slane %v683, %v688
        %v691 = vunpack.c.l.s4 1934713408
        %v692 = vunpack.c.0.s8 %v691
        %v693 = vperm.slane %v685, %v692
        %v694 = vrot.slane %v681, 4
        %v695 = vsel %vm658, %v694, %v669
        %v696 = vrot.slane %v669, 4
        %v697 = vsel %vm658, %v681, %v696
        %v699 = vunpack.c.l.s4 1934713408
        %v700 = vunpack.c.0.s8 %v699
        %v701 = vperm.slane %v695, %v700
        %v703 = vunpack.c.l.s4 1934713408
        %v704 = vunpack.c.0.s8 %v703
        %v705 = vperm.slane %v697, %v704
        %v706 = vrot.slane %v689, 4
        %v707 = vsel %vm658, 0.0, %v706
        %v708 = vrot.slane %v693, 4
        %v709 = vsel %vm658, 0.0, %v708
        %v710 = vrot.slane %v701, 4
        %v711 = vsel %vm658, 0.0, %v710
        %v712 = vrot.slane %v705, 4
        %v713 = vsel %vm658, 0.0, %v712
        %v714 = vpack.c.bf16 %v689, %v689
        %v715 = vpack.c.bf16 %v707, %v707
        %v716 = vpack.c.bf16 %v693, %v693
        %v717 = vpack.c.bf16 %v709, %v709
        %v718 = vpack.c.bf16 %v701, %v701
        %v719 = vpack.c.bf16 %v711, %v711
        %v720 = vpack.c.bf16 %v705, %v705
        %v721 = vpack.c.bf16 %v713, %v713
        %723 = vrot.lane.b32.xlu0 %v615, 120
        %v724 = vpop.permute.xlu0 %723
        %726 = vrot.lane.b32.xlu0 %v615, 112
        %v727 = vpop.permute.xlu0 %726
        %729 = vrot.lane.b32.xlu0 %v615, 104
        %v730 = vpop.permute.xlu0 %729
        %v732 = vrot.slane %v727, 4
        %v733 = vsel %vm658, %v732, %v615
        %v734 = vrot.slane %v615, 4
        %v735 = vsel %vm658, %v727, %v734
        %v737 = vunpack.c.l.s4 1983009808
        %v738 = vunpack.c.0.s8 %v737
        %v739 = vperm.slane %v733, %v738
        %v741 = vunpack.c.l.s4 1983009808
        %v742 = vunpack.c.0.s8 %v741
        %v743 = vperm.slane %v735, %v742
        %v744 = vrot.slane %v730, 4
        %v745 = vsel %vm658, %v744, %v724
        %v746 = vrot.slane %v724, 4
        %v747 = vsel %vm658, %v730, %v746
        %v749 = vunpack.c.l.s4 1983009808
        %v750 = vunpack.c.0.s8 %v749
        %v751 = vperm.slane %v745, %v750
        %v753 = vunpack.c.l.s4 1983009808
        %v754 = vunpack.c.0.s8 %v753
        %v755 = vperm.slane %v747, %v754
        %v756 = vrot.slane %v751, 4
        %v757 = vsel %vm658, %v756, %v739
        %v758 = vrot.slane %v739, 4
        %v759 = vsel %vm658, %v751, %v758
        %v761 = vunpack.c.l.s4 1934713408
        %v762 = vunpack.c.0.s8 %v761
        %v763 = vperm.slane %v757, %v762
        %v765 = vunpack.c.l.s4 1934713408
        %v766 = vunpack.c.0.s8 %v765
        %v767 = vperm.slane %v759, %v766
        %v768 = vrot.slane %v755, 4
        %v769 = vsel %vm658, %v768, %v743
        %v770 = vrot.slane %v743, 4
        %v771 = vsel %vm658, %v755, %v770
        %v773 = vunpack.c.l.s4 1934713408
        %v774 = vunpack.c.0.s8 %v773
        %v775 = vperm.slane %v769, %v774
        %v777 = vunpack.c.l.s4 1934713408
        %v778 = vunpack.c.0.s8 %v777
        %v779 = vperm.slane %v771, %v778
        %v780 = vrot.slane %v763, 4
        %v781 = vsel %vm658, 0.0, %v780
        %v782 = vrot.slane %v767, 4
        %v783 = vsel %vm658, 0.0, %v782
        %v784 = vrot.slane %v775, 4
        %v785 = vsel %vm658, 0.0, %v784
        %v786 = vrot.slane %v779, 4
        %v787 = vsel %vm658, 0.0, %v786
        %v788 = vpack.c.bf16 %v763, %v763
        %v789 = vpack.c.bf16 %v781, %v781
        %v790 = vpack.c.bf16 %v767, %v767
        %v791 = vpack.c.bf16 %v783, %v783
        %v792 = vpack.c.bf16 %v775, %v775
        %v793 = vpack.c.bf16 %v785, %v785
        %v794 = vpack.c.bf16 %v779, %v779
        %v795 = vpack.c.bf16 %v787, %v787
        %797 = vrot.lane.b32.xlu0 %v644, 120
        %v798 = vpop.permute.xlu0 %797
        %800 = vrot.lane.b32.xlu0 %v644, 112
        %v801 = vpop.permute.xlu0 %800
        %803 = vrot.lane.b32.xlu0 %v644, 104
        %v804 = vpop.permute.xlu0 %803
        %v806 = vrot.slane %v801, 4
        %v807 = vsel %vm658, %v806, %v644
        %v808 = vrot.slane %v644, 4
        %v809 = vsel %vm658, %v801, %v808
        %v811 = vunpack.c.l.s4 1983009808
        %v812 = vunpack.c.0.s8 %v811
        %v813 = vperm.slane %v807, %v812
        %v815 = vunpack.c.l.s4 1983009808
        %v816 = vunpack.c.0.s8 %v815
        %v817 = vperm.slane %v809, %v816
        %v818 = vrot.slane %v804, 4
        %v819 = vsel %vm658, %v818, %v798
        %v820 = vrot.slane %v798, 4
        %v821 = vsel %vm658, %v804, %v820
        %v823 = vunpack.c.l.s4 1983009808
        %v824 = vunpack.c.0.s8 %v823
        %v825 = vperm.slane %v819, %v824
        %v827 = vunpack.c.l.s4 1983009808
        %v828 = vunpack.c.0.s8 %v827
        %v829 = vperm.slane %v821, %v828
        %v830 = vrot.slane %v825, 4
        %v831 = vsel %vm658, %v830, %v813
        %v832 = vrot.slane %v813, 4
        %v833 = vsel %vm658, %v825, %v832
        %v835 = vunpack.c.l.s4 1934713408
        %v836 = vunpack.c.0.s8 %v835
        %v837 = vperm.slane %v831, %v836
        %v839 = vunpack.c.l.s4 1934713408
        %v840 = vunpack.c.0.s8 %v839
        %v841 = vperm.slane %v833, %v840
        %v842 = vrot.slane %v829, 4
        %v843 = vsel %vm658, %v842, %v817
        %v844 = vrot.slane %v817, 4
        %v845 = vsel %vm658, %v829, %v844
        %v847 = vunpack.c.l.s4 1934713408
        %v848 = vunpack.c.0.s8 %v847
        %v849 = vperm.slane %v843, %v848
        %v851 = vunpack.c.l.s4 1934713408
        %v852 = vunpack.c.0.s8 %v851
        %v853 = vperm.slane %v845, %v852
        %v854 = vrot.slane %v837, 4
        %v855 = vsel %vm658, 0.0, %v854
        %v856 = vrot.slane %v841, 4
        %v857 = vsel %vm658, 0.0, %v856
        %v858 = vrot.slane %v849, 4
        %v859 = vsel %vm658, 0.0, %v858
        %v860 = vrot.slane %v853, 4
        %v861 = vsel %vm658, 0.0, %v860
        %v862 = vpack.c.bf16 %v837, %v837
        %v863 = vpack.c.bf16 %v855, %v855
        %v864 = vpack.c.bf16 %v841, %v841
        %v865 = vpack.c.bf16 %v857, %v857
        %v866 = vpack.c.bf16 %v849, %v849
        %v867 = vpack.c.bf16 %v859, %v859
        %v868 = vpack.c.bf16 %v853, %v853
        %v869 = vpack.c.bf16 %v861, %v861
        %v870 = vrot.slane %v718, 4
        %vm871 = vcmask 1047556
        %v872 = vsel %vm871, %v870, %v714
        %v874 = vunpack.c.l.s4 1983009808
        %v875 = vunpack.c.0.s8 %v874
        %v876 = vperm.slane %v872, %v875
        %v877 = vrot.slane %v720, 4
        %v878 = vsel %vm871, %v877, %v716
        %v880 = vunpack.c.l.s4 1983009808
        %v881 = vunpack.c.0.s8 %v880
        %v882 = vperm.slane %v878, %v881
        %v883 = vrot.slane %v882, 4
        %v884 = vsel %vm871, %v883, %v876
        %v886 = vunpack.c.l.s4 1934713408
        %v887 = vunpack.c.0.s8 %v886
        %v888 = vperm.slane %v884, %v887
        %v889 = vrot.slane %v888, 4
        %v890 = vsel %vm871, 0, %v889
        %v891 = vrot.slane %v719, 4
        %v892 = vsel %vm871, %v891, %v715
        %v894 = vunpack.c.l.s4 1983009808
        %v895 = vunpack.c.0.s8 %v894
        %v896 = vperm.slane %v892, %v895
        %v897 = vrot.slane %v721, 4
        %v898 = vsel %vm871, %v897, %v717
        %v900 = vunpack.c.l.s4 1983009808
        %v901 = vunpack.c.0.s8 %v900
        %v902 = vperm.slane %v898, %v901
        %v903 = vrot.slane %v902, 4
        %v904 = vsel %vm871, %v903, %v896
        %v906 = vunpack.c.l.s4 1934713408
        %v907 = vunpack.c.0.s8 %v906
        %v908 = vperm.slane %v904, %v907
        %v909 = vrot.slane %v908, 4
        %v910 = vsel %vm871, 0, %v909
        %v913 = vpack.i.b16 %v908, %v888
        %v914 = vshrl.u32 %v888, 16
        %v915 = vshrl.u32 %v908, 16
        %v916 = vpack.i.b16 %v915, %v914
        %v919 = vpack.i.b16 %v910, %v890
        %v920 = vshrl.u32 %v890, 16
        %v921 = vshrl.u32 %v910, 16
        %v922 = vpack.i.b16 %v921, %v920
        %923 = vxpose.xlu0.c.b16.start [1/8] %v788, 128
        %924 = vxpose.xlu0.c.b16.cont [2/8] 0, 128
        %925 = vxpose.xlu0.c.b16.cont [3/8] 0, 128
        %926 = vxpose.xlu0.c.b16.cont [4/8] 0, 128
        %927 = vxpose.xlu0.c.b16.cont [5/8] 0, 128
        %928 = vxpose.xlu0.c.b16.cont [6/8] 0, 128
        %929 = vxpose.xlu0.c.b16.cont [7/8] 0, 128
        %930 = vxpose.xlu0.c.b16.end [8/8] 0, 128
        %v931 = vpop.trf.xlu0
        %v932 = vpop.trf.xlu0
        %v933 = vpop.trf.xlu0
        %v934 = vpop.trf.xlu0
        %v935 = vpop.trf.xlu0
        %v936 = vpop.trf.xlu0
        %v937 = vpop.trf.xlu0
        %v938 = vpop.trf.xlu0
        %939 = vxpose.xlu0.c.b16.start [1/8] %v789, 128
        %940 = vxpose.xlu0.c.b16.cont [2/8] 0, 128
        %941 = vxpose.xlu0.c.b16.cont [3/8] 0, 128
        %942 = vxpose.xlu0.c.b16.cont [4/8] 0, 128
        %943 = vxpose.xlu0.c.b16.cont [5/8] 0, 128
        %944 = vxpose.xlu0.c.b16.cont [6/8] 0, 128
        %945 = vxpose.xlu0.c.b16.cont [7/8] 0, 128
        %946 = vxpose.xlu0.c.b16.end [8/8] 0, 128
        %v947 = vpop.trf.xlu0
        %v948 = vpop.trf.xlu0
        %v949 = vpop.trf.xlu0
        %v950 = vpop.trf.xlu0
        %v951 = vpop.trf.xlu0
        %v952 = vpop.trf.xlu0
        %v953 = vpop.trf.xlu0
        %v954 = vpop.trf.xlu0
        %955 = vxpose.xlu0.c.b16.start [1/8] %v790, 128
        %956 = vxpose.xlu0.c.b16.cont [2/8] 0, 128
        %957 = vxpose.xlu0.c.b16.cont [3/8] 0, 128
        %958 = vxpose.xlu0.c.b16.cont [4/8] 0, 128
        %959 = vxpose.xlu0.c.b16.cont [5/8] 0, 128
        %960 = vxpose.xlu0.c.b16.cont [6/8] 0, 128
        %961 = vxpose.xlu0.c.b16.cont [7/8] 0, 128
        %962 = vxpose.xlu0.c.b16.end [8/8] 0, 128
        %v963 = vpop.trf.xlu0
        %v964 = vpop.trf.xlu0
        %v965 = vpop.trf.xlu0
        %v966 = vpop.trf.xlu0
        %v967 = vpop.trf.xlu0
        %v968 = vpop.trf.xlu0
        %v969 = vpop.trf.xlu0
        %v970 = vpop.trf.xlu0
        %971 = vxpose.xlu0.c.b16.start [1/8] %v791, 128
        %972 = vxpose.xlu0.c.b16.cont [2/8] 0, 128
        %973 = vxpose.xlu0.c.b16.cont [3/8] 0, 128
        %974 = vxpose.xlu0.c.b16.cont [4/8] 0, 128
        %975 = vxpose.xlu0.c.b16.cont [5/8] 0, 128
        %976 = vxpose.xlu0.c.b16.cont [6/8] 0, 128
        %977 = vxpose.xlu0.c.b16.cont [7/8] 0, 128
        %978 = vxpose.xlu0.c.b16.end [8/8] 0, 128
        %v979 = vpop.trf.xlu0
        %v980 = vpop.trf.xlu0
        %v981 = vpop.trf.xlu0
        %v982 = vpop.trf.xlu0
        %v983 = vpop.trf.xlu0
        %v984 = vpop.trf.xlu0
        %v985 = vpop.trf.xlu0
        %v986 = vpop.trf.xlu0
        %987 = vxpose.xlu0.c.b16.start [1/8] %v792, 128
        %988 = vxpose.xlu0.c.b16.cont [2/8] 0, 128
        %989 = vxpose.xlu0.c.b16.cont [3/8] 0, 128
        %990 = vxpose.xlu0.c.b16.cont [4/8] 0, 128
        %991 = vxpose.xlu0.c.b16.cont [5/8] 0, 128
        %992 = vxpose.xlu0.c.b16.cont [6/8] 0, 128
        %993 = vxpose.xlu0.c.b16.cont [7/8] 0, 128
        %994 = vxpose.xlu0.c.b16.end [8/8] 0, 128
        %v995 = vpop.trf.xlu0
        %v996 = vpop.trf.xlu0
        %v997 = vpop.trf.xlu0
        %v998 = vpop.trf.xlu0
        %v999 = vpop.trf.xlu0
        %v1000 = vpop.trf.xlu0
        %v1001 = vpop.trf.xlu0
        %v1002 = vpop.trf.xlu0
        %1003 = vxpose.xlu0.c.b16.start [1/8] %v793, 128
        %1004 = vxpose.xlu0.c.b16.cont [2/8] 0, 128
        %1005 = vxpose.xlu0.c.b16.cont [3/8] 0, 128
        %1006 = vxpose.xlu0.c.b16.cont [4/8] 0, 128
        %1007 = vxpose.xlu0.c.b16.cont [5/8] 0, 128
        %1008 = vxpose.xlu0.c.b16.cont [6/8] 0, 128
        %1009 = vxpose.xlu0.c.b16.cont [7/8] 0, 128
        %1010 = vxpose.xlu0.c.b16.end [8/8] 0, 128
        %v1011 = vpop.trf.xlu0
        %v1012 = vpop.trf.xlu0
        %v1013 = vpop.trf.xlu0
        %v1014 = vpop.trf.xlu0
        %v1015 = vpop.trf.xlu0
        %v1016 = vpop.trf.xlu0
        %v1017 = vpop.trf.xlu0
        %v1018 = vpop.trf.xlu0
        %1019 = vxpose.xlu0.c.b16.start [1/8] %v794, 128
        %1020 = vxpose.xlu0.c.b16.cont [2/8] 0, 128
        %1021 = vxpose.xlu0.c.b16.cont [3/8] 0, 128
        %1022 = vxpose.xlu0.c.b16.cont [4/8] 0, 128
        %1023 = vxpose.xlu0.c.b16.cont [5/8] 0, 128
        %1024 = vxpose.xlu0.c.b16.cont [6/8] 0, 128
        %1025 = vxpose.xlu0.c.b16.cont [7/8] 0, 128
        %1026 = vxpose.xlu0.c.b16.end [8/8] 0, 128
        %v1027 = vpop.trf.xlu0
        %v1028 = vpop.trf.xlu0
        %v1029 = vpop.trf.xlu0
        %v1030 = vpop.trf.xlu0
        %v1031 = vpop.trf.xlu0
        %v1032 = vpop.trf.xlu0
        %v1033 = vpop.trf.xlu0
        %v1034 = vpop.trf.xlu0
        %1035 = vxpose.xlu0.c.b16.start [1/8] %v795, 128
        %1036 = vxpose.xlu0.c.b16.cont [2/8] 0, 128
        %1037 = vxpose.xlu0.c.b16.cont [3/8] 0, 128
        %1038 = vxpose.xlu0.c.b16.cont [4/8] 0, 128
        %1039 = vxpose.xlu0.c.b16.cont [5/8] 0, 128
        %1040 = vxpose.xlu0.c.b16.cont [6/8] 0, 128
        %1041 = vxpose.xlu0.c.b16.cont [7/8] 0, 128
        %1042 = vxpose.xlu0.c.b16.end [8/8] 0, 128
        %v1043 = vpop.trf.xlu0
        %v1044 = vpop.trf.xlu0
        %v1045 = vpop.trf.xlu0
        %v1046 = vpop.trf.xlu0
        %v1047 = vpop.trf.xlu0
        %v1048 = vpop.trf.xlu0
        %v1049 = vpop.trf.xlu0
        %v1050 = vpop.trf.xlu0
        %v1051 = vrot.slane %v995, 4
        %v1052 = vsel %vm871, %v1051, %v931
        %v1054 = vunpack.c.l.s4 1983009808
        %v1055 = vunpack.c.0.s8 %v1054
        %v1056 = vperm.slane %v1052, %v1055
        %v1057 = vrot.slane %v1027, 4
        %v1058 = vsel %vm871, %v1057, %v963
        %v1060 = vunpack.c.l.s4 1983009808
        %v1061 = vunpack.c.0.s8 %v1060
        %v1062 = vperm.slane %v1058, %v1061
        %v1063 = vrot.slane %v1062, 4
        %v1064 = vsel %vm871, %v1063, %v1056
        %v1065 = vrot.slane %v1056, 4
        %v1066 = vsel %vm871, %v1062, %v1065
        %v1068 = vunpack.c.l.s4 1934713408
        %v1069 = vunpack.c.0.s8 %v1068
        %v1070 = vperm.slane %v1064, %v1069
        %v1072 = vunpack.c.l.s4 1934713408
        %v1073 = vunpack.c.0.s8 %v1072
        %v1074 = vperm.slane %v1066, %v1073
        %v1075 = vrot.slane %v1070, 4
        %v1076 = vsel %vm871, 0, %v1075
        %v1077 = vrot.slane %v1074, 4
        %v1078 = vsel %vm871, 0, %v1077
        %v1079 = vrot.slane %v1011, 4
        %v1080 = vsel %vm871, %v1079, %v947
        %v1082 = vunpack.c.l.s4 1983009808
        %v1083 = vunpack.c.0.s8 %v1082
        %v1084 = vperm.slane %v1080, %v1083
        %v1085 = vrot.slane %v1043, 4
        %v1086 = vsel %vm871, %v1085, %v979
        %v1088 = vunpack.c.l.s4 1983009808
        %v1089 = vunpack.c.0.s8 %v1088
        %v1090 = vperm.slane %v1086, %v1089
        %v1091 = vrot.slane %v1090, 4
        %v1092 = vsel %vm871, %v1091, %v1084
        %v1093 = vrot.slane %v1084, 4
        %v1094 = vsel %vm871, %v1090, %v1093
        %v1096 = vunpack.c.l.s4 1934713408
        %v1097 = vunpack.c.0.s8 %v1096
        %v1098 = vperm.slane %v1092, %v1097
        %v1100 = vunpack.c.l.s4 1934713408
        %v1101 = vunpack.c.0.s8 %v1100
        %v1102 = vperm.slane %v1094, %v1101
        %v1103 = vrot.slane %v1098, 4
        %v1104 = vsel %vm871, 0, %v1103
        %v1105 = vrot.slane %v1102, 4
        %v1106 = vsel %vm871, 0, %v1105
        %v1109 = vpack.i.b16 %v1098, %v1070
        %v1111 = vshrl.u32 %v1070, 16
        %v1112 = vshrl.u32 %v1098, 16
        %v1113 = vpack.i.b16 %v1112, %v1111
        %v1117 = vpack.i.b16 %v1104, %v1076
        %v1119 = vshrl.u32 %v1076, 16
        %v1120 = vshrl.u32 %v1104, 16
        %v1121 = vpack.i.b16 %v1120, %v1119
        %v1125 = vpack.i.b16 %v1102, %v1074
        %v1127 = vshrl.u32 %v1074, 16
        %v1128 = vshrl.u32 %v1102, 16
        %v1129 = vpack.i.b16 %v1128, %v1127
        %v1133 = vpack.i.b16 %v1106, %v1078
        %v1135 = vshrl.u32 %v1078, 16
        %v1136 = vshrl.u32 %v1106, 16
        %v1137 = vpack.i.b16 %v1136, %v1135
        %1139 = vxpose.xlu0.c.b16.start [1/8] %v1109, 128
        %1140 = vxpose.xlu0.c.b16.cont [2/8] 0, 128
        %1141 = vxpose.xlu0.c.b16.cont [3/8] 0, 128
        %1142 = vxpose.xlu0.c.b16.cont [4/8] 0, 128
        %1143 = vxpose.xlu0.c.b16.cont [5/8] 0, 128
        %1144 = vxpose.xlu0.c.b16.cont [6/8] 0, 128
        %1145 = vxpose.xlu0.c.b16.cont [7/8] 0, 128
        %1146 = vxpose.xlu0.c.b16.end [8/8] 0, 128
        %v1147 = vpop.trf.xlu0
        %v1148 = vpop.trf.xlu0
        %v1149 = vpop.trf.xlu0
        %v1150 = vpop.trf.xlu0
        %v1151 = vpop.trf.xlu0
        %v1152 = vpop.trf.xlu0
        %v1153 = vpop.trf.xlu0
        %v1154 = vpop.trf.xlu0
        %1155 = vxpose.xlu0.c.b16.start [1/8] %v1113, 128
        %1156 = vxpose.xlu0.c.b16.cont [2/8] 0, 128
        %1157 = vxpose.xlu0.c.b16.cont [3/8] 0, 128
        %1158 = vxpose.xlu0.c.b16.cont [4/8] 0, 128
        %1159 = vxpose.xlu0.c.b16.cont [5/8] 0, 128
        %1160 = vxpose.xlu0.c.b16.cont [6/8] 0, 128
        %1161 = vxpose.xlu0.c.b16.cont [7/8] 0, 128
        %1162 = vxpose.xlu0.c.b16.end [8/8] 0, 128
        %v1163 = vpop.trf.xlu0
        %v1164 = vpop.trf.xlu0
        %v1165 = vpop.trf.xlu0
        %v1166 = vpop.trf.xlu0
        %v1167 = vpop.trf.xlu0
        %v1168 = vpop.trf.xlu0
        %v1169 = vpop.trf.xlu0
        %v1170 = vpop.trf.xlu0
        %1171 = vxpose.xlu0.c.b16.start [1/8] %v1117, 128
        %1172 = vxpose.xlu0.c.b16.cont [2/8] 0, 128
        %1173 = vxpose.xlu0.c.b16.cont [3/8] 0, 128
        %1174 = vxpose.xlu0.c.b16.cont [4/8] 0, 128
        %1175 = vxpose.xlu0.c.b16.cont [5/8] 0, 128
        %1176 = vxpose.xlu0.c.b16.cont [6/8] 0, 128
        %1177 = vxpose.xlu0.c.b16.cont [7/8] 0, 128
        %1178 = vxpose.xlu0.c.b16.end [8/8] 0, 128
        %v1179 = vpop.trf.xlu0
        %v1180 = vpop.trf.xlu0
        %v1181 = vpop.trf.xlu0
        %v1182 = vpop.trf.xlu0
        %v1183 = vpop.trf.xlu0
        %v1184 = vpop.trf.xlu0
        %v1185 = vpop.trf.xlu0
        %v1186 = vpop.trf.xlu0
        %1187 = vxpose.xlu0.c.b16.start [1/8] %v1121, 128
        %1188 = vxpose.xlu0.c.b16.cont [2/8] 0, 128
        %1189 = vxpose.xlu0.c.b16.cont [3/8] 0, 128
        %1190 = vxpose.xlu0.c.b16.cont [4/8] 0, 128
        %1191 = vxpose.xlu0.c.b16.cont [5/8] 0, 128
        %1192 = vxpose.xlu0.c.b16.cont [6/8] 0, 128
        %1193 = vxpose.xlu0.c.b16.cont [7/8] 0, 128
        %1194 = vxpose.xlu0.c.b16.end [8/8] 0, 128
        %v1195 = vpop.trf.xlu0
        %v1196 = vpop.trf.xlu0
        %v1197 = vpop.trf.xlu0
        %v1198 = vpop.trf.xlu0
        %v1199 = vpop.trf.xlu0
        %v1200 = vpop.trf.xlu0
        %v1201 = vpop.trf.xlu0
        %v1202 = vpop.trf.xlu0
        %1203 = vxpose.xlu0.c.b16.start [1/8] %v1125, 128
        %1204 = vxpose.xlu0.c.b16.cont [2/8] 0, 128
        %1205 = vxpose.xlu0.c.b16.cont [3/8] 0, 128
        %1206 = vxpose.xlu0.c.b16.cont [4/8] 0, 128
        %1207 = vxpose.xlu0.c.b16.cont [5/8] 0, 128
        %1208 = vxpose.xlu0.c.b16.cont [6/8] 0, 128
        %1209 = vxpose.xlu0.c.b16.cont [7/8] 0, 128
        %1210 = vxpose.xlu0.c.b16.end [8/8] 0, 128
        %v1211 = vpop.trf.xlu0
        %v1212 = vpop.trf.xlu0
        %v1213 = vpop.trf.xlu0
        %v1214 = vpop.trf.xlu0
        %v1215 = vpop.trf.xlu0
        %v1216 = vpop.trf.xlu0
        %v1217 = vpop.trf.xlu0
        %v1218 = vpop.trf.xlu0
        %1219 = vxpose.xlu0.c.b16.start [1/8] %v1129, 128
        %1220 = vxpose.xlu0.c.b16.cont [2/8] 0, 128
        %1221 = vxpose.xlu0.c.b16.cont [3/8] 0, 128
        %1222 = vxpose.xlu0.c.b16.cont [4/8] 0, 128
        %1223 = vxpose.xlu0.c.b16.cont [5/8] 0, 128
        %1224 = vxpose.xlu0.c.b16.cont [6/8] 0, 128
        %1225 = vxpose.xlu0.c.b16.cont [7/8] 0, 128
        %1226 = vxpose.xlu0.c.b16.end [8/8] 0, 128
        %v1227 = vpop.trf.xlu0
        %v1228 = vpop.trf.xlu0
        %v1229 = vpop.trf.xlu0
        %v1230 = vpop.trf.xlu0
        %v1231 = vpop.trf.xlu0
        %v1232 = vpop.trf.xlu0
        %v1233 = vpop.trf.xlu0
        %v1234 = vpop.trf.xlu0
        %1235 = vxpose.xlu0.c.b16.start [1/8] %v1133, 128
        %1236 = vxpose.xlu0.c.b16.cont [2/8] 0, 128
        %1237 = vxpose.xlu0.c.b16.cont [3/8] 0, 128
        %1238 = vxpose.xlu0.c.b16.cont [4/8] 0, 128
        %1239 = vxpose.xlu0.c.b16.cont [5/8] 0, 128
        %1240 = vxpose.xlu0.c.b16.cont [6/8] 0, 128
        %1241 = vxpose.xlu0.c.b16.cont [7/8] 0, 128
        %1242 = vxpose.xlu0.c.b16.end [8/8] 0, 128
        %v1243 = vpop.trf.xlu0
        %v1244 = vpop.trf.xlu0
        %v1245 = vpop.trf.xlu0
        %v1246 = vpop.trf.xlu0
        %v1247 = vpop.trf.xlu0
        %v1248 = vpop.trf.xlu0
        %v1249 = vpop.trf.xlu0
        %v1250 = vpop.trf.xlu0
        %1251 = vxpose.xlu0.c.b16.start [1/8] %v1137, 128
        %1252 = vxpose.xlu0.c.b16.cont [2/8] 0, 128
        %1253 = vxpose.xlu0.c.b16.cont [3/8] 0, 128
        %1254 = vxpose.xlu0.c.b16.cont [4/8] 0, 128
        %1255 = vxpose.xlu0.c.b16.cont [5/8] 0, 128
        %1256 = vxpose.xlu0.c.b16.cont [6/8] 0, 128
        %1257 = vxpose.xlu0.c.b16.cont [7/8] 0, 128
        %1258 = vxpose.xlu0.c.b16.end [8/8] 0, 128
        %v1259 = vpop.trf.xlu0
        %v1260 = vpop.trf.xlu0
        %v1261 = vpop.trf.xlu0
        %v1262 = vpop.trf.xlu0
        %v1263 = vpop.trf.xlu0
        %v1264 = vpop.trf.xlu0
        %v1265 = vpop.trf.xlu0
        %v1266 = vpop.trf.xlu0
        %v1267 = vrot.slane %v1211, 4
        %v1268 = vsel %vm871, %v1267, %v1147
        %v1270 = vunpack.c.l.s4 1983009808
        %v1271 = vunpack.c.0.s8 %v1270
        %v1272 = vperm.slane %v1268, %v1271
        %v1273 = vrot.slane %v1243, 4
        %v1274 = vsel %vm871, %v1273, %v1179
        %v1276 = vunpack.c.l.s4 1983009808
        %v1277 = vunpack.c.0.s8 %v1276
        %v1278 = vperm.slane %v1274, %v1277
        %v1279 = vrot.slane %v1278, 4
        %v1280 = vsel %vm871, %v1279, %v1272
        %v1282 = vunpack.c.l.s4 1934713408
        %v1283 = vunpack.c.0.s8 %v1282
        %v1284 = vperm.slane %v1280, %v1283
        %v1285 = vrot.slane %v1284, 4
        %v1286 = vsel %vm871, 0, %v1285
        %v1287 = vrot.slane %v1227, 4
        %v1288 = vsel %vm871, %v1287, %v1163
        %v1290 = vunpack.c.l.s4 1983009808
        %v1291 = vunpack.c.0.s8 %v1290
        %v1292 = vperm.slane %v1288, %v1291
        %v1293 = vrot.slane %v1259, 4
        %v1294 = vsel %vm871, %v1293, %v1195
        %v1296 = vunpack.c.l.s4 1983009808
        %v1297 = vunpack.c.0.s8 %v1296
        %v1298 = vperm.slane %v1294, %v1297
        %v1299 = vrot.slane %v1298, 4
        %v1300 = vsel %vm871, %v1299, %v1292
        %v1302 = vunpack.c.l.s4 1934713408
        %v1303 = vunpack.c.0.s8 %v1302
        %v1304 = vperm.slane %v1300, %v1303
        %v1305 = vrot.slane %v1304, 4
        %v1306 = vsel %vm871, 0, %v1305
        %v1309 = vpack.i.b16 %v1304, %v1284
        %v1310 = vshrl.u32 %v1284, 16
        %v1311 = vshrl.u32 %v1304, 16
        %v1312 = vpack.i.b16 %v1311, %v1310
        %v1315 = vpack.i.b16 %v1306, %v1286
        %v1316 = vshrl.u32 %v1286, 16
        %v1317 = vshrl.u32 %v1306, 16
        %v1318 = vpack.i.b16 %v1317, %v1316
        %vm1319 = vcmask 64512
        %v1321 = vsel %vm1319, %v913, 0
        %vm1323 = vcmask 1043456
        %v1325 = vsel %vm1323, %v1309, 0
        %1327 = vmatpush.bf16.msra.mxu0 0
        %1328 = vmatpush.bf16.msra.mxu0 0
        %1329 = vmatpush.bf16.msra.mxu0 0
        %1330 = vmatpush.bf16.msra.mxu0 0
        %1331 = vmatpush.bf16.msra.mxu0 0
        %1332 = vmatpush.bf16.msra.mxu0 0
        %1333 = vmatpush.bf16.msra.mxu0 0
        %1334 = vmatpush.bf16.msra.mxu0 %v1325
        %1335 = vmatmul.bf16.gmra.mxu0 %v1321
        %v1336 = vpop.f32.mrf.mxu0
        %v1337 = vadd.f32 0.0, %v1336
        %v1338 = vpop.f32.mrf.mxu0
        %1339 = vdwg.mxu0
        %v1341 = vsel %vm1319, %v916, 0
        %v1344 = vsel %vm1323, %v1312, 0
        %1346 = vmatpush.bf16.msra.mxu0 0
        %1347 = vmatpush.bf16.msra.mxu0 0
        %1348 = vmatpush.bf16.msra.mxu0 0
        %1349 = vmatpush.bf16.msra.mxu0 0
        %1350 = vmatpush.bf16.msra.mxu0 0
        %1351 = vmatpush.bf16.msra.mxu0 0
        %1352 = vmatpush.bf16.msra.mxu0 0
        %1353 = vmatpush.bf16.msra.mxu0 %v1344
        %1354 = vmatmul.bf16.gmra.mxu0 %v1341
        %v1355 = vpop.f32.mrf.mxu0
        %v1356 = vadd.f32 0.0, %v1355
        %v1357 = vpop.f32.mrf.mxu0
        %1358 = vdwg.mxu0
        %v1360 = vsel %vm1319, %v919, 0
        %v1363 = vsel %vm1323, %v1315, 0
        %1365 = vmatpush.bf16.msra.mxu0 0
        %1366 = vmatpush.bf16.msra.mxu0 0
        %1367 = vmatpush.bf16.msra.mxu0 0
        %1368 = vmatpush.bf16.msra.mxu0 0
        %1369 = vmatpush.bf16.msra.mxu0 0
        %1370 = vmatpush.bf16.msra.mxu0 0
        %1371 = vmatpush.bf16.msra.mxu0 0
        %1372 = vmatpush.bf16.msra.mxu0 %v1363
        %1373 = vmatmul.bf16.gmra.mxu0 %v1360
        %v1374 = vpop.f32.mrf.mxu0
        %v1375 = vadd.f32 0.0, %v1374
        %v1376 = vpop.f32.mrf.mxu0
        %1377 = vdwg.mxu0
        %v1379 = vsel %vm1319, %v922, 0
        %v1382 = vsel %vm1323, %v1318, 0
        %1384 = vmatpush.bf16.msra.mxu0 0
        %1385 = vmatpush.bf16.msra.mxu0 0
        %1386 = vmatpush.bf16.msra.mxu0 0
        %1387 = vmatpush.bf16.msra.mxu0 0
        %1388 = vmatpush.bf16.msra.mxu0 0
        %1389 = vmatpush.bf16.msra.mxu0 0
        %1390 = vmatpush.bf16.msra.mxu0 0
        %1391 = vmatpush.bf16.msra.mxu0 %v1382
        %1392 = vmatmul.bf16.gmra.mxu0 %v1379
        %v1393 = vpop.f32.mrf.mxu0
        %v1394 = vadd.f32 0.0, %v1393
        %v1395 = vpop.f32.mrf.mxu0
        %1396 = vdwg.mxu0
        %v1397 = vlaneseq
        %v1398 = vshrl.u32 %v1397, 7
        %v1399 = vstv %s484
        %v1400 = vadd.s32 %v1399, %v1398
        %v1401 = vlaneseq
        %v1402 = vand.u32 %v1401, 127
        %vm1403 = vcmp.ge.s32.totalorder %v1400, %v1402
        %vm1404 = vcmp.ne.f32.partialorder %v1337, 0.0
        %vm1405 = vcmp.ne.f32.partialorder %v1356, 0.0
        %vm1406 = vcmp.ne.f32.partialorder %v1375, 0.0
        %vm1407 = vcmp.ne.f32.partialorder %v1394, 0.0
        %v1408 = vsel %vm1403, 1, 0
        %vm1409 = vcmp.eq.s32.totalorder %v1408, 1
        %vm1410 = vmand %vm1409, %vm1404
        %vm1411 = vmand %vm1409, %vm1405
        %vm1412 = vmand %vm1409, %vm1406
        %vm1413 = vmand %vm1409, %vm1407
        %v1414 = vsel %vm1410, %v1337, -inf
        %v1415 = vsel %vm1411, %v1356, -inf
        %v1416 = vsel %vm1412, %v1375, -inf
        %v1417 = vsel %vm1413, %v1394, -inf
        %v1418 = vsel %vm1319, %v1414, -inf
        %1419 = vmax.xlane.f32.xlu0 %v1418
        %v1420 = vpop.xlane.xlu0 %1419
        %v1421 = vsel %vm1319, %v1415, -inf
        %1422 = vmax.xlane.f32.xlu0 %v1421
        %v1423 = vpop.xlane.xlu0 %1422
        %v1424 = vsel %vm1319, %v1416, -inf
        %1425 = vmax.xlane.f32.xlu0 %v1424
        %v1426 = vpop.xlane.xlu0 %1425
        %v1427 = vsel %vm1319, %v1417, -inf
        %1428 = vmax.xlane.f32.xlu0 %v1427
        %v1429 = vpop.xlane.xlu0 %1428
        %v1430 = vsub.f32 %v1414, %v1420
        %v1431 = vsub.f32 %v1415, %v1423
        %v1432 = vsub.f32 %v1416, %v1426
        %v1433 = vsub.f32 %v1417, %v1429
        %v1434 = vmul.f32 %v1430, 1.442695
        %v1435 = vpow.pop %v1434
        %v1436 = vmul.f32 %v1431, 1.442695
        %v1437 = vpow.pop %v1436
        %v1438 = vmul.f32 %v1432, 1.442695
        %v1439 = vpow.pop %v1438
        %v1440 = vmul.f32 %v1433, 1.442695
        %v1441 = vpow.pop %v1440
        %v1442 = vsel %vm1319, %v1435, 0.0
        %1443 = vadd.xlane.f32.xlu0 %v1442
        %v1444 = vpop.xlane.xlu0 %1443
        %v1445 = vsel %vm1319, %v1437, 0.0
        %1446 = vadd.xlane.f32.xlu0 %v1445
        %v1447 = vpop.xlane.xlu0 %1446
        %v1448 = vsel %vm1319, %v1439, 0.0
        %1449 = vadd.xlane.f32.xlu0 %v1448
        %v1450 = vpop.xlane.xlu0 %1449
        %v1451 = vsel %vm1319, %v1441, 0.0
        %1452 = vadd.xlane.f32.xlu0 %v1451
        %v1453 = vpop.xlane.xlu0 %1452
        %v1454 = vrcp.pop %v1444
        %v1455 = vrcp.pop %v1447
        %v1456 = vrcp.pop %v1450
        %v1457 = vrcp.pop %v1453
        %v1458 = vmul.f32 %v1435, %v1454
        %v1459 = vmul.f32 %v1437, %v1455
        %v1460 = vmul.f32 %v1439, %v1456
        %v1461 = vmul.f32 %v1441, %v1457
        %v1462 = vpack.c.bf16 %v1458, %v1458
        %v1463 = vpack.c.bf16 %v1459, %v1459
        %v1464 = vpack.c.bf16 %v1460, %v1460
        %v1465 = vpack.c.bf16 %v1461, %v1461
        %v1466 = vrot.slane %v866, 4
        %v1467 = vsel %vm871, %v1466, %v862
        %v1469 = vunpack.c.l.s4 1983009808
        %v1470 = vunpack.c.0.s8 %v1469
        %v1471 = vperm.slane %v1467, %v1470
        %v1472 = vrot.slane %v868, 4
        %v1473 = vsel %vm871, %v1472, %v864
        %v1475 = vunpack.c.l.s4 1983009808
        %v1476 = vunpack.c.0.s8 %v1475
        %v1477 = vperm.slane %v1473, %v1476
        %v1478 = vrot.slane %v1477, 4
        %v1479 = vsel %vm871, %v1478, %v1471
        %v1481 = vunpack.c.l.s4 1934713408
        %v1482 = vunpack.c.0.s8 %v1481
        %v1483 = vperm.slane %v1479, %v1482
        %v1484 = vrot.slane %v1483, 4
        %v1485 = vsel %vm871, 0, %v1484
        %v1486 = vrot.slane %v867, 4
        %v1487 = vsel %vm871, %v1486, %v863
        %v1489 = vunpack.c.l.s4 1983009808
        %v1490 = vunpack.c.0.s8 %v1489
        %v1491 = vperm.slane %v1487, %v1490
        %v1492 = vrot.slane %v869, 4
        %v1493 = vsel %vm871, %v1492, %v865
        %v1495 = vunpack.c.l.s4 1983009808
        %v1496 = vunpack.c.0.s8 %v1495
        %v1497 = vperm.slane %v1493, %v1496
        %v1498 = vrot.slane %v1497, 4
        %v1499 = vsel %vm871, %v1498, %v1491
        %v1501 = vunpack.c.l.s4 1934713408
        %v1502 = vunpack.c.0.s8 %v1501
        %v1503 = vperm.slane %v1499, %v1502
        %v1504 = vrot.slane %v1503, 4
        %v1505 = vsel %vm871, 0, %v1504
        %v1508 = vpack.i.b16 %v1503, %v1483
        %v1509 = vshrl.u32 %v1483, 16
        %v1510 = vshrl.u32 %v1503, 16
        %v1511 = vpack.i.b16 %v1510, %v1509
        %v1514 = vpack.i.b16 %v1505, %v1485
        %v1515 = vshrl.u32 %v1485, 16
        %v1516 = vshrl.u32 %v1505, 16
        %v1517 = vpack.i.b16 %v1516, %v1515
        %v1519 = vsel %vm1319, %v1462, 0
        %v1522 = vsel %vm1323, %v1508, 0
        %1524 = vmatpush.bf16.msra.mxu0 0
        %1525 = vmatpush.bf16.msra.mxu0 0
        %1526 = vmatpush.bf16.msra.mxu0 0
        %1527 = vmatpush.bf16.msra.mxu0 0
        %1528 = vmatpush.bf16.msra.mxu0 0
        %1529 = vmatpush.bf16.msra.mxu0 0
        %1530 = vmatpush.bf16.msra.mxu0 0
        %1531 = vmatpush.bf16.msra.mxu0 %v1522
        %1532 = vmatmul.bf16.gmra.mxu0 %v1519
        %v1533 = vpop.f32.mrf.mxu0
        %v1534 = vadd.f32 0.0, %v1533
        %v1535 = vpop.f32.mrf.mxu0
        %1536 = vdwg.mxu0
        %v1538 = vsel %vm1319, %v1463, 0
        %v1541 = vsel %vm1323, %v1511, 0
        %1543 = vmatpush.bf16.msra.mxu0 0
        %1544 = vmatpush.bf16.msra.mxu0 0
        %1545 = vmatpush.bf16.msra.mxu0 0
        %1546 = vmatpush.bf16.msra.mxu0 0
        %1547 = vmatpush.bf16.msra.mxu0 0
        %1548 = vmatpush.bf16.msra.mxu0 0
        %1549 = vmatpush.bf16.msra.mxu0 0
        %1550 = vmatpush.bf16.msra.mxu0 %v1541
        %1551 = vmatmul.bf16.gmra.mxu0 %v1538
        %v1552 = vpop.f32.mrf.mxu0
        %v1553 = vadd.f32 0.0, %v1552
        %v1554 = vpop.f32.mrf.mxu0
        %1555 = vdwg.mxu0
        %v1557 = vsel %vm1319, %v1464, 0
        %v1560 = vsel %vm1323, %v1514, 0
        %1562 = vmatpush.bf16.msra.mxu0 0
        %1563 = vmatpush.bf16.msra.mxu0 0
        %1564 = vmatpush.bf16.msra.mxu0 0
        %1565 = vmatpush.bf16.msra.mxu0 0
        %1566 = vmatpush.bf16.msra.mxu0 0
        %1567 = vmatpush.bf16.msra.mxu0 0
        %1568 = vmatpush.bf16.msra.mxu0 0
        %1569 = vmatpush.bf16.msra.mxu0 %v1560
        %1570 = vmatmul.bf16.gmra.mxu0 %v1557
        %v1571 = vpop.f32.mrf.mxu0
        %v1572 = vadd.f32 0.0, %v1571
        %v1573 = vpop.f32.mrf.mxu0
        %1574 = vdwg.mxu0
        %v1576 = vsel %vm1319, %v1465, 0
        %v1579 = vsel %vm1323, %v1517, 0
        %1581 = vmatpush.bf16.msra.mxu0 0
        %1582 = vmatpush.bf16.msra.mxu0 0
        %1583 = vmatpush.bf16.msra.mxu0 0
        %1584 = vmatpush.bf16.msra.mxu0 0
        %1585 = vmatpush.bf16.msra.mxu0 0
        %1586 = vmatpush.bf16.msra.mxu0 0
        %1587 = vmatpush.bf16.msra.mxu0 0
        %1588 = vmatpush.bf16.msra.mxu0 %v1579
        %1589 = vmatmul.bf16.gmra.mxu0 %v1576
        %v1590 = vpop.f32.mrf.mxu0
        %v1591 = vadd.f32 0.0, %v1590
        %v1592 = vpop.f32.mrf.mxu0
        %1593 = vdwg.mxu0
        %v1594 = vpack.c.bf16 %v1534, %v1534
        %v1595 = vpack.c.bf16 %v1553, %v1553
        %v1596 = vpack.c.bf16 %v1572, %v1572
        %v1597 = vpack.c.bf16 %v1591, %v1591
        %v1598 = vld [vmem:[%s6] sm:$0xf]
        %v1600 = vsel %vm1319, %v1594, 0
        %v1603 = vsel %vm1323, %v1598, 0
        %1605 = vmatpush.bf16.msra.mxu0 0
        %1606 = vmatpush.bf16.msra.mxu0 0
        %1607 = vmatpush.bf16.msra.mxu0 0
        %1608 = vmatpush.bf16.msra.mxu0 0
        %1609 = vmatpush.bf16.msra.mxu0 0
        %1610 = vmatpush.bf16.msra.mxu0 0
        %1611 = vmatpush.bf16.msra.mxu0 0
        %1612 = vmatpush.bf16.msra.mxu0 %v1603
        %1613 = vmatmul.bf16.gmra.mxu0 %v1600
        %v1614 = vpop.f32.mrf.mxu0
        %v1615 = vadd.f32 0.0, %v1614
        %v1616 = vpop.f32.mrf.mxu0
        %1617 = vdwg.mxu0
        %v1618 = vadd.f32 %v486, %v1615
        %s1619 = scalar_lea.vmem %s6, 4
        %v1620 = vld [vmem:[%s1619] sm:$0xf]
        %v1622 = vsel %vm1319, %v1595, 0
        %v1625 = vsel %vm1323, %v1620, 0
        %1627 = vmatpush.bf16.msra.mxu0 0
        %1628 = vmatpush.bf16.msra.mxu0 0
        %1629 = vmatpush.bf16.msra.mxu0 0
        %1630 = vmatpush.bf16.msra.mxu0 0
        %1631 = vmatpush.bf16.msra.mxu0 0
        %1632 = vmatpush.bf16.msra.mxu0 0
        %1633 = vmatpush.bf16.msra.mxu0 0
        %1634 = vmatpush.bf16.msra.mxu0 %v1625
        %1635 = vmatmul.bf16.gmra.mxu0 %v1622
        %v1636 = vpop.f32.mrf.mxu0
        %v1637 = vadd.f32 0.0, %v1636
        %v1638 = vpop.f32.mrf.mxu0
        %1639 = vdwg.mxu0
        %v1640 = vadd.f32 %v1618, %v1637
        %s1641 = scalar_lea.vmem %s6, 8
        %v1642 = vld [vmem:[%s1641] sm:$0xf]
        %v1644 = vsel %vm1319, %v1596, 0
        %v1647 = vsel %vm1323, %v1642, 0
        %1649 = vmatpush.bf16.msra.mxu0 0
        %1650 = vmatpush.bf16.msra.mxu0 0
        %1651 = vmatpush.bf16.msra.mxu0 0
        %1652 = vmatpush.bf16.msra.mxu0 0
        %1653 = vmatpush.bf16.msra.mxu0 0
        %1654 = vmatpush.bf16.msra.mxu0 0
        %1655 = vmatpush.bf16.msra.mxu0 0
        %1656 = vmatpush.bf16.msra.mxu0 %v1647
        %1657 = vmatmul.bf16.gmra.mxu0 %v1644
        %v1658 = vpop.f32.mrf.mxu0
        %v1659 = vadd.f32 0.0, %v1658
        %v1660 = vpop.f32.mrf.mxu0
        %1661 = vdwg.mxu0
        %v1662 = vadd.f32 %v1640, %v1659
        %s1663 = scalar_lea.vmem %s6, 12
        %v1664 = vld [vmem:[%s1663] sm:$0xf]
        %v1666 = vsel %vm1319, %v1597, 0
        %v1669 = vsel %vm1323, %v1664, 0
        %1671 = vmatpush.bf16.msra.mxu0 0
        %1672 = vmatpush.bf16.msra.mxu0 0
        %1673 = vmatpush.bf16.msra.mxu0 0
        %1674 = vmatpush.bf16.msra.mxu0 0
        %1675 = vmatpush.bf16.msra.mxu0 0
        %1676 = vmatpush.bf16.msra.mxu0 0
        %1677 = vmatpush.bf16.msra.mxu0 0
        %1678 = vmatpush.bf16.msra.mxu0 %v1669
        %1679 = vmatmul.bf16.gmra.mxu0 %v1666
        %v1680 = vpop.f32.mrf.mxu0
        %v1681 = vadd.f32 0.0, %v1680
        %v1682 = vpop.f32.mrf.mxu0
        %1683 = vdwg.mxu0
        %v1684 = vadd.f32 %v1662, %v1681
        %v1685 = vld [vmem:[%s7] sm:$0x1]
        %v1686 = vld [vmem:[%s8] sm:$0x1]
        %v1687 = vsel %vm489, %v1684, 0.0
        %1688 = vadd.xlane.f32.xlu0 %v1687
        %v1689 = vpop.xlane.xlu0 %1688
        %v1690 = vmul.f32 %v1689, %v499
        %v1691 = vsub.f32 %v1684, %v1690
        %v1692 = vmul.f32 %v1691, %v1691
        %v1693 = vsel %vm489, %v1692, 0.0
        %1694 = vadd.xlane.f32.xlu0 %v1693
        %v1695 = vpop.xlane.xlu0 %1694
        %v1696 = vmul.f32 %v1695, %v499
        %v1697 = vadd.f32 %v1696, 1e-05
        %v1698 = vrsqrt.pop %v1697
        %v1699 = vmul.f32 %v1698, %v1697
        %v1700 = vmul.f32 %v1699, %v1698
        %v1701 = vmul.f32 0.5, %v1700
        %v1702 = vsub.f32 1.5, %v1701
        %v1703 = vmul.f32 %v1698, %v1702
        %vm1704 = vweird.f32 %v1697
        %vm1705 = vweird.f32 %v1698
        %vm1706 = vmor %vm1704, %vm1705
        %v1707 = vsel %vm1706, %v1698, %v1703
        %v1708 = vmul.f32 %v1691, %v1707
        %v1710 = vperm.slane %v1685, 0
        %v1712 = vmul.f32 %v1708, %v1710
        %v1714 = vperm.slane %v1686, 0
        %v1716 = vadd.f32 %v1712, %v1714
        %v1717 = vpack.c.bf16 %v1716, %v1716
        %v1718 = vld [vmem:[#allocation5] sm:$0xf]
        %v1719 = vld [vmem:[#allocation5 + $0x4] sm:$0xf]
        %v1720 = vld [vmem:[#allocation5 + $0x8] sm:$0xf]
        %v1721 = vld [vmem:[#allocation5 + $0xc] sm:$0xf]
        %v1722 = vld [vmem:[%s10] sm:$0x1]
        %v1724 = vperm.slane %v1722, 0
        %v1730 = vunpack.c.l.b16 %v1718
        %v1731 = vunpack.c.l.b16 %v1719
        %v1732 = vunpack.c.l.b16 %v1720
        %v1733 = vunpack.c.l.b16 %v1721
        %v1734 = vpack.c.b16 %v1731, %v1730
        %v1735 = vpack.c.b16 %v1733, %v1732
        %v1739 = vsel %vm489, %v1717, 0
        %1741 = vmatpush.bf16.msra.mxu0 0
        %1742 = vmatpush.bf16.msra.mxu0 0
        %1743 = vmatpush.bf16.msra.mxu0 0
        %1744 = vmatpush.bf16.msra.mxu0 0
        %1745 = vmatpush.bf16.msra.mxu0 0
        %1746 = vmatpush.bf16.msra.mxu0 0
        %1747 = vmatpush.bf16.msra.mxu0 %v1735
        %1748 = vmatpush.bf16.msra.mxu0 %v1734
        %1749 = vmatmul.bf16.gmra.mxu0 %v1739
        %v1750 = vpop.f32.mrf.mxu0
        %v1751 = vadd.f32 %v1724, %v1750
        %v1752 = vpop.f32.mrf.mxu0
        %1753 = vdwg.mxu0
        %v1754 = vmax.f32 %v1751, 0.0
        %v1755 = vpack.c.bf16 %v1754, %v1754
        %v1756 = vld [vmem:[%s11] sm:$0xf]
        %v1757 = vld [vmem:[%s11 + $0x4] sm:$0xf]
        %v1758 = vld [vmem:[%s11 + $0x8] sm:$0xf]
        %v1759 = vld [vmem:[%s11 + $0xc] sm:$0xf]
        %v1760 = vld [vmem:[%s11 + $0x10] sm:$0xf]
        %v1761 = vld [vmem:[%s11 + $0x14] sm:$0xf]
        %v1762 = vld [vmem:[%s11 + $0x18] sm:$0xf]
        %v1763 = vld [vmem:[%s11 + $0x1c] sm:$0xf]
        %v1764 = vld [vmem:[%s11 + $0x20] sm:$0xf]
        %v1765 = vld [vmem:[%s11 + $0x24] sm:$0xf]
        %v1766 = vld [vmem:[%s11 + $0x28] sm:$0xf]
        %v1767 = vld [vmem:[%s11 + $0x2c] sm:$0xf]
        %v1768 = vld [vmem:[%s11 + $0x30] sm:$0xf]
        %v1769 = vld [vmem:[%s11 + $0x34] sm:$0xf]
        %v1770 = vld [vmem:[%s11 + $0x38] sm:$0xf]
        %v1771 = vld [vmem:[%s11 + $0x3c] sm:$0xf]
        %v1788 = vunpack.c.l.b16 %v1756
        %v1789 = vunpack.c.l.b16 %v1757
        %v1790 = vunpack.c.l.b16 %v1758
        %v1791 = vunpack.c.l.b16 %v1759
        %v1792 = vunpack.c.l.b16 %v1760
        %v1793 = vunpack.c.l.b16 %v1761
        %v1794 = vunpack.c.l.b16 %v1762
        %v1795 = vunpack.c.l.b16 %v1763
        %v1796 = vunpack.c.l.b16 %v1764
        %v1797 = vunpack.c.l.b16 %v1765
        %v1798 = vunpack.c.l.b16 %v1766
        %v1799 = vunpack.c.l.b16 %v1767
        %v1800 = vunpack.c.l.b16 %v1768
        %v1801 = vunpack.c.l.b16 %v1769
        %v1802 = vunpack.c.l.b16 %v1770
        %v1803 = vunpack.c.l.b16 %v1771
        %v1804 = vpack.c.b16 %v1789, %v1788
        %v1805 = vpack.c.b16 %v1791, %v1790
        %v1806 = vpack.c.b16 %v1793, %v1792
        %v1807 = vpack.c.b16 %v1795, %v1794
        %v1808 = vpack.c.b16 %v1797, %v1796
        %v1809 = vpack.c.b16 %v1799, %v1798
        %v1810 = vpack.c.b16 %v1801, %v1800
        %v1811 = vpack.c.b16 %v1803, %v1802
        %1820 = vmatpush.bf16.msra.mxu0 %v1811
        %1821 = vmatpush.bf16.msra.mxu0 %v1810
        %1822 = vmatpush.bf16.msra.mxu0 %v1809
        %1823 = vmatpush.bf16.msra.mxu0 %v1808
        %1824 = vmatpush.bf16.msra.mxu0 %v1807
        %1825 = vmatpush.bf16.msra.mxu0 %v1806
        %1826 = vmatpush.bf16.msra.mxu0 %v1805
        %1827 = vmatpush.bf16.msra.mxu0 %v1804
        %1828 = vmatmul.bf16.gmra.mxu0 %v1755
        %v1829 = vpop.f32.mrf.mxu0
        %v1830 = vadd.f32 0.0, %v1829
        %v1831 = vpop.f32.mrf.mxu0
        %1832 = vdwg.mxu0
        %v1833 = vadd.f32 %v1684, %v1830
        %v1834 = vld [vmem:[%s12] sm:$0x1]
        %v1836 = vperm.slane %v1834, 0
        %v1838 = vadd.f32 %v1833, %v1836
        %1839 = vst.msk [vmem:[%s477] sm:$0xff] %vm489, %v1838
        %s1840 = sand.u32 %s329, 1
        %s1841 = scalar_lea.sflag [#allocation4], %s1840
        %s1842 = sand.u32 %s329, 1
        %s1843 = smul.addr %s1842, 8
        %s1844 = scalar_lea.vmem [#allocation7], %s1843
        // Predicated region
        $region81: #{tpu_custom_call.1} parent=71 // pred_check
          %p1845 = pneg %p339
        $region82: #{tpu_custom_call.1} parent=71 // pred_check_branch
          %1847 = sbr.rel (%p1845) target = $region84
        $region83: #{tpu_custom_call.1} parent=71 // pred_region
          %1849 = vsyncadd %s1841, 0
          %s1850 = sadd.s32 %s34, %s33
          %s1851 = smul.addr %s1850, 8
          %s1852 = scalar_lea.hbm %s13, %s1851
          %s1854 = sshll.u32 %s1844, 4
          %s1855 = int_to_ptr.vmem [resolvable:$true] %s1854
          %s1856 = sshll.u32 %s1852, 4
          %s1857 = int_to_ptr.hbm [resolvable:$true] %s1856
          %1859 = dma.vmem_to_hbm [thread:$0]  %s1855, 128, %s1857, %s1841
        $region84: #{tpu_custom_call.1} parent=71 // pred_fallthru
          _
      $region72: #{tpu_custom_call.1} parent=5 // pred_fallthru
        _
      %p1860 = scmp.le.s32.totalorder 2, %s24
      // Predicated region
      $region85: #{tpu_custom_call.1} parent=5 // pred_check
        %p1861 = pneg %p1860
      $region86: #{tpu_custom_call.1} parent=5 // pred_check_branch
        %1863 = sbr.rel (%p1861) target = $region88
      $region87: #{tpu_custom_call.1} parent=5 // pred_region
        %s1864 = ssub.s32 %s24, 2
        // Predicated region
        $region89: #{tpu_custom_call.1} parent=87 // pred_check
          %p1865 = pneg %p345
        $region90: #{tpu_custom_call.1} parent=87 // pred_check_branch
          %1867 = sbr.rel (%p1865) target = $region92
        $region91: #{tpu_custom_call.1} parent=87 // pred_region
          %s1868 = sand.u32 %s330, 1
          %s1869 = scalar_lea.sflag [#allocation4], %s1868
          %s1870 = sand.u32 %s330, 1
          %s1871 = smul.addr %s1870, 8
          %s1872 = scalar_lea.vmem [#allocation7], %s1871
          %1874 = dma.done %s1869, 128
        $region92: #{tpu_custom_call.1} parent=87 // pred_fallthru
          _
      $region88: #{tpu_custom_call.1} parent=5 // pred_fallthru
        _
    $region6: #{tpu_custom_call.1} parent=1 // loop_footer
      %s28 = sadd.s32 1, %s24
    $region7: #{tpu_custom_call.1} parent=1 // loop_footer_branch
      %23 = sbr.rel target = $region3
    $region8: #{tpu_custom_call.1} parent=1 // loop_exit
      _
    %1875 = vsyncpa [#allocation3], 1
    %s1876 = scalar_lea.sflag [#allocation3], 1
    %1877 = vsyncpa %s1876, 1
    %1878 = vsyncpa [#allocation6], 1
    %1879 = vsyncpa [#allocation4], 1
    %s1880 = scalar_lea.sflag [#allocation4], 1
    %1881 = vsyncpa %s1880, 1

// kernel: tpu_custom_call.1
$region0: #{tpu_custom_call.1}
  #allocation0 [shape = 'u32[]', space=smem, size = 0x4, offset = 0x4, fixed_abs, tag = 'smem constant byte address 0x4 - core index']
  #allocation1 [shape = 'u32[72,128]{1,0:T(1,128)}', space=vmem, size = 0x9000, scoped, tag = 'internal scratch']
  %s0 = inlined_call_operand.vmem [shape: f32[2,8,32], index: 0, kind: input, shape index: {}]
  %s1 = inlined_call_operand.hbm [shape: f32[1,32], index: 1, kind: input, shape index: {}]
  %s2 = inlined_call_operand.vmem [shape: f32[1,32], index: 2, kind: input, shape index: {}]
  %s3 = inlined_call_operand.vmem [shape: bf16[32,32], index: 3, kind: input, shape index: {}]
  %s4 = inlined_call_operand.vmem [shape: bf16[32,32], index: 4, kind: input, shape index: {}]
  %s5 = inlined_call_operand.vmem [shape: bf16[32,32], index: 5, kind: input, shape index: {}]
  %s6 = inlined_call_operand.vmem [shape: bf16[4,8,32], index: 6, kind: input, shape index: {}]
  %s7 = inlined_call_operand.vmem [shape: f32[1,32], index: 7, kind: input, shape index: {}]
  %s8 = inlined_call_operand.vmem [shape: f32[1,32], index: 8, kind: input, shape index: {}]
  %s9 = inlined_call_operand.hbm [shape: bf16[32,128], index: 9, kind: input, shape index: {}]
  %s10 = inlined_call_operand.vmem [shape: f32[1,128], index: 10, kind: input, shape index: {}]
  %s11 = inlined_call_operand.vmem [shape: bf16[128,32], index: 11, kind: input, shape index: {}]
  %s12 = inlined_call_operand.vmem [shape: f32[1,32], index: 12, kind: input, shape index: {}]
  %s13 = inlined_call_operand.hbm [shape: f32[2,8,32], index: 13, kind: output, shape index: {}]
  %s14 = sld [smem:[#allocation0]]
  $region93: #{tpu_custom_call.1} parent=0
    _
  %s16 = ssub.s32 1, %s14
  %s17 = scalar_select 0, %s16, %s14
  $region1: #{tpu_custom_call.1} parent=0
    #allocation2 [shape = 'u8[512]{0}', space=vmem, size = 0x400, scoped, tag = 'input window, operand 1, single buffered']
    #allocation3 [shape = 's32[2]{0}', space=sflag, size = 0x8, scoped, tag = 'scoped memory for tpu_custom_call.1']
    #allocation4 [shape = 's32[2]{0}', space=sflag, size = 0x8, scoped, tag = 'scoped memory for tpu_custom_call.1']
    #allocation5 [shape = 'u8[8192]{0}', space=vmem, size = 0x2000, scoped, tag = 'input window, operand 9, single buffered']
    #allocation6 [shape = 's32[1]{0}', space=sflag, size = 0x4, scoped, tag = 'scoped memory for tpu_custom_call.1']
    #allocation7 [shape = 'u8[8192]{0}', space=vmem, size = 0x2000, scoped, tag = 'output window, operand 0']
    %18 = vsyncpa [#allocation3], 0
    %19 = vsyncpa [#allocation6], 0
    %20 = vsyncpa [#allocation4], 0
    %s21 = scalar_lea.sflag [#allocation4], 1
    %22 = vsyncpa %s21, 0
    loop: start=0, step=1, limit=4
    $region2: #{tpu_custom_call.1} parent=1 // loop_pre_header
      _
    $region3: #{tpu_custom_call.1} parent=1 // loop_header
      %s24 = sphi 0, %s28
      %p25 = scmp.ge.s32.totalorder %s24, 4
      %s31 = sphi 0, %s43
      %s32 = sphi 0, %s39
      %s33 = sphi 0, %s31
      %s34 = sphi 0, %s32
      %s35 = sphi 0, %s33
      %s36 = sphi 0, %s34
      %s46 = sphi 0, %s48
      %s49 = sphi 0, %s46
      %s50 = sphi 0, %s49
      %s66 = sphi 0, %s50
      %s70 = sphi 0, %s70
      %s72 = sphi 0, %s70
      %s73 = sphi 0, %s72
      %s87 = sphi 0, %s73
      %s91 = sphi 0, %s91
      %s93 = sphi 0, %s91
      %s94 = sphi 0, %s93
      %s108 = sphi 0, %s94
      %s112 = sphi 0, %s112
      %s114 = sphi 0, %s112
      %s115 = sphi 0, %s114
      %s129 = sphi 0, %s115
      %s133 = sphi 0, %s133
      %s135 = sphi 0, %s133
      %s136 = sphi 0, %s135
      %s150 = sphi 0, %s136
      %s154 = sphi 0, %s154
      %s156 = sphi 0, %s154
      %s157 = sphi 0, %s156
      %s171 = sphi 0, %s157
      %s175 = sphi 0, %s175
      %s177 = sphi 0, %s175
      %s178 = sphi 0, %s177
      %s192 = sphi 0, %s178
      %s196 = sphi 0, %s196
      %s198 = sphi 0, %s196
      %s199 = sphi 0, %s198
      %s213 = sphi 0, %s199
      %s217 = sphi 0, %s217
      %s219 = sphi 0, %s217
      %s220 = sphi 0, %s219
      %s234 = sphi 0, %s220
      %s238 = sphi 0, %s238
      %s240 = sphi 0, %s238
      %s241 = sphi 0, %s240
      %s255 = sphi 0, %s241
      %s259 = sphi 0, %s259
      %s261 = sphi 0, %s259
      %s262 = sphi 0, %s261
      %s276 = sphi 0, %s262
      %s280 = sphi 0, %s280
      %s282 = sphi 0, %s280
      %s283 = sphi 0, %s282
      %s297 = sphi 0, %s283
      %s301 = sphi 0, %s301
      %s303 = sphi 0, %s301
      %s304 = sphi 0, %s303
      %s318 = sphi 0, %s304
      %s326 = sphi 0, %s328
      %s329 = sphi 0, %s326
      %s330 = sphi 0, %s329
      %s346 = sphi 0, %s330
    $region4: #{tpu_custom_call.1} parent=1 // loop_header_branch
      %27 = sbr.rel (%p25) target = $region8
    $region5: #{tpu_custom_call.1} parent=1 // loop_body
      %s29 = ssub.s32 %s24, 1
      %s30 = ssub.s32 %s24, 2
      %s37 = sadd.s32 1, %s32
      %p38 = scmp.ge.s32.totalorder %s37, 1
      %s39 = scalar_select %p38, 0, %s37
      %s40 = sadd.s32 1, %s31
      %s41 = scalar_select %p38, %s40, %s31
      %p42 = scmp.ge.s32.totalorder %s41, 2
      %s43 = scalar_select %p42, 0, %s41
      %s44 = ssub.s32 %s31, %s43
      %p45 = scmp.eq.s32.totalorder %s44, 0
      %s47 = sadd.s32 %s46, 1
      %s48 = scalar_select %p45, %s46, %s47
      %p51 = pneg %p45
      %p52 = scmp.eq.s32.totalorder %s24, 1
      %p53 = por %p51, %p52
      %p54 = scmp.ne.s32.totalorder %s46, %s49
      %p55 = scmp.eq.s32.totalorder %s24, 0
      %p56 = por %p54, %p55
      %p57 = scmp.ne.s32.totalorder %s46, %s49
      %p58 = scmp.eq.s32.totalorder %s29, 1
      %p59 = por %p57, %p58
      %p60 = scmp.ne.s32.totalorder %s49, %s50
      %p61 = scmp.eq.s32.totalorder %s29, 0
      %p62 = por %p60, %p61
      %p63 = scmp.ne.s32.totalorder %s49, %s50
      %p64 = scmp.eq.s32.totalorder %s30, 1
      %p65 = por %p63, %p64
      %p67 = scmp.ne.s32.totalorder %s50, %s66
      %p68 = scmp.eq.s32.totalorder %s30, 0
      %p69 = por %p67, %p68
      %s71 = sadd.s32 %s70, 1
      %p74 = scmp.eq.s32.totalorder %s24, 1
      %p75 = scmp.ne.s32.totalorder %s70, %s72
      %p76 = scmp.eq.s32.totalorder %s24, 0
      %p77 = por %p75, %p76
      %p78 = scmp.ne.s32.totalorder %s70, %s72
      %p79 = scmp.eq.s32.totalorder %s29, 1
      %p80 = por %p78, %p79
      %p81 = scmp.ne.s32.totalorder %s72, %s73
      %p82 = scmp.eq.s32.totalorder %s29, 0
      %p83 = por %p81, %p82
      %p84 = scmp.ne.s32.totalorder %s72, %s73
      %p85 = scmp.eq.s32.totalorder %s30, 1
      %p86 = por %p84, %p85
      %p88 = scmp.ne.s32.totalorder %s73, %s87
      %p89 = scmp.eq.s32.totalorder %s30, 0
      %p90 = por %p88, %p89
      %s92 = sadd.s32 %s91, 1
      %p95 = scmp.eq.s32.totalorder %s24, 1
      %p96 = scmp.ne.s32.totalorder %s91, %s93
      %p97 = scmp.eq.s32.totalorder %s24, 0
      %p98 = por %p96, %p97
      %p99 = scmp.ne.s32.totalorder %s91, %s93
      %p100 = scmp.eq.s32.totalorder %s29, 1
      %p101 = por %p99, %p100
      %p102 = scmp.ne.s32.totalorder %s93, %s94
      %p103 = scmp.eq.s32.totalorder %s29, 0
      %p104 = por %p102, %p103
      %p105 = scmp.ne.s32.totalorder %s93, %s94
      %p106 = scmp.eq.s32.totalorder %s30, 1
      %p107 = por %p105, %p106
      %p109 = scmp.ne.s32.totalorder %s94, %s108
      %p110 = scmp.eq.s32.totalorder %s30, 0
      %p111 = por %p109, %p110
      %s113 = sadd.s32 %s112, 1
      %p116 = scmp.eq.s32.totalorder %s24, 1
      %p117 = scmp.ne.s32.totalorder %s112, %s114
      %p118 = scmp.eq.s32.totalorder %s24, 0
      %p119 = por %p117, %p118
      %p120 = scmp.ne.s32.totalorder %s112, %s114
      %p121 = scmp.eq.s32.totalorder %s29, 1
      %p122 = por %p120, %p121
      %p123 = scmp.ne.s32.totalorder %s114, %s115
      %p124 = scmp.eq.s32.totalorder %s29, 0
      %p125 = por %p123, %p124
      %p126 = scmp.ne.s32.totalorder %s114, %s115
      %p127 = scmp.eq.s32.totalorder %s30, 1
      %p128 = por %p126, %p127
      %p130 = scmp.ne.s32.totalorder %s115, %s129
      %p131 = scmp.eq.s32.totalorder %s30, 0
      %p132 = por %p130, %p131
      %s134 = sadd.s32 %s133, 1
      %p137 = scmp.eq.s32.totalorder %s24, 1
      %p138 = scmp.ne.s32.totalorder %s133, %s135
      %p139 = scmp.eq.s32.totalorder %s24, 0
      %p140 = por %p138, %p139
      %p141 = scmp.ne.s32.totalorder %s133, %s135
      %p142 = scmp.eq.s32.totalorder %s29, 1
      %p143 = por %p141, %p142
      %p144 = scmp.ne.s32.totalorder %s135, %s136
      %p145 = scmp.eq.s32.totalorder %s29, 0
      %p146 = por %p144, %p145
      %p147 = scmp.ne.s32.totalorder %s135, %s136
      %p148 = scmp.eq.s32.totalorder %s30, 1
      %p149 = por %p147, %p148
      %p151 = scmp.ne.s32.totalorder %s136, %s150
      %p152 = scmp.eq.s32.totalorder %s30, 0
      %p153 = por %p151, %p152
      %s155 = sadd.s32 %s154, 1
      %p158 = scmp.eq.s32.totalorder %s24, 1
      %p159 = scmp.ne.s32.totalorder %s154, %s156
      %p160 = scmp.eq.s32.totalorder %s24, 0
      %p161 = por %p159, %p160
      %p162 = scmp.ne.s32.totalorder %s154, %s156
      %p163 = scmp.eq.s32.totalorder %s29, 1
      %p164 = por %p162, %p163
      %p165 = scmp.ne.s32.totalorder %s156, %s157
      %p166 = scmp.eq.s32.totalorder %s29, 0
      %p167 = por %p165, %p166
      %p168 = scmp.ne.s32.totalorder %s156, %s157
      %p169 = scmp.eq.s32.totalorder %s30, 1
      %p170 = por %p168, %p169
      %p172 = scmp.ne.s32.totalorder %s157, %s171
      %p173 = scmp.eq.s32.totalorder %s30, 0
      %p174 = por %p172, %p173
      %s176 = sadd.s32 %s175, 1
      %p179 = scmp.eq.s32.totalorder %s24, 1
      %p180 = scmp.ne.s32.totalorder %s175, %s177
      %p181 = scmp.eq.s32.totalorder %s24, 0
      %p182 = por %p180, %p181
      %p183 = scmp.ne.s32.totalorder %s175, %s177
      %p184 = scmp.eq.s32.totalorder %s29, 1
      %p185 = por %p183, %p184
      %p186 = scmp.ne.s32.totalorder %s177, %s178
      %p187 = scmp.eq.s32.totalorder %s29, 0
      %p188 = por %p186, %p187
      %p189 = scmp.ne.s32.totalorder %s177, %s178
      %p190 = scmp.eq.s32.totalorder %s30, 1
      %p191 = por %p189, %p190
      %p193 = scmp.ne.s32.totalorder %s178, %s192
      %p194 = scmp.eq.s32.totalorder %s30, 0
      %p195 = por %p193, %p194
      %s197 = sadd.s32 %s196, 1
      %p200 = scmp.eq.s32.totalorder %s24, 1
      %p201 = scmp.ne.s32.totalorder %s196, %s198
      %p202 = scmp.eq.s32.totalorder %s24, 0
      %p203 = por %p201, %p202
      %p204 = scmp.ne.s32.totalorder %s196, %s198
      %p205 = scmp.eq.s32.totalorder %s29, 1
      %p206 = por %p204, %p205
      %p207 = scmp.ne.s32.totalorder %s198, %s199
      %p208 = scmp.eq.s32.totalorder %s29, 0
      %p209 = por %p207, %p208
      %p210 = scmp.ne.s32.totalorder %s198, %s199
      %p211 = scmp.eq.s32.totalorder %s30, 1
      %p212 = por %p210, %p211
      %p214 = scmp.ne.s32.totalorder %s199, %s213
      %p215 = scmp.eq.s32.totalorder %s30, 0
      %p216 = por %p214, %p215
      %s218 = sadd.s32 %s217, 1
      %p221 = scmp.eq.s32.totalorder %s24, 1
      %p222 = scmp.ne.s32.totalorder %s217, %s219
      %p223 = scmp.eq.s32.totalorder %s24, 0
      %p224 = por %p222, %p223
      %p225 = scmp.ne.s32.totalorder %s217, %s219
      %p226 = scmp.eq.s32.totalorder %s29, 1
      %p227 = por %p225, %p226
      %p228 = scmp.ne.s32.totalorder %s219, %s220
      %p229 = scmp.eq.s32.totalorder %s29, 0
      %p230 = por %p228, %p229
      %p231 = scmp.ne.s32.totalorder %s219, %s220
      %p232 = scmp.eq.s32.totalorder %s30, 1
      %p233 = por %p231, %p232
      %p235 = scmp.ne.s32.totalorder %s220, %s234
      %p236 = scmp.eq.s32.totalorder %s30, 0
      %p237 = por %p235, %p236
      %s239 = sadd.s32 %s238, 1
      %p242 = scmp.eq.s32.totalorder %s24, 1
      %p243 = scmp.ne.s32.totalorder %s238, %s240
      %p244 = scmp.eq.s32.totalorder %s24, 0
      %p245 = por %p243, %p244
      %p246 = scmp.ne.s32.totalorder %s238, %s240
      %p247 = scmp.eq.s32.totalorder %s29, 1
      %p248 = por %p246, %p247
      %p249 = scmp.ne.s32.totalorder %s240, %s241
      %p250 = scmp.eq.s32.totalorder %s29, 0
      %p251 = por %p249, %p250
      %p252 = scmp.ne.s32.totalorder %s240, %s241
      %p253 = scmp.eq.s32.totalorder %s30, 1
      %p254 = por %p252, %p253
      %p256 = scmp.ne.s32.totalorder %s241, %s255
      %p257 = scmp.eq.s32.totalorder %s30, 0
      %p258 = por %p256, %p257
      %s260 = sadd.s32 %s259, 1
      %p263 = scmp.eq.s32.totalorder %s24, 1
      %p264 = scmp.ne.s32.totalorder %s259, %s261
      %p265 = scmp.eq.s32.totalorder %s24, 0
      %p266 = por %p264, %p265
      %p267 = scmp.ne.s32.totalorder %s259, %s261
      %p268 = scmp.eq.s32.totalorder %s29, 1
      %p269 = por %p267, %p268
      %p270 = scmp.ne.s32.totalorder %s261, %s262
      %p271 = scmp.eq.s32.totalorder %s29, 0
      %p272 = por %p270, %p271
      %p273 = scmp.ne.s32.totalorder %s261, %s262
      %p274 = scmp.eq.s32.totalorder %s30, 1
      %p275 = por %p273, %p274
      %p277 = scmp.ne.s32.totalorder %s262, %s276
      %p278 = scmp.eq.s32.totalorder %s30, 0
      %p279 = por %p277, %p278
      %s281 = sadd.s32 %s280, 1
      %p284 = scmp.eq.s32.totalorder %s24, 1
      %p285 = scmp.ne.s32.totalorder %s280, %s282
      %p286 = scmp.eq.s32.totalorder %s24, 0
      %p287 = por %p285, %p286
      %p288 = scmp.ne.s32.totalorder %s280, %s282
      %p289 = scmp.eq.s32.totalorder %s29, 1
      %p290 = por %p288, %p289
      %p291 = scmp.ne.s32.totalorder %s282, %s283
      %p292 = scmp.eq.s32.totalorder %s29, 0
      %p293 = por %p291, %p292
      %p294 = scmp.ne.s32.totalorder %s282, %s283
      %p295 = scmp.eq.s32.totalorder %s30, 1
      %p296 = por %p294, %p295
      %p298 = scmp.ne.s32.totalorder %s283, %s297
      %p299 = scmp.eq.s32.totalorder %s30, 0
      %p300 = por %p298, %p299
      %s302 = sadd.s32 %s301, 1
      %p305 = scmp.eq.s32.totalorder %s24, 1
      %p306 = scmp.ne.s32.totalorder %s301, %s303
      %p307 = scmp.eq.s32.totalorder %s24, 0
      %p308 = por %p306, %p307
      %p309 = scmp.ne.s32.totalorder %s301, %s303
      %p310 = scmp.eq.s32.totalorder %s29, 1
      %p311 = por %p309, %p310
      %p312 = scmp.ne.s32.totalorder %s303, %s304
      %p313 = scmp.eq.s32.totalorder %s29, 0
      %p314 = por %p312, %p313
      %p315 = scmp.ne.s32.totalorder %s303, %s304
      %p316 = scmp.eq.s32.totalorder %s30, 1
      %p317 = por %p315, %p316
      %p319 = scmp.ne.s32.totalorder %s304, %s318
      %p320 = scmp.eq.s32.totalorder %s30, 0
      %p321 = por %p319, %p320
      %s322 = ssub.s32 %s31, %s43
      %s323 = ssub.s32 %s32, %s39
      %s324 = sor.u32 %s322, %s323
      %p325 = scmp.eq.s32.totalorder %s324, 0
      %s327 = sadd.s32 %s326, 1
      %s328 = scalar_select %p325, %s326, %s327
      %p331 = pneg %p325
      %p332 = scmp.eq.s32.totalorder %s24, 1
      %p333 = por %p331, %p332
      %p334 = scmp.ne.s32.totalorder %s326, %s329
      %p335 = scmp.eq.s32.totalorder %s24, 0
      %p336 = por %p334, %p335
      %p337 = scmp.ne.s32.totalorder %s326, %s329
      %p338 = scmp.eq.s32.totalorder %s29, 1
      %p339 = por %p337, %p338
      %p340 = scmp.ne.s32.totalorder %s329, %s330
      %p341 = scmp.eq.s32.totalorder %s29, 0
      %p342 = por %p340, %p341
      %p343 = scmp.ne.s32.totalorder %s329, %s330
      %p344 = scmp.eq.s32.totalorder %s30, 1
      %p345 = por %p343, %p344
      %p347 = scmp.ne.s32.totalorder %s330, %s346
      %p348 = scmp.eq.s32.totalorder %s30, 0
      %p349 = por %p347, %p348
      %p350 = scmp.le.s32.totalorder 1, %s24
      %p351 = scmp.lt.s32.totalorder %s24, 3
      %p352 = pnand %p350, %p351
      %p353 = pneg %p352
      // Predicated region
      $region9: #{tpu_custom_call.1} parent=5 // pred_check
        _
      $region10: #{tpu_custom_call.1} parent=5 // pred_check_branch
        %355 = sbr.rel (%p352) target = $region12
      $region11: #{tpu_custom_call.1} parent=5 // pred_region
        %s356 = ssub.s32 %s24, 1
        // Predicated region
        $region13: #{tpu_custom_call.1} parent=11 // pred_check
          %p357 = pneg %p83
        $region14: #{tpu_custom_call.1} parent=11 // pred_check_branch
          %359 = sbr.rel (%p357) target = $region16
        $region15: #{tpu_custom_call.1} parent=11 // pred_region
          %361 = vsyncadd [#allocation3], 0
          %s363 = sshll.u32 %s1, 4
          %s364 = int_to_ptr.hbm [resolvable:$true] %s363
          %s365 = sshll.u32 [#allocation2], 4
          %s366 = int_to_ptr.vmem [resolvable:$true] %s365
          %368 = dma.hbm_to_vmem [thread:$0]  %s364, 16, %s366, [#allocation3]
        $region16: #{tpu_custom_call.1} parent=11 // pred_fallthru
          _
        // Predicated region
        $region17: #{tpu_custom_call.1} parent=11 // pred_check
          %p369 = pneg %p104
        $region18: #{tpu_custom_call.1} parent=11 // pred_check_branch
          %371 = sbr.rel (%p369) target = $region20
        $region19: #{tpu_custom_call.1} parent=11 // pred_region
          _
        $region20: #{tpu_custom_call.1} parent=11 // pred_fallthru
          _
        // Predicated region
        $region21: #{tpu_custom_call.1} parent=11 // pred_check
          %p372 = pneg %p125
        $region22: #{tpu_custom_call.1} parent=11 // pred_check_branch
          %374 = sbr.rel (%p372) target = $region24
        $region23: #{tpu_custom_call.1} parent=11 // pred_region
          _
        $region24: #{tpu_custom_call.1} parent=11 // pred_fallthru
          _
        // Predicated region
        $region25: #{tpu_custom_call.1} parent=11 // pred_check
          %p375 = pneg %p146
        $region26: #{tpu_custom_call.1} parent=11 // pred_check_branch
          %377 = sbr.rel (%p375) target = $region28
        $region27: #{tpu_custom_call.1} parent=11 // pred_region
          _
        $region28: #{tpu_custom_call.1} parent=11 // pred_fallthru
          _
        // Predicated region
        $region29: #{tpu_custom_call.1} parent=11 // pred_check
          %p378 = pneg %p167
        $region30: #{tpu_custom_call.1} parent=11 // pred_check_branch
          %380 = sbr.rel (%p378) target = $region32
        $region31: #{tpu_custom_call.1} parent=11 // pred_region
          _
        $region32: #{tpu_custom_call.1} parent=11 // pred_fallthru
          _
        // Predicated region
        $region33: #{tpu_custom_call.1} parent=11 // pred_check
          %p381 = pneg %p188
        $region34: #{tpu_custom_call.1} parent=11 // pred_check_branch
          %383 = sbr.rel (%p381) target = $region36
        $region35: #{tpu_custom_call.1} parent=11 // pred_region
          _
        $region36: #{tpu_custom_call.1} parent=11 // pred_fallthru
          _
        // Predicated region
        $region37: #{tpu_custom_call.1} parent=11 // pred_check
          %p384 = pneg %p209
        $region38: #{tpu_custom_call.1} parent=11 // pred_check_branch
          %386 = sbr.rel (%p384) target = $region40
        $region39: #{tpu_custom_call.1} parent=11 // pred_region
          _
        $region40: #{tpu_custom_call.1} parent=11 // pred_fallthru
          _
        // Predicated region
        $region41: #{tpu_custom_call.1} parent=11 // pred_check
          %p387 = pneg %p230
        $region42: #{tpu_custom_call.1} parent=11 // pred_check_branch
          %389 = sbr.rel (%p387) target = $region44
        $region43: #{tpu_custom_call.1} parent=11 // pred_region
          _
        $region44: #{tpu_custom_call.1} parent=11 // pred_fallthru
          _
        // Predicated region
        $region45: #{tpu_custom_call.1} parent=11 // pred_check
          %p390 = pneg %p251
        $region46: #{tpu_custom_call.1} parent=11 // pred_check_branch
          %392 = sbr.rel (%p390) target = $region48
        $region47: #{tpu_custom_call.1} parent=11 // pred_region
          %394 = vsyncadd [#allocation6], 0
          %s395 = sshll.u32 %s9, 4
          %s396 = int_to_ptr.hbm [resolvable:$true] %s395
          %s397 = sshll.u32 [#allocation5], 4
          %s398 = int_to_ptr.vmem [resolvable:$true] %s397
          %403 = dma.hbm_to_vmem [thread:$0]  %s396, 256, %s398, [#allocation6], 64, 64, 4
        $region48: #{tpu_custom_call.1} parent=11 // pred_fallthru
          _
        // Predicated region
        $region49: #{tpu_custom_call.1} parent=11 // pred_check
          %p404 = pneg %p272
        $region50: #{tpu_custom_call.1} parent=11 // pred_check_branch
          %406 = sbr.rel (%p404) target = $region52
        $region51: #{tpu_custom_call.1} parent=11 // pred_region
          _
        $region52: #{tpu_custom_call.1} parent=11 // pred_fallthru
          _
        // Predicated region
        $region53: #{tpu_custom_call.1} parent=11 // pred_check
          %p407 = pneg %p293
        $region54: #{tpu_custom_call.1} parent=11 // pred_check_branch
          %409 = sbr.rel (%p407) target = $region56
        $region55: #{tpu_custom_call.1} parent=11 // pred_region
          _
        $region56: #{tpu_custom_call.1} parent=11 // pred_fallthru
          _
        // Predicated region
        $region57: #{tpu_custom_call.1} parent=11 // pred_check
          %p410 = pneg %p314
        $region58: #{tpu_custom_call.1} parent=11 // pred_check_branch
          %412 = sbr.rel (%p410) target = $region60
        $region59: #{tpu_custom_call.1} parent=11 // pred_region
          _
        $region60: #{tpu_custom_call.1} parent=11 // pred_fallthru
          _
      $region12: #{tpu_custom_call.1} parent=5 // pred_fallthru
        _
      %p413 = scmp.lt.s32.totalorder %s24, 2
      // Predicated region
      $region61: #{tpu_custom_call.1} parent=5 // pred_check
        %p414 = pneg %p413
      $region62: #{tpu_custom_call.1} parent=5 // pred_check_branch
        %416 = sbr.rel (%p414) target = $region64
      $region63: #{tpu_custom_call.1} parent=5 // pred_region
        // Predicated region
        $region65: #{tpu_custom_call.1} parent=63 // pred_check
          %p417 = pneg %p56
        $region66: #{tpu_custom_call.1} parent=63 // pred_check_branch
          %419 = sbr.rel (%p417) target = $region68
        $region67: #{tpu_custom_call.1} parent=63 // pred_region
          %p420 = scmp.lt.s32.totalorder %s31, 1
          %s421 = scalar_select %p420, %s31, 1
          %s422 = smul.addr %s421, 8
          %s423 = scalar_lea.vmem %s0, %s422
        $region68: #{tpu_custom_call.1} parent=63 // pred_fallthru
          _
      $region64: #{tpu_custom_call.1} parent=5 // pred_fallthru
        _
      %p424 = scmp.le.s32.totalorder 1, %s24
      %p425 = scmp.lt.s32.totalorder %s24, 3
      %p426 = pnand %p424, %p425
      %p427 = pneg %p426
      // Predicated region
      $region69: #{tpu_custom_call.1} parent=5 // pred_check
        _
      $region70: #{tpu_custom_call.1} parent=5 // pred_check_branch
        %429 = sbr.rel (%p426) target = $region72
      $region71: #{tpu_custom_call.1} parent=5 // pred_region
        %s430 = ssub.s32 %s24, 1
        // Predicated region
        $region73: #{tpu_custom_call.1} parent=71 // pred_check
          %p431 = pneg %p83
        $region74: #{tpu_custom_call.1} parent=71 // pred_check_branch
          %433 = sbr.rel (%p431) target = $region76
        $region75: #{tpu_custom_call.1} parent=71 // pred_region
          %435 = dma.done [#allocation3], 16
        $region76: #{tpu_custom_call.1} parent=71 // pred_fallthru
          _
        // Predicated region
        $region77: #{tpu_custom_call.1} parent=71 // pred_check
          %p436 = pneg %p251
        $region78: #{tpu_custom_call.1} parent=71 // pred_check_branch
          %438 = sbr.rel (%p436) target = $region80
        $region79: #{tpu_custom_call.1} parent=71 // pred_region
          %440 = dma.done [#allocation6], 256
        $region80: #{tpu_custom_call.1} parent=71 // pred_fallthru
          _
        %p441 = scmp.lt.s32.totalorder %s33, 1
        %s442 = scalar_select %p441, %s33, 1
        %s443 = smul.addr %s442, 8
        %s444 = scalar_lea.vmem %s0, %s443
        %p445 = pneg %p62
        %p446 = pneg %p59
        %p447 = pneg %p83
        %p448 = pneg %p80
        %p449 = pneg %p104
        %p450 = pneg %p101
        %p451 = pneg %p125
        %p452 = pneg %p122
        %p453 = pneg %p146
        %p454 = pneg %p143
        %p455 = pneg %p167
        %p456 = pneg %p164
        %p457 = pneg %p188
        %p458 = pneg %p185
        %p459 = pneg %p209
        %p460 = pneg %p206
        %p461 = pneg %p230
        %p462 = pneg %p227
        %p463 = pneg %p251
        %p464 = pneg %p248
        %p465 = pneg %p272
        %p466 = pneg %p269
        %p467 = pneg %p293
        %p468 = pneg %p290
        %p469 = pneg %p314
        %p470 = pneg %p311
        %p471 = pneg %p342
        %p472 = pneg %p339
        %s473 = sand.u32 %s329, 1
        %s474 = scalar_lea.sflag [#allocation4], %s473
        %s475 = sand.u32 %s329, 1
        %s476 = smul.addr %s475, 8
        %s477 = scalar_lea.vmem [#allocation7], %s476
        %p478 = scmp.lt.s32.totalorder %s33, 1
        %s479 = scalar_select %p478, %s33, 1
        %s480 = smul.addr %s479, 8
        %s481 = scalar_lea.vmem %s0, %s480
        %v483 = vld [vmem:[%s481] sm:$0xff]
        %s484 = smul.u32 %s34, 8
        %s485 = scalar_lea.vmem %s481, %s484
        %v486 = vld [vmem:[%s485] sm:$0xff]
        %v487 = vld [vmem:[#allocation2] sm:$0x1]
        %v488 = vld [vmem:[%s2] sm:$0x1]
        %vm489 = vcmask 261120
        %v490 = vsel %vm489, %v483, 0.0
        %491 = vadd.xlane.f32.xlu0 %v490
        %v492 = vpop.xlane.xlu0 %491
        %v493 = vrcp.pop 32.0
        %v494 = vmul.f32 32.0, %v493
        %v495 = vsub.f32 1.0, %v494
        %v496 = vmul.f32 %v493, %v495
        %v497 = vadd.f32 %v493, %v496
        %vm498 = vweird.f32 %v493
        %v499 = vsel %vm498, %v493, %v497
        %v500 = vmul.f32 %v492, %v499
        %v501 = vsub.f32 %v483, %v500
        %v502 = vmul.f32 %v501, %v501
        %v503 = vsel %vm489, %v502, 0.0
        %504 = vadd.xlane.f32.xlu0 %v503
        %v505 = vpop.xlane.xlu0 %504
        %v506 = vmul.f32 %v505, %v499
        %v507 = vadd.f32 %v506, 1e-05
        %v508 = vrsqrt.pop %v507
        %v509 = vmul.f32 %v508, %v507
        %v510 = vmul.f32 %v509, %v508
        %v511 = vmul.f32 0.5, %v510
        %v512 = vsub.f32 1.5, %v511
        %v513 = vmul.f32 %v508, %v512
        %vm514 = vweird.f32 %v507
        %vm515 = vweird.f32 %v508
        %vm516 = vmor %vm514, %vm515
        %v517 = vsel %vm516, %v508, %v513
        %v518 = vmul.f32 %v501, %v517
        %v520 = vperm.slane %v487, 0
        %v522 = vmul.f32 %v518, %v520
        %v524 = vperm.slane %v488, 0
        %v526 = vadd.f32 %v522, %v524
        %v527 = vpack.c.bf16 %v526, %v526
        %v528 = vsel %vm489, %v486, 0.0
        %529 = vadd.xlane.f32.xlu0 %v528
        %v530 = vpop.xlane.xlu0 %529
        %v531 = vmul.f32 %v530, %v499
        %v532 = vsub.f32 %v486, %v531
        %v533 = vmul.f32 %v532, %v532
        %v534 = vsel %vm489, %v533, 0.0
        %535 = vadd.xlane.f32.xlu0 %v534
        %v536 = vpop.xlane.xlu0 %535
        %v537 = vmul.f32 %v536, %v499
        %v538 = vadd.f32 %v537, 1e-05
        %v539 = vrsqrt.pop %v538
        %v540 = vmul.f32 %v539, %v538
        %v541 = vmul.f32 %v540, %v539
        %v542 = vmul.f32 0.5, %v541
        %v543 = vsub.f32 1.5, %v542
        %v544 = vmul.f32 %v539, %v543
        %vm545 = vweird.f32 %v538
        %vm546 = vweird.f32 %v539
        %vm547 = vmor %vm545, %vm546
        %v548 = vsel %vm547, %v539, %v544
        %v549 = vmul.f32 %v532, %v548
        %v550 = vmul.f32 %v549, %v520
        %v551 = vadd.f32 %v550, %v524
        %v552 = vpack.c.bf16 %v551, %v551
        %v553 = vld [vmem:[%s3] sm:$0xf]
        %v554 = vld [vmem:[%s3 + $0x4] sm:$0xf]
        %v555 = vld [vmem:[%s3 + $0x8] sm:$0xf]
        %v556 = vld [vmem:[%s3 + $0xc] sm:$0xf]
        %v561 = vunpack.c.l.b16 %v553
        %v562 = vunpack.c.l.b16 %v554
        %v563 = vunpack.c.l.b16 %v555
        %v564 = vunpack.c.l.b16 %v556
        %v565 = vpack.c.b16 %v562, %v561
        %v566 = vpack.c.b16 %v564, %v563
        %v570 = vsel %vm489, %v552, 0
        %572 = vmatpush.bf16.msra.mxu0 0
        %573 = vmatpush.bf16.msra.mxu0 0
        %574 = vmatpush.bf16.msra.mxu0 0
        %575 = vmatpush.bf16.msra.mxu0 0
        %576 = vmatpush.bf16.msra.mxu0 0
        %577 = vmatpush.bf16.msra.mxu0 0
        %578 = vmatpush.bf16.msra.mxu0 %v566
        %579 = vmatpush.bf16.msra.mxu0 %v565
        %580 = vmatmul.bf16.gmra.mxu0 %v570
        %v581 = vpop.f32.mrf.mxu0
        %v582 = vadd.f32 0.0, %v581
        %v583 = vpop.f32.mrf.mxu0
        %584 = vdwg.mxu0
        %v585 = vmul.f32 %v582, 0.35355338
        %v586 = vld [vmem:[%s4] sm:$0xf]
        %v587 = vld [vmem:[%s4 + $0x4] sm:$0xf]
        %v588 = vld [vmem:[%s4 + $0x8] sm:$0xf]
        %v589 = vld [vmem:[%s4 + $0xc] sm:$0xf]
        %v594 = vunpack.c.l.b16 %v586
        %v595 = vunpack.c.l.b16 %v587
        %v596 = vunpack.c.l.b16 %v588
        %v597 = vunpack.c.l.b16 %v589
        %v598 = vpack.c.b16 %v595, %v594
        %v599 = vpack.c.b16 %v597, %v596
        %v603 = vsel %vm489, %v527, 0
        %605 = vmatpush.bf16.msra.mxu0 0
        %606 = vmatpush.bf16.msra.mxu0 0
        %607 = vmatpush.bf16.msra.mxu0 0
        %608 = vmatpush.bf16.msra.mxu0 0
        %609 = vmatpush.bf16.msra.mxu0 0
        %610 = vmatpush.bf16.msra.mxu0 0
        %611 = vmatpush.bf16.msra.mxu0 %v599
        %612 = vmatpush.bf16.msra.mxu0 %v598
        %613 = vmatmul.bf16.gmra.mxu0 %v603
        %v614 = vpop.f32.mrf.mxu0
        %v615 = vadd.f32 0.0, %v614
        %v616 = vpop.f32.mrf.mxu0
        %617 = vdwg.mxu0
        %v618 = vld [vmem:[%s5] sm:$0xf]
        %v619 = vld [vmem:[%s5 + $0x4] sm:$0xf]
        %v620 = vld [vmem:[%s5 + $0x8] sm:$0xf]
        %v621 = vld [vmem:[%s5 + $0xc] sm:$0xf]
        %v626 = vunpack.c.l.b16 %v618
        %v627 = vunpack.c.l.b16 %v619
        %v628 = vunpack.c.l.b16 %v620
        %v629 = vunpack.c.l.b16 %v621
        %v630 = vpack.c.b16 %v627, %v626
        %v631 = vpack.c.b16 %v629, %v628
        %634 = vmatpush.bf16.msra.mxu0 0
        %635 = vmatpush.bf16.msra.mxu0 0
        %636 = vmatpush.bf16.msra.mxu0 0
        %637 = vmatpush.bf16.msra.mxu0 0
        %638 = vmatpush.bf16.msra.mxu0 0
        %639 = vmatpush.bf16.msra.mxu0 0
        %640 = vmatpush.bf16.msra.mxu0 %v631
        %641 = vmatpush.bf16.msra.mxu0 %v630
        %642 = vmatmul.bf16.gmra.mxu0 %v603
        %v643 = vpop.f32.mrf.mxu0
        %v644 = vadd.f32 0.0, %v643
        %v645 = vpop.f32.mrf.mxu0
        %646 = vdwg.mxu0
        %648 = vrot.lane.b32.xlu0 %v585, 120
        %v649 = vpop.permute.xlu0 %648
        %651 = vrot.lane.b32.xlu0 %v585, 112
        %v652 = vpop.permute.xlu0 %651
        %654 = vrot.lane.b32.xlu0 %v585, 104
        %v655 = vpop.permute.xlu0 %654
        %v657 = vrot.slane %v652, 4
        %vm658 = vcmask 1047556
        %v659 = vsel %vm658, %v657, %v585
        %v660 = vrot.slane %v585, 4
        %v661 = vsel %vm658, %v652, %v660
        %v663 = vunpack.c.l.s4 1983009808
        %v664 = vunpack.c.0.s8 %v663
        %v665 = vperm.slane %v659, %v664
        %v667 = vunpack.c.l.s4 1983009808
        %v668 = vunpack.c.0.s8 %v667
        %v669 = vperm.slane %v661, %v668
        %v670 = vrot.slane %v655, 4
        %v671 = vsel %vm658, %v670, %v649
        %v672 = vrot.slane %v649, 4
        %v673 = vsel %vm658, %v655, %v672
        %v675 = vunpack.c.l.s4 1983009808
        %v676 = vunpack.c.0.s8 %v675
        %v677 = vperm.slane %v671, %v676
        %v679 = vunpack.c.l.s4 1983009808
        %v680 = vunpack.c.0.s8 %v679
        %v681 = vperm.slane %v673, %v680
        %v682 = vrot.slane %v677, 4
        %v683 = vsel %vm658, %v682, %v665
        %v684 = vrot.slane %v665, 4
        %v685 = vsel %vm658, %v677, %v684
        %v687 = vunpack.c.l.s4 1934713408
        %v688 = vunpack.c.0.s8 %v687
        %v689 = vperm.slane %v683, %v688
        %v691 = vunpack.c.l.s4 1934713408
        %v692 = vunpack.c.0.s8 %v691
        %v693 = vperm.slane %v685, %v692
        %v694 = vrot.slane %v681, 4
        %v695 = vsel %vm658, %v694, %v669
        %v696 = vrot.slane %v669, 4
        %v697 = vsel %vm658, %v681, %v696
        %v699 = vunpack.c.l.s4 1934713408
        %v700 = vunpack.c.0.s8 %v699
        %v701 = vperm.slane %v695, %v700
        %v703 = vunpack.c.l.s4 1934713408
        %v704 = vunpack.c.0.s8 %v703
        %v705 = vperm.slane %v697, %v704
        %v706 = vrot.slane %v689, 4
        %v707 = vsel %vm658, 0.0, %v706
        %v708 = vrot.slane %v693, 4
        %v709 = vsel %vm658, 0.0, %v708
        %v710 = vrot.slane %v701, 4
        %v711 = vsel %vm658, 0.0, %v710
        %v712 = vrot.slane %v705, 4
        %v713 = vsel %vm658, 0.0, %v712
        %v714 = vpack.c.bf16 %v689, %v689
        %v715 = vpack.c.bf16 %v707, %v707
        %v716 = vpack.c.bf16 %v693, %v693
        %v717 = vpack.c.bf16 %v709, %v709
        %v718 = vpack.c.bf16 %v701, %v701
        %v719 = vpack.c.bf16 %v711, %v711
        %v720 = vpack.c.bf16 %v705, %v705
        %v721 = vpack.c.bf16 %v713, %v713
        %723 = vrot.lane.b32.xlu0 %v615, 120
        %v724 = vpop.permute.xlu0 %723
        %726 = vrot.lane.b32.xlu0 %v615, 112
        %v727 = vpop.permute.xlu0 %726
        %729 = vrot.lane.b32.xlu0 %v615, 104
        %v730 = vpop.permute.xlu0 %729
        %v732 = vrot.slane %v727, 4
        %v733 = vsel %vm658, %v732, %v615
        %v734 = vrot.slane %v615, 4
        %v735 = vsel %vm658, %v727, %v734
        %v737 = vunpack.c.l.s4 1983009808
        %v738 = vunpack.c.0.s8 %v737
        %v739 = vperm.slane %v733, %v738
        %v741 = vunpack.c.l.s4 1983009808
        %v742 = vunpack.c.0.s8 %v741
        %v743 = vperm.slane %v735, %v742
        %v744 = vrot.slane %v730, 4
        %v745 = vsel %vm658, %v744, %v724
        %v746 = vrot.slane %v724, 4
        %v747 = vsel %vm658, %v730, %v746
        %v749 = vunpack.c.l.s4 1983009808
        %v750 = vunpack.c.0.s8 %v749
        %v751 = vperm.slane %v745, %v750
        %v753 = vunpack.c.l.s4 1983009808
        %v754 = vunpack.c.0.s8 %v753
        %v755 = vperm.slane %v747, %v754
        %v756 = vrot.slane %v751, 4
        %v757 = vsel %vm658, %v756, %v739
        %v758 = vrot.slane %v739, 4
        %v759 = vsel %vm658, %v751, %v758
        %v761 = vunpack.c.l.s4 1934713408
        %v762 = vunpack.c.0.s8 %v761
        %v763 = vperm.slane %v757, %v762
        %v765 = vunpack.c.l.s4 1934713408
        %v766 = vunpack.c.0.s8 %v765
        %v767 = vperm.slane %v759, %v766
        %v768 = vrot.slane %v755, 4
        %v769 = vsel %vm658, %v768, %v743
        %v770 = vrot.slane %v743, 4
        %v771 = vsel %vm658, %v755, %v770
        %v773 = vunpack.c.l.s4 1934713408
        %v774 = vunpack.c.0.s8 %v773
        %v775 = vperm.slane %v769, %v774
        %v777 = vunpack.c.l.s4 1934713408
        %v778 = vunpack.c.0.s8 %v777
        %v779 = vperm.slane %v771, %v778
        %v780 = vrot.slane %v763, 4
        %v781 = vsel %vm658, 0.0, %v780
        %v782 = vrot.slane %v767, 4
        %v783 = vsel %vm658, 0.0, %v782
        %v784 = vrot.slane %v775, 4
        %v785 = vsel %vm658, 0.0, %v784
        %v786 = vrot.slane %v779, 4
        %v787 = vsel %vm658, 0.0, %v786
        %v788 = vpack.c.bf16 %v763, %v763
        %v789 = vpack.c.bf16 %v781, %v781
        %v790 = vpack.c.bf16 %v767, %v767
        %v791 = vpack.c.bf16 %v783, %v783
        %v792 = vpack.c.bf16 %v775, %v775
        %v793 = vpack.c.bf16 %v785, %v785
        %v794 = vpack.c.bf16 %v779, %v779
        %v795 = vpack.c.bf16 %v787, %v787
        %797 = vrot.lane.b32.xlu0 %v644, 120
        %v798 = vpop.permute.xlu0 %797
        %800 = vrot.lane.b32.xlu0 %v644, 112
        %v801 = vpop.permute.xlu0 %800
        %803 = vrot.lane.b32.xlu0 %v644, 104
        %v804 = vpop.permute.xlu0 %803
        %v806 = vrot.slane %v801, 4
        %v807 = vsel %vm658, %v806, %v644
        %v808 = vrot.slane %v644, 4
        %v809 = vsel %vm658, %v801, %v808
        %v811 = vunpack.c.l.s4 1983009808
        %v812 = vunpack.c.0.s8 %v811
        %v813 = vperm.slane %v807, %v812
        %v815 = vunpack.c.l.s4 1983009808
        %v816 = vunpack.c.0.s8 %v815
        %v817 = vperm.slane %v809, %v816
        %v818 = vrot.slane %v804, 4
        %v819 = vsel %vm658, %v818, %v798
        %v820 = vrot.slane %v798, 4
        %v821 = vsel %vm658, %v804, %v820
        %v823 = vunpack.c.l.s4 1983009808
        %v824 = vunpack.c.0.s8 %v823
        %v825 = vperm.slane %v819, %v824
        %v827 = vunpack.c.l.s4 1983009808
        %v828 = vunpack.c.0.s8 %v827
        %v829 = vperm.slane %v821, %v828
        %v830 = vrot.slane %v825, 4
        %v831 = vsel %vm658, %v830, %v813
        %v832 = vrot.slane %v813, 4
        %v833 = vsel %vm658, %v825, %v832
        %v835 = vunpack.c.l.s4 1934713408
        %v836 = vunpack.c.0.s8 %v835
        %v837 = vperm.slane %v831, %v836
        %v839 = vunpack.c.l.s4 1934713408
        %v840 = vunpack.c.0.s8 %v839
        %v841 = vperm.slane %v833, %v840
        %v842 = vrot.slane %v829, 4
        %v843 = vsel %vm658, %v842, %v817
        %v844 = vrot.slane %v817, 4
        %v845 = vsel %vm658, %v829, %v844
        %v847 = vunpack.c.l.s4 1934713408
        %v848 = vunpack.c.0.s8 %v847
        %v849 = vperm.slane %v843, %v848
        %v851 = vunpack.c.l.s4 1934713408
        %v852 = vunpack.c.0.s8 %v851
        %v853 = vperm.slane %v845, %v852
        %v854 = vrot.slane %v837, 4
        %v855 = vsel %vm658, 0.0, %v854
        %v856 = vrot.slane %v841, 4
        %v857 = vsel %vm658, 0.0, %v856
        %v858 = vrot.slane %v849, 4
        %v859 = vsel %vm658, 0.0, %v858
        %v860 = vrot.slane %v853, 4
        %v861 = vsel %vm658, 0.0, %v860
        %v862 = vpack.c.bf16 %v837, %v837
        %v863 = vpack.c.bf16 %v855, %v855
        %v864 = vpack.c.bf16 %v841, %v841
        %v865 = vpack.c.bf16 %v857, %v857
        %v866 = vpack.c.bf16 %v849, %v849
        %v867 = vpack.c.bf16 %v859, %v859
        %v868 = vpack.c.bf16 %v853, %v853
        %v869 = vpack.c.bf16 %v861, %v861
        %v870 = vrot.slane %v718, 4
        %vm871 = vcmask 1047556
        %v872 = vsel %vm871, %v870, %v714
        %v874 = vunpack.c.l.s4 1983009808
        %v875 = vunpack.c.0.s8 %v874
        %v876 = vperm.slane %v872, %v875
        %v877 = vrot.slane %v720, 4
        %v878 = vsel %vm871, %v877, %v716
        %v880 = vunpack.c.l.s4 1983009808
        %v881 = vunpack.c.0.s8 %v880
        %v882 = vperm.slane %v878, %v881
        %v883 = vrot.slane %v882, 4
        %v884 = vsel %vm871, %v883, %v876
        %v886 = vunpack.c.l.s4 1934713408
        %v887 = vunpack.c.0.s8 %v886
        %v888 = vperm.slane %v884, %v887
        %v889 = vrot.slane %v888, 4
        %v890 = vsel %vm871, 0, %v889
        %v891 = vrot.slane %v719, 4
        %v892 = vsel %vm871, %v891, %v715
        %v894 = vunpack.c.l.s4 1983009808
        %v895 = vunpack.c.0.s8 %v894
        %v896 = vperm.slane %v892, %v895
        %v897 = vrot.slane %v721, 4
        %v898 = vsel %vm871, %v897, %v717
        %v900 = vunpack.c.l.s4 1983009808
        %v901 = vunpack.c.0.s8 %v900
        %v902 = vperm.slane %v898, %v901
        %v903 = vrot.slane %v902, 4
        %v904 = vsel %vm871, %v903, %v896
        %v906 = vunpack.c.l.s4 1934713408
        %v907 = vunpack.c.0.s8 %v906
        %v908 = vperm.slane %v904, %v907
        %v909 = vrot.slane %v908, 4
        %v910 = vsel %vm871, 0, %v909
        %v913 = vpack.i.b16 %v908, %v888
        %v914 = vshrl.u32 %v888, 16
        %v915 = vshrl.u32 %v908, 16
        %v916 = vpack.i.b16 %v915, %v914
        %v919 = vpack.i.b16 %v910, %v890
        %v920 = vshrl.u32 %v890, 16
        %v921 = vshrl.u32 %v910, 16
        %v922 = vpack.i.b16 %v921, %v920
        %923 = vxpose.xlu0.c.b16.start [1/8] %v788, 128
        %924 = vxpose.xlu0.c.b16.cont [2/8] 0, 128
        %925 = vxpose.xlu0.c.b16.cont [3/8] 0, 128
        %926 = vxpose.xlu0.c.b16.cont [4/8] 0, 128
        %927 = vxpose.xlu0.c.b16.cont [5/8] 0, 128
        %928 = vxpose.xlu0.c.b16.cont [6/8] 0, 128
        %929 = vxpose.xlu0.c.b16.cont [7/8] 0, 128
        %930 = vxpose.xlu0.c.b16.end [8/8] 0, 128
        %v931 = vpop.trf.xlu0
        %v932 = vpop.trf.xlu0
        %v933 = vpop.trf.xlu0
        %v934 = vpop.trf.xlu0
        %v935 = vpop.trf.xlu0
        %v936 = vpop.trf.xlu0
        %v937 = vpop.trf.xlu0
        %v938 = vpop.trf.xlu0
        %939 = vxpose.xlu0.c.b16.start [1/8] %v789, 128
        %940 = vxpose.xlu0.c.b16.cont [2/8] 0, 128
        %941 = vxpose.xlu0.c.b16.cont [3/8] 0, 128
        %942 = vxpose.xlu0.c.b16.cont [4/8] 0, 128
        %943 = vxpose.xlu0.c.b16.cont [5/8] 0, 128
        %944 = vxpose.xlu0.c.b16.cont [6/8] 0, 128
        %945 = vxpose.xlu0.c.b16.cont [7/8] 0, 128
        %946 = vxpose.xlu0.c.b16.end [8/8] 0, 128
        %v947 = vpop.trf.xlu0
        %v948 = vpop.trf.xlu0
        %v949 = vpop.trf.xlu0
        %v950 = vpop.trf.xlu0
        %v951 = vpop.trf.xlu0
        %v952 = vpop.trf.xlu0
        %v953 = vpop.trf.xlu0
        %v954 = vpop.trf.xlu0
        %955 = vxpose.xlu0.c.b16.start [1/8] %v790, 128
        %956 = vxpose.xlu0.c.b16.cont [2/8] 0, 128
        %957 = vxpose.xlu0.c.b16.cont [3/8] 0, 128
        %958 = vxpose.xlu0.c.b16.cont [4/8] 0, 128
        %959 = vxpose.xlu0.c.b16.cont [5/8] 0, 128
        %960 = vxpose.xlu0.c.b16.cont [6/8] 0, 128
        %961 = vxpose.xlu0.c.b16.cont [7/8] 0, 128
        %962 = vxpose.xlu0.c.b16.end [8/8] 0, 128
        %v963 = vpop.trf.xlu0
        %v964 = vpop.trf.xlu0
        %v965 = vpop.trf.xlu0
        %v966 = vpop.trf.xlu0
        %v967 = vpop.trf.xlu0
        %v968 = vpop.trf.xlu0
        %v969 = vpop.trf.xlu0
        %v970 = vpop.trf.xlu0
        %971 = vxpose.xlu0.c.b16.start [1/8] %v791, 128
        %972 = vxpose.xlu0.c.b16.cont [2/8] 0, 128
        %973 = vxpose.xlu0.c.b16.cont [3/8] 0, 128
        %974 = vxpose.xlu0.c.b16.cont [4/8] 0, 128
        %975 = vxpose.xlu0.c.b16.cont [5/8] 0, 128
        %976 = vxpose.xlu0.c.b16.cont [6/8] 0, 128
        %977 = vxpose.xlu0.c.b16.cont [7/8] 0, 128
        %978 = vxpose.xlu0.c.b16.end [8/8] 0, 128
        %v979 = vpop.trf.xlu0
        %v980 = vpop.trf.xlu0
        %v981 = vpop.trf.xlu0
        %v982 = vpop.trf.xlu0
        %v983 = vpop.trf.xlu0
        %v984 = vpop.trf.xlu0
        %v985 = vpop.trf.xlu0
        %v986 = vpop.trf.xlu0
        %987 = vxpose.xlu0.c.b16.start [1/8] %v792, 128
        %988 = vxpose.xlu0.c.b16.cont [2/8] 0, 128
        %989 = vxpose.xlu0.c.b16.cont [3/8] 0, 128
        %990 = vxpose.xlu0.c.b16.cont [4/8] 0, 128
        %991 = vxpose.xlu0.c.b16.cont [5/8] 0, 128
        %992 = vxpose.xlu0.c.b16.cont [6/8] 0, 128
        %993 = vxpose.xlu0.c.b16.cont [7/8] 0, 128
        %994 = vxpose.xlu0.c.b16.end [8/8] 0, 128
        %v995 = vpop.trf.xlu0
        %v996 = vpop.trf.xlu0
        %v997 = vpop.trf.xlu0
        %v998 = vpop.trf.xlu0
        %v999 = vpop.trf.xlu0
        %v1000 = vpop.trf.xlu0
        %v1001 = vpop.trf.xlu0
        %v1002 = vpop.trf.xlu0
        %1003 = vxpose.xlu0.c.b16.start [1/8] %v793, 128
        %1004 = vxpose.xlu0.c.b16.cont [2/8] 0, 128
        %1005 = vxpose.xlu0.c.b16.cont [3/8] 0, 128
        %1006 = vxpose.xlu0.c.b16.cont [4/8] 0, 128
        %1007 = vxpose.xlu0.c.b16.cont [5/8] 0, 128
        %1008 = vxpose.xlu0.c.b16.cont [6/8] 0, 128
        %1009 = vxpose.xlu0.c.b16.cont [7/8] 0, 128
        %1010 = vxpose.xlu0.c.b16.end [8/8] 0, 128
        %v1011 = vpop.trf.xlu0
        %v1012 = vpop.trf.xlu0
        %v1013 = vpop.trf.xlu0
        %v1014 = vpop.trf.xlu0
        %v1015 = vpop.trf.xlu0
        %v1016 = vpop.trf.xlu0
        %v1017 = vpop.trf.xlu0
        %v1018 = vpop.trf.xlu0
        %1019 = vxpose.xlu0.c.b16.start [1/8] %v794, 128
        %1020 = vxpose.xlu0.c.b16.cont [2/8] 0, 128
        %1021 = vxpose.xlu0.c.b16.cont [3/8] 0, 128
        %1022 = vxpose.xlu0.c.b16.cont [4/8] 0, 128
        %1023 = vxpose.xlu0.c.b16.cont [5/8] 0, 128
        %1024 = vxpose.xlu0.c.b16.cont [6/8] 0, 128
        %1025 = vxpose.xlu0.c.b16.cont [7/8] 0, 128
        %1026 = vxpose.xlu0.c.b16.end [8/8] 0, 128
        %v1027 = vpop.trf.xlu0
        %v1028 = vpop.trf.xlu0
        %v1029 = vpop.trf.xlu0
        %v1030 = vpop.trf.xlu0
        %v1031 = vpop.trf.xlu0
        %v1032 = vpop.trf.xlu0
        %v1033 = vpop.trf.xlu0
        %v1034 = vpop.trf.xlu0
        %1035 = vxpose.xlu0.c.b16.start [1/8] %v795, 128
        %1036 = vxpose.xlu0.c.b16.cont [2/8] 0, 128
        %1037 = vxpose.xlu0.c.b16.cont [3/8] 0, 128
        %1038 = vxpose.xlu0.c.b16.cont [4/8] 0, 128
        %1039 = vxpose.xlu0.c.b16.cont [5/8] 0, 128
        %1040 = vxpose.xlu0.c.b16.cont [6/8] 0, 128
        %1041 = vxpose.xlu0.c.b16.cont [7/8] 0, 128
        %1042 = vxpose.xlu0.c.b16.end [8/8] 0, 128
        %v1043 = vpop.trf.xlu0
        %v1044 = vpop.trf.xlu0
        %v1045 = vpop.trf.xlu0
        %v1046 = vpop.trf.xlu0
        %v1047 = vpop.trf.xlu0
        %v1048 = vpop.trf.xlu0
        %v1049 = vpop.trf.xlu0
        %v1050 = vpop.trf.xlu0
        %v1051 = vrot.slane %v995, 4
        %v1052 = vsel %vm871, %v1051, %v931
        %v1054 = vunpack.c.l.s4 1983009808
        %v1055 = vunpack.c.0.s8 %v1054
        %v1056 = vperm.slane %v1052, %v1055
        %v1057 = vrot.slane %v1027, 4
        %v1058 = vsel %vm871, %v1057, %v963
        %v1060 = vunpack.c.l.s4 1983009808
        %v1061 = vunpack.c.0.s8 %v1060
        %v1062 = vperm.slane %v1058, %v1061
        %v1063 = vrot.slane %v1062, 4
        %v1064 = vsel %vm871, %v1063, %v1056
        %v1065 = vrot.slane %v1056, 4
        %v1066 = vsel %vm871, %v1062, %v1065
        %v1068 = vunpack.c.l.s4 1934713408
        %v1069 = vunpack.c.0.s8 %v1068
        %v1070 = vperm.slane %v1064, %v1069
        %v1072 = vunpack.c.l.s4 1934713408
        %v1073 = vunpack.c.0.s8 %v1072
        %v1074 = vperm.slane %v1066, %v1073
        %v1075 = vrot.slane %v1070, 4
        %v1076 = vsel %vm871, 0, %v1075
        %v1077 = vrot.slane %v1074, 4
        %v1078 = vsel %vm871, 0, %v1077
        %v1079 = vrot.slane %v1011, 4
        %v1080 = vsel %vm871, %v1079, %v947
        %v1082 = vunpack.c.l.s4 1983009808
        %v1083 = vunpack.c.0.s8 %v1082
        %v1084 = vperm.slane %v1080, %v1083
        %v1085 = vrot.slane %v1043, 4
        %v1086 = vsel %vm871, %v1085, %v979
        %v1088 = vunpack.c.l.s4 1983009808
        %v1089 = vunpack.c.0.s8 %v1088
        %v1090 = vperm.slane %v1086, %v1089
        %v1091 = vrot.slane %v1090, 4
        %v1092 = vsel %vm871, %v1091, %v1084
        %v1093 = vrot.slane %v1084, 4
        %v1094 = vsel %vm871, %v1090, %v1093
        %v1096 = vunpack.c.l.s4 1934713408
        %v1097 = vunpack.c.0.s8 %v1096
        %v1098 = vperm.slane %v1092, %v1097
        %v1100 = vunpack.c.l.s4 1934713408
        %v1101 = vunpack.c.0.s8 %v1100
        %v1102 = vperm.slane %v1094, %v1101
        %v1103 = vrot.slane %v1098, 4
        %v1104 = vsel %vm871, 0, %v1103
        %v1105 = vrot.slane %v1102, 4
        %v1106 = vsel %vm871, 0, %v1105
        %v1109 = vpack.i.b16 %v1098, %v1070
        %v1111 = vshrl.u32 %v1070, 16
        %v1112 = vshrl.u32 %v1098, 16
        %v1113 = vpack.i.b16 %v1112, %v1111
        %v1117 = vpack.i.b16 %v1104, %v1076
        %v1119 = vshrl.u32 %v1076, 16
        %v1120 = vshrl.u32 %v1104, 16
        %v1121 = vpack.i.b16 %v1120, %v1119
        %v1125 = vpack.i.b16 %v1102, %v1074
        %v1127 = vshrl.u32 %v1074, 16
        %v1128 = vshrl.u32 %v1102, 16
        %v1129 = vpack.i.b16 %v1128, %v1127
        %v1133 = vpack.i.b16 %v1106, %v1078
        %v1135 = vshrl.u32 %v1078, 16
        %v1136 = vshrl.u32 %v1106, 16
        %v1137 = vpack.i.b16 %v1136, %v1135
        %1139 = vxpose.xlu0.c.b16.start [1/8] %v1109, 128
        %1140 = vxpose.xlu0.c.b16.cont [2/8] 0, 128
        %1141 = vxpose.xlu0.c.b16.cont [3/8] 0, 128
        %1142 = vxpose.xlu0.c.b16.cont [4/8] 0, 128
        %1143 = vxpose.xlu0.c.b16.cont [5/8] 0, 128
        %1144 = vxpose.xlu0.c.b16.cont [6/8] 0, 128
        %1145 = vxpose.xlu0.c.b16.cont [7/8] 0, 128
        %1146 = vxpose.xlu0.c.b16.end [8/8] 0, 128
        %v1147 = vpop.trf.xlu0
        %v1148 = vpop.trf.xlu0
        %v1149 = vpop.trf.xlu0
        %v1150 = vpop.trf.xlu0
        %v1151 = vpop.trf.xlu0
        %v1152 = vpop.trf.xlu0
        %v1153 = vpop.trf.xlu0
        %v1154 = vpop.trf.xlu0
        %1155 = vxpose.xlu0.c.b16.start [1/8] %v1113, 128
        %1156 = vxpose.xlu0.c.b16.cont [2/8] 0, 128
        %1157 = vxpose.xlu0.c.b16.cont [3/8] 0, 128
        %1158 = vxpose.xlu0.c.b16.cont [4/8] 0, 128
        %1159 = vxpose.xlu0.c.b16.cont [5/8] 0, 128
        %1160 = vxpose.xlu0.c.b16.cont [6/8] 0, 128
        %1161 = vxpose.xlu0.c.b16.cont [7/8] 0, 128
        %1162 = vxpose.xlu0.c.b16.end [8/8] 0, 128
        %v1163 = vpop.trf.xlu0
        %v1164 = vpop.trf.xlu0
        %v1165 = vpop.trf.xlu0
        %v1166 = vpop.trf.xlu0
        %v1167 = vpop.trf.xlu0
        %v1168 = vpop.trf.xlu0
        %v1169 = vpop.trf.xlu0
        %v1170 = vpop.trf.xlu0
        %1171 = vxpose.xlu0.c.b16.start [1/8] %v1117, 128
        %1172 = vxpose.xlu0.c.b16.cont [2/8] 0, 128
        %1173 = vxpose.xlu0.c.b16.cont [3/8] 0, 128
        %1174 = vxpose.xlu0.c.b16.cont [4/8] 0, 128
        %1175 = vxpose.xlu0.c.b16.cont [5/8] 0, 128
        %1176 = vxpose.xlu0.c.b16.cont [6/8] 0, 128
        %1177 = vxpose.xlu0.c.b16.cont [7/8] 0, 128
        %1178 = vxpose.xlu0.c.b16.end [8/8] 0, 128
        %v1179 = vpop.trf.xlu0
        %v1180 = vpop.trf.xlu0
        %v1181 = vpop.trf.xlu0
        %v1182 = vpop.trf.xlu0
        %v1183 = vpop.trf.xlu0
        %v1184 = vpop.trf.xlu0
        %v1185 = vpop.trf.xlu0
        %v1186 = vpop.trf.xlu0
        %1187 = vxpose.xlu0.c.b16.start [1/8] %v1121, 128
        %1188 = vxpose.xlu0.c.b16.cont [2/8] 0, 128
        %1189 = vxpose.xlu0.c.b16.cont [3/8] 0, 128
        %1190 = vxpose.xlu0.c.b16.cont [4/8] 0, 128
        %1191 = vxpose.xlu0.c.b16.cont [5/8] 0, 128
        %1192 = vxpose.xlu0.c.b16.cont [6/8] 0, 128
        %1193 = vxpose.xlu0.c.b16.cont [7/8] 0, 128
        %1194 = vxpose.xlu0.c.b16.end [8/8] 0, 128
        %v1195 = vpop.trf.xlu0
        %v1196 = vpop.trf.xlu0
        %v1197 = vpop.trf.xlu0
        %v1198 = vpop.trf.xlu0
        %v1199 = vpop.trf.xlu0
        %v1200 = vpop.trf.xlu0
        %v1201 = vpop.trf.xlu0
        %v1202 = vpop.trf.xlu0
        %1203 = vxpose.xlu0.c.b16.start [1/8] %v1125, 128
        %1204 = vxpose.xlu0.c.b16.cont [2/8] 0, 128
        %1205 = vxpose.xlu0.c.b16.cont [3/8] 0, 128
        %1206 = vxpose.xlu0.c.b16.cont [4/8] 0, 128
        %1207 = vxpose.xlu0.c.b16.cont [5/8] 0, 128
        %1208 = vxpose.xlu0.c.b16.cont [6/8] 0, 128
        %1209 = vxpose.xlu0.c.b16.cont [7/8] 0, 128
        %1210 = vxpose.xlu0.c.b16.end [8/8] 0, 128
        %v1211 = vpop.trf.xlu0
        %v1212 = vpop.trf.xlu0
        %v1213 = vpop.trf.xlu0
        %v1214 = vpop.trf.xlu0
        %v1215 = vpop.trf.xlu0
        %v1216 = vpop.trf.xlu0
        %v1217 = vpop.trf.xlu0
        %v1218 = vpop.trf.xlu0
        %1219 = vxpose.xlu0.c.b16.start [1/8] %v1129, 128
        %1220 = vxpose.xlu0.c.b16.cont [2/8] 0, 128
        %1221 = vxpose.xlu0.c.b16.cont [3/8] 0, 128
        %1222 = vxpose.xlu0.c.b16.cont [4/8] 0, 128
        %1223 = vxpose.xlu0.c.b16.cont [5/8] 0, 128
        %1224 = vxpose.xlu0.c.b16.cont [6/8] 0, 128
        %1225 = vxpose.xlu0.c.b16.cont [7/8] 0, 128
        %1226 = vxpose.xlu0.c.b16.end [8/8] 0, 128
        %v1227 = vpop.trf.xlu0
        %v1228 = vpop.trf.xlu0
        %v1229 = vpop.trf.xlu0
        %v1230 = vpop.trf.xlu0
        %v1231 = vpop.trf.xlu0
        %v1232 = vpop.trf.xlu0
        %v1233 = vpop.trf.xlu0
        %v1234 = vpop.trf.xlu0
        %1235 = vxpose.xlu0.c.b16.start [1/8] %v1133, 128
        %1236 = vxpose.xlu0.c.b16.cont [2/8] 0, 128
        %1237 = vxpose.xlu0.c.b16.cont [3/8] 0, 128
        %1238 = vxpose.xlu0.c.b16.cont [4/8] 0, 128
        %1239 = vxpose.xlu0.c.b16.cont [5/8] 0, 128
        %1240 = vxpose.xlu0.c.b16.cont [6/8] 0, 128
        %1241 = vxpose.xlu0.c.b16.cont [7/8] 0, 128
        %1242 = vxpose.xlu0.c.b16.end [8/8] 0, 128
        %v1243 = vpop.trf.xlu0
        %v1244 = vpop.trf.xlu0
        %v1245 = vpop.trf.xlu0
        %v1246 = vpop.trf.xlu0
        %v1247 = vpop.trf.xlu0
        %v1248 = vpop.trf.xlu0
        %v1249 = vpop.trf.xlu0
        %v1250 = vpop.trf.xlu0
        %1251 = vxpose.xlu0.c.b16.start [1/8] %v1137, 128
        %1252 = vxpose.xlu0.c.b16.cont [2/8] 0, 128
        %1253 = vxpose.xlu0.c.b16.cont [3/8] 0, 128
        %1254 = vxpose.xlu0.c.b16.cont [4/8] 0, 128
        %1255 = vxpose.xlu0.c.b16.cont [5/8] 0, 128
        %1256 = vxpose.xlu0.c.b16.cont [6/8] 0, 128
        %1257 = vxpose.xlu0.c.b16.cont [7/8] 0, 128
        %1258 = vxpose.xlu0.c.b16.end [8/8] 0, 128
        %v1259 = vpop.trf.xlu0
        %v1260 = vpop.trf.xlu0
        %v1261 = vpop.trf.xlu0
        %v1262 = vpop.trf.xlu0
        %v1263 = vpop.trf.xlu0
        %v1264 = vpop.trf.xlu0
        %v1265 = vpop.trf.xlu0
        %v1266 = vpop.trf.xlu0
        %v1267 = vrot.slane %v1211, 4
        %v1268 = vsel %vm871, %v1267, %v1147
        %v1270 = vunpack.c.l.s4 1983009808
        %v1271 = vunpack.c.0.s8 %v1270
        %v1272 = vperm.slane %v1268, %v1271
        %v1273 = vrot.slane %v1243, 4
        %v1274 = vsel %vm871, %v1273, %v1179
        %v1276 = vunpack.c.l.s4 1983009808
        %v1277 = vunpack.c.0.s8 %v1276
        %v1278 = vperm.slane %v1274, %v1277
        %v1279 = vrot.slane %v1278, 4
        %v1280 = vsel %vm871, %v1279, %v1272
        %v1282 = vunpack.c.l.s4 1934713408
        %v1283 = vunpack.c.0.s8 %v1282
        %v1284 = vperm.slane %v1280, %v1283
        %v1285 = vrot.slane %v1284, 4
        %v1286 = vsel %vm871, 0, %v1285
        %v1287 = vrot.slane %v1227, 4
        %v1288 = vsel %vm871, %v1287, %v1163
        %v1290 = vunpack.c.l.s4 1983009808
        %v1291 = vunpack.c.0.s8 %v1290
        %v1292 = vperm.slane %v1288, %v1291
        %v1293 = vrot.slane %v1259, 4
        %v1294 = vsel %vm871, %v1293, %v1195
        %v1296 = vunpack.c.l.s4 1983009808
        %v1297 = vunpack.c.0.s8 %v1296
        %v1298 = vperm.slane %v1294, %v1297
        %v1299 = vrot.slane %v1298, 4
        %v1300 = vsel %vm871, %v1299, %v1292
        %v1302 = vunpack.c.l.s4 1934713408
        %v1303 = vunpack.c.0.s8 %v1302
        %v1304 = vperm.slane %v1300, %v1303
        %v1305 = vrot.slane %v1304, 4
        %v1306 = vsel %vm871, 0, %v1305
        %v1309 = vpack.i.b16 %v1304, %v1284
        %v1310 = vshrl.u32 %v1284, 16
        %v1311 = vshrl.u32 %v1304, 16
        %v1312 = vpack.i.b16 %v1311, %v1310
        %v1315 = vpack.i.b16 %v1306, %v1286
        %v1316 = vshrl.u32 %v1286, 16
        %v1317 = vshrl.u32 %v1306, 16
        %v1318 = vpack.i.b16 %v1317, %v1316
        %vm1319 = vcmask 64512
        %v1321 = vsel %vm1319, %v913, 0
        %vm1323 = vcmask 1043456
        %v1325 = vsel %vm1323, %v1309, 0
        %1327 = vmatpush.bf16.msra.mxu0 0
        %1328 = vmatpush.bf16.msra.mxu0 0
        %1329 = vmatpush.bf16.msra.mxu0 0
        %1330 = vmatpush.bf16.msra.mxu0 0
        %1331 = vmatpush.bf16.msra.mxu0 0
        %1332 = vmatpush.bf16.msra.mxu0 0
        %1333 = vmatpush.bf16.msra.mxu0 0
        %1334 = vmatpush.bf16.msra.mxu0 %v1325
        %1335 = vmatmul.bf16.gmra.mxu0 %v1321
        %v1336 = vpop.f32.mrf.mxu0
        %v1337 = vadd.f32 0.0, %v1336
        %v1338 = vpop.f32.mrf.mxu0
        %1339 = vdwg.mxu0
        %v1341 = vsel %vm1319, %v916, 0
        %v1344 = vsel %vm1323, %v1312, 0
        %1346 = vmatpush.bf16.msra.mxu0 0
        %1347 = vmatpush.bf16.msra.mxu0 0
        %1348 = vmatpush.bf16.msra.mxu0 0
        %1349 = vmatpush.bf16.msra.mxu0 0
        %1350 = vmatpush.bf16.msra.mxu0 0
        %1351 = vmatpush.bf16.msra.mxu0 0
        %1352 = vmatpush.bf16.msra.mxu0 0
        %1353 = vmatpush.bf16.msra.mxu0 %v1344
        %1354 = vmatmul.bf16.gmra.mxu0 %v1341
        %v1355 = vpop.f32.mrf.mxu0
        %v1356 = vadd.f32 0.0, %v1355
        %v1357 = vpop.f32.mrf.mxu0
        %1358 = vdwg.mxu0
        %v1360 = vsel %vm1319, %v919, 0
        %v1363 = vsel %vm1323, %v1315, 0
        %1365 = vmatpush.bf16.msra.mxu0 0
        %1366 = vmatpush.bf16.msra.mxu0 0
        %1367 = vmatpush.bf16.msra.mxu0 0
        %1368 = vmatpush.bf16.msra.mxu0 0
        %1369 = vmatpush.bf16.msra.mxu0 0
        %1370 = vmatpush.bf16.msra.mxu0 0
        %1371 = vmatpush.bf16.msra.mxu0 0
        %1372 = vmatpush.bf16.msra.mxu0 %v1363
        %1373 = vmatmul.bf16.gmra.mxu0 %v1360
        %v1374 = vpop.f32.mrf.mxu0
        %v1375 = vadd.f32 0.0, %v1374
        %v1376 = vpop.f32.mrf.mxu0
        %1377 = vdwg.mxu0
        %v1379 = vsel %vm1319, %v922, 0
        %v1382 = vsel %vm1323, %v1318, 0
        %1384 = vmatpush.bf16.msra.mxu0 0
        %1385 = vmatpush.bf16.msra.mxu0 0
        %1386 = vmatpush.bf16.msra.mxu0 0
        %1387 = vmatpush.bf16.msra.mxu0 0
        %1388 = vmatpush.bf16.msra.mxu0 0
        %1389 = vmatpush.bf16.msra.mxu0 0
        %1390 = vmatpush.bf16.msra.mxu0 0
        %1391 = vmatpush.bf16.msra.mxu0 %v1382
        %1392 = vmatmul.bf16.gmra.mxu0 %v1379
        %v1393 = vpop.f32.mrf.mxu0
        %v1394 = vadd.f32 0.0, %v1393
        %v1395 = vpop.f32.mrf.mxu0
        %1396 = vdwg.mxu0
        %v1397 = vlaneseq
        %v1398 = vshrl.u32 %v1397, 7
        %v1399 = vstv %s484
        %v1400 = vadd.s32 %v1399, %v1398
        %v1401 = vlaneseq
        %v1402 = vand.u32 %v1401, 127
        %vm1403 = vcmp.ge.s32.totalorder %v1400, %v1402
        %vm1404 = vcmp.ne.f32.partialorder %v1337, 0.0
        %vm1405 = vcmp.ne.f32.partialorder %v1356, 0.0
        %vm1406 = vcmp.ne.f32.partialorder %v1375, 0.0
        %vm1407 = vcmp.ne.f32.partialorder %v1394, 0.0
        %v1408 = vsel %vm1403, 1, 0
        %vm1409 = vcmp.eq.s32.totalorder %v1408, 1
        %vm1410 = vmand %vm1409, %vm1404
        %vm1411 = vmand %vm1409, %vm1405
        %vm1412 = vmand %vm1409, %vm1406
        %vm1413 = vmand %vm1409, %vm1407
        %v1414 = vsel %vm1410, %v1337, -inf
        %v1415 = vsel %vm1411, %v1356, -inf
        %v1416 = vsel %vm1412, %v1375, -inf
        %v1417 = vsel %vm1413, %v1394, -inf
        %v1418 = vsel %vm1319, %v1414, -inf
        %1419 = vmax.xlane.f32.xlu0 %v1418
        %v1420 = vpop.xlane.xlu0 %1419
        %v1421 = vsel %vm1319, %v1415, -inf
        %1422 = vmax.xlane.f32.xlu0 %v1421
        %v1423 = vpop.xlane.xlu0 %1422
        %v1424 = vsel %vm1319, %v1416, -inf
        %1425 = vmax.xlane.f32.xlu0 %v1424
        %v1426 = vpop.xlane.xlu0 %1425
        %v1427 = vsel %vm1319, %v1417, -inf
        %1428 = vmax.xlane.f32.xlu0 %v1427
        %v1429 = vpop.xlane.xlu0 %1428
        %v1430 = vsub.f32 %v1414, %v1420
        %v1431 = vsub.f32 %v1415, %v1423
        %v1432 = vsub.f32 %v1416, %v1426
        %v1433 = vsub.f32 %v1417, %v1429
        %v1434 = vmul.f32 %v1430, 1.442695
        %v1435 = vpow.pop %v1434
        %v1436 = vmul.f32 %v1431, 1.442695
        %v1437 = vpow.pop %v1436
        %v1438 = vmul.f32 %v1432, 1.442695
        %v1439 = vpow.pop %v1438
        %v1440 = vmul.f32 %v1433, 1.442695
        %v1441 = vpow.pop %v1440
        %v1442 = vsel %vm1319, %v1435, 0.0
        %1443 = vadd.xlane.f32.xlu0 %v1442
        %v1444 = vpop.xlane.xlu0 %1443
        %v1445 = vsel %vm1319, %v1437, 0.0
        %1446 = vadd.xlane.f32.xlu0 %v1445
        %v1447 = vpop.xlane.xlu0 %1446
        %v1448 = vsel %vm1319, %v1439, 0.0
        %1449 = vadd.xlane.f32.xlu0 %v1448
        %v1450 = vpop.xlane.xlu0 %1449
        %v1451 = vsel %vm1319, %v1441, 0.0
        %1452 = vadd.xlane.f32.xlu0 %v1451
        %v1453 = vpop.xlane.xlu0 %1452
        %v1454 = vrcp.pop %v1444
        %v1455 = vrcp.pop %v1447
        %v1456 = vrcp.pop %v1450
        %v1457 = vrcp.pop %v1453
        %v1458 = vmul.f32 %v1435, %v1454
        %v1459 = vmul.f32 %v1437, %v1455
        %v1460 = vmul.f32 %v1439, %v1456
        %v1461 = vmul.f32 %v1441, %v1457
        %v1462 = vpack.c.bf16 %v1458, %v1458
        %v1463 = vpack.c.bf16 %v1459, %v1459
        %v1464 = vpack.c.bf16 %v1460, %v1460
        %v1465 = vpack.c.bf16 %v1461, %v1461
        %v1466 = vrot.slane %v866, 4
        %v1467 = vsel %vm871, %v1466, %v862
        %v1469 = vunpack.c.l.s4 1983009808
        %v1470 = vunpack.c.0.s8 %v1469
        %v1471 = vperm.slane %v1467, %v1470
        %v1472 = vrot.slane %v868, 4
        %v1473 = vsel %vm871, %v1472, %v864
        %v1475 = vunpack.c.l.s4 1983009808
        %v1476 = vunpack.c.0.s8 %v1475
        %v1477 = vperm.slane %v1473, %v1476
        %v1478 = vrot.slane %v1477, 4
        %v1479 = vsel %vm871, %v1478, %v1471
        %v1481 = vunpack.c.l.s4 1934713408
        %v1482 = vunpack.c.0.s8 %v1481
        %v1483 = vperm.slane %v1479, %v1482
        %v1484 = vrot.slane %v1483, 4
        %v1485 = vsel %vm871, 0, %v1484
        %v1486 = vrot.slane %v867, 4
        %v1487 = vsel %vm871, %v1486, %v863
        %v1489 = vunpack.c.l.s4 1983009808
        %v1490 = vunpack.c.0.s8 %v1489
        %v1491 = vperm.slane %v1487, %v1490
        %v1492 = vrot.slane %v869, 4
        %v1493 = vsel %vm871, %v1492, %v865
        %v1495 = vunpack.c.l.s4 1983009808
        %v1496 = vunpack.c.0.s8 %v1495
        %v1497 = vperm.slane %v1493, %v1496
        %v1498 = vrot.slane %v1497, 4
        %v1499 = vsel %vm871, %v1498, %v1491
        %v1501 = vunpack.c.l.s4 1934713408
        %v1502 = vunpack.c.0.s8 %v1501
        %v1503 = vperm.slane %v1499, %v1502
        %v1504 = vrot.slane %v1503, 4
        %v1505 = vsel %vm871, 0, %v1504
        %v1508 = vpack.i.b16 %v1503, %v1483
        %v1509 = vshrl.u32 %v1483, 16
        %v1510 = vshrl.u32 %v1503, 16
        %v1511 = vpack.i.b16 %v1510, %v1509
        %v1514 = vpack.i.b16 %v1505, %v1485
        %v1515 = vshrl.u32 %v1485, 16
        %v1516 = vshrl.u32 %v1505, 16
        %v1517 = vpack.i.b16 %v1516, %v1515
        %v1519 = vsel %vm1319, %v1462, 0
        %v1522 = vsel %vm1323, %v1508, 0
        %1524 = vmatpush.bf16.msra.mxu0 0
        %1525 = vmatpush.bf16.msra.mxu0 0
        %1526 = vmatpush.bf16.msra.mxu0 0
        %1527 = vmatpush.bf16.msra.mxu0 0
        %1528 = vmatpush.bf16.msra.mxu0 0
        %1529 = vmatpush.bf16.msra.mxu0 0
        %1530 = vmatpush.bf16.msra.mxu0 0
        %1531 = vmatpush.bf16.msra.mxu0 %v1522
        %1532 = vmatmul.bf16.gmra.mxu0 %v1519
        %v1533 = vpop.f32.mrf.mxu0
        %v1534 = vadd.f32 0.0, %v1533
        %v1535 = vpop.f32.mrf.mxu0
        %1536 = vdwg.mxu0
        %v1538 = vsel %vm1319, %v1463, 0
        %v1541 = vsel %vm1323, %v1511, 0
        %1543 = vmatpush.bf16.msra.mxu0 0
        %1544 = vmatpush.bf16.msra.mxu0 0
        %1545 = vmatpush.bf16.msra.mxu0 0
        %1546 = vmatpush.bf16.msra.mxu0 0
        %1547 = vmatpush.bf16.msra.mxu0 0
        %1548 = vmatpush.bf16.msra.mxu0 0
        %1549 = vmatpush.bf16.msra.mxu0 0
        %1550 = vmatpush.bf16.msra.mxu0 %v1541
        %1551 = vmatmul.bf16.gmra.mxu0 %v1538
        %v1552 = vpop.f32.mrf.mxu0
        %v1553 = vadd.f32 0.0, %v1552
        %v1554 = vpop.f32.mrf.mxu0
        %1555 = vdwg.mxu0
        %v1557 = vsel %vm1319, %v1464, 0
        %v1560 = vsel %vm1323, %v1514, 0
        %1562 = vmatpush.bf16.msra.mxu0 0
        %1563 = vmatpush.bf16.msra.mxu0 0
        %1564 = vmatpush.bf16.msra.mxu0 0
        %1565 = vmatpush.bf16.msra.mxu0 0
        %1566 = vmatpush.bf16.msra.mxu0 0
        %1567 = vmatpush.bf16.msra.mxu0 0
        %1568 = vmatpush.bf16.msra.mxu0 0
        %1569 = vmatpush.bf16.msra.mxu0 %v1560
        %1570 = vmatmul.bf16.gmra.mxu0 %v1557
        %v1571 = vpop.f32.mrf.mxu0
        %v1572 = vadd.f32 0.0, %v1571
        %v1573 = vpop.f32.mrf.mxu0
        %1574 = vdwg.mxu0
        %v1576 = vsel %vm1319, %v1465, 0
        %v1579 = vsel %vm1323, %v1517, 0
        %1581 = vmatpush.bf16.msra.mxu0 0
        %1582 = vmatpush.bf16.msra.mxu0 0
        %1583 = vmatpush.bf16.msra.mxu0 0
        %1584 = vmatpush.bf16.msra.mxu0 0
        %1585 = vmatpush.bf16.msra.mxu0 0
        %1586 = vmatpush.bf16.msra.mxu0 0
        %1587 = vmatpush.bf16.msra.mxu0 0
        %1588 = vmatpush.bf16.msra.mxu0 %v1579
        %1589 = vmatmul.bf16.gmra.mxu0 %v1576
        %v1590 = vpop.f32.mrf.mxu0
        %v1591 = vadd.f32 0.0, %v1590
        %v1592 = vpop.f32.mrf.mxu0
        %1593 = vdwg.mxu0
        %v1594 = vpack.c.bf16 %v1534, %v1534
        %v1595 = vpack.c.bf16 %v1553, %v1553
        %v1596 = vpack.c.bf16 %v1572, %v1572
        %v1597 = vpack.c.bf16 %v1591, %v1591
        %v1598 = vld [vmem:[%s6] sm:$0xf]
        %v1600 = vsel %vm1319, %v1594, 0
        %v1603 = vsel %vm1323, %v1598, 0
        %1605 = vmatpush.bf16.msra.mxu0 0
        %1606 = vmatpush.bf16.msra.mxu0 0
        %1607 = vmatpush.bf16.msra.mxu0 0
        %1608 = vmatpush.bf16.msra.mxu0 0
        %1609 = vmatpush.bf16.msra.mxu0 0
        %1610 = vmatpush.bf16.msra.mxu0 0
        %1611 = vmatpush.bf16.msra.mxu0 0
        %1612 = vmatpush.bf16.msra.mxu0 %v1603
        %1613 = vmatmul.bf16.gmra.mxu0 %v1600
        %v1614 = vpop.f32.mrf.mxu0
        %v1615 = vadd.f32 0.0, %v1614
        %v1616 = vpop.f32.mrf.mxu0
        %1617 = vdwg.mxu0
        %v1618 = vadd.f32 %v486, %v1615
        %s1619 = scalar_lea.vmem %s6, 4
        %v1620 = vld [vmem:[%s1619] sm:$0xf]
        %v1622 = vsel %vm1319, %v1595, 0
        %v1625 = vsel %vm1323, %v1620, 0
        %1627 = vmatpush.bf16.msra.mxu0 0
        %1628 = vmatpush.bf16.msra.mxu0 0
        %1629 = vmatpush.bf16.msra.mxu0 0
        %1630 = vmatpush.bf16.msra.mxu0 0
        %1631 = vmatpush.bf16.msra.mxu0 0
        %1632 = vmatpush.bf16.msra.mxu0 0
        %1633 = vmatpush.bf16.msra.mxu0 0
        %1634 = vmatpush.bf16.msra.mxu0 %v1625
        %1635 = vmatmul.bf16.gmra.mxu0 %v1622
        %v1636 = vpop.f32.mrf.mxu0
        %v1637 = vadd.f32 0.0, %v1636
        %v1638 = vpop.f32.mrf.mxu0
        %1639 = vdwg.mxu0
        %v1640 = vadd.f32 %v1618, %v1637
        %s1641 = scalar_lea.vmem %s6, 8
        %v1642 = vld [vmem:[%s1641] sm:$0xf]
        %v1644 = vsel %vm1319, %v1596, 0
        %v1647 = vsel %vm1323, %v1642, 0
        %1649 = vmatpush.bf16.msra.mxu0 0
        %1650 = vmatpush.bf16.msra.mxu0 0
        %1651 = vmatpush.bf16.msra.mxu0 0
        %1652 = vmatpush.bf16.msra.mxu0 0
        %1653 = vmatpush.bf16.msra.mxu0 0
        %1654 = vmatpush.bf16.msra.mxu0 0
        %1655 = vmatpush.bf16.msra.mxu0 0
        %1656 = vmatpush.bf16.msra.mxu0 %v1647
        %1657 = vmatmul.bf16.gmra.mxu0 %v1644
        %v1658 = vpop.f32.mrf.mxu0
        %v1659 = vadd.f32 0.0, %v1658
        %v1660 = vpop.f32.mrf.mxu0
        %1661 = vdwg.mxu0
        %v1662 = vadd.f32 %v1640, %v1659
        %s1663 = scalar_lea.vmem %s6, 12
        %v1664 = vld [vmem:[%s1663] sm:$0xf]
        %v1666 = vsel %vm1319, %v1597, 0
        %v1669 = vsel %vm1323, %v1664, 0
        %1671 = vmatpush.bf16.msra.mxu0 0
        %1672 = vmatpush.bf16.msra.mxu0 0
        %1673 = vmatpush.bf16.msra.mxu0 0
        %1674 = vmatpush.bf16.msra.mxu0 0
        %1675 = vmatpush.bf16.msra.mxu0 0
        %1676 = vmatpush.bf16.msra.mxu0 0
        %1677 = vmatpush.bf16.msra.mxu0 0
        %1678 = vmatpush.bf16.msra.mxu0 %v1669
        %1679 = vmatmul.bf16.gmra.mxu0 %v1666
        %v1680 = vpop.f32.mrf.mxu0
        %v1681 = vadd.f32 0.0, %v1680
        %v1682 = vpop.f32.mrf.mxu0
        %1683 = vdwg.mxu0
        %v1684 = vadd.f32 %v1662, %v1681
        %v1685 = vld [vmem:[%s7] sm:$0x1]
        %v1686 = vld [vmem:[%s8] sm:$0x1]
        %v1687 = vsel %vm489, %v1684, 0.0
        %1688 = vadd.xlane.f32.xlu0 %v1687
        %v1689 = vpop.xlane.xlu0 %1688
        %v1690 = vmul.f32 %v1689, %v499
        %v1691 = vsub.f32 %v1684, %v1690
        %v1692 = vmul.f32 %v1691, %v1691
        %v1693 = vsel %vm489, %v1692, 0.0
        %1694 = vadd.xlane.f32.xlu0 %v1693
        %v1695 = vpop.xlane.xlu0 %1694
        %v1696 = vmul.f32 %v1695, %v499
        %v1697 = vadd.f32 %v1696, 1e-05
        %v1698 = vrsqrt.pop %v1697
        %v1699 = vmul.f32 %v1698, %v1697
        %v1700 = vmul.f32 %v1699, %v1698
        %v1701 = vmul.f32 0.5, %v1700
        %v1702 = vsub.f32 1.5, %v1701
        %v1703 = vmul.f32 %v1698, %v1702
        %vm1704 = vweird.f32 %v1697
        %vm1705 = vweird.f32 %v1698
        %vm1706 = vmor %vm1704, %vm1705
        %v1707 = vsel %vm1706, %v1698, %v1703
        %v1708 = vmul.f32 %v1691, %v1707
        %v1710 = vperm.slane %v1685, 0
        %v1712 = vmul.f32 %v1708, %v1710
        %v1714 = vperm.slane %v1686, 0
        %v1716 = vadd.f32 %v1712, %v1714
        %v1717 = vpack.c.bf16 %v1716, %v1716
        %v1718 = vld [vmem:[#allocation5] sm:$0xf]
        %v1719 = vld [vmem:[#allocation5 + $0x4] sm:$0xf]
        %v1720 = vld [vmem:[#allocation5 + $0x8] sm:$0xf]
        %v1721 = vld [vmem:[#allocation5 + $0xc] sm:$0xf]
        %v1722 = vld [vmem:[%s10] sm:$0x1]
        %v1724 = vperm.slane %v1722, 0
        %v1730 = vunpack.c.l.b16 %v1718
        %v1731 = vunpack.c.l.b16 %v1719
        %v1732 = vunpack.c.l.b16 %v1720
        %v1733 = vunpack.c.l.b16 %v1721
        %v1734 = vpack.c.b16 %v1731, %v1730
        %v1735 = vpack.c.b16 %v1733, %v1732
        %v1739 = vsel %vm489, %v1717, 0
        %1741 = vmatpush.bf16.msra.mxu0 0
        %1742 = vmatpush.bf16.msra.mxu0 0
        %1743 = vmatpush.bf16.msra.mxu0 0
        %1744 = vmatpush.bf16.msra.mxu0 0
        %1745 = vmatpush.bf16.msra.mxu0 0
        %1746 = vmatpush.bf16.msra.mxu0 0
        %1747 = vmatpush.bf16.msra.mxu0 %v1735
        %1748 = vmatpush.bf16.msra.mxu0 %v1734
        %1749 = vmatmul.bf16.gmra.mxu0 %v1739
        %v1750 = vpop.f32.mrf.mxu0
        %v1751 = vadd.f32 %v1724, %v1750
        %v1752 = vpop.f32.mrf.mxu0
        %1753 = vdwg.mxu0
        %v1754 = vmax.f32 %v1751, 0.0
        %v1755 = vpack.c.bf16 %v1754, %v1754
        %v1756 = vld [vmem:[%s11] sm:$0xf]
        %v1757 = vld [vmem:[%s11 + $0x4] sm:$0xf]
        %v1758 = vld [vmem:[%s11 + $0x8] sm:$0xf]
        %v1759 = vld [vmem:[%s11 + $0xc] sm:$0xf]
        %v1760 = vld [vmem:[%s11 + $0x10] sm:$0xf]
        %v1761 = vld [vmem:[%s11 + $0x14] sm:$0xf]
        %v1762 = vld [vmem:[%s11 + $0x18] sm:$0xf]
        %v1763 = vld [vmem:[%s11 + $0x1c] sm:$0xf]
        %v1764 = vld [vmem:[%s11 + $0x20] sm:$0xf]
        %v1765 = vld [vmem:[%s11 + $0x24] sm:$0xf]
        %v1766 = vld [vmem:[%s11 + $0x28] sm:$0xf]
        %v1767 = vld [vmem:[%s11 + $0x2c] sm:$0xf]
        %v1768 = vld [vmem:[%s11 + $0x30] sm:$0xf]
        %v1769 = vld [vmem:[%s11 + $0x34] sm:$0xf]
        %v1770 = vld [vmem:[%s11 + $0x38] sm:$0xf]
        %v1771 = vld [vmem:[%s11 + $0x3c] sm:$0xf]
        %v1788 = vunpack.c.l.b16 %v1756
        %v1789 = vunpack.c.l.b16 %v1757
        %v1790 = vunpack.c.l.b16 %v1758
        %v1791 = vunpack.c.l.b16 %v1759
        %v1792 = vunpack.c.l.b16 %v1760
        %v1793 = vunpack.c.l.b16 %v1761
        %v1794 = vunpack.c.l.b16 %v1762
        %v1795 = vunpack.c.l.b16 %v1763
        %v1796 = vunpack.c.l.b16 %v1764
        %v1797 = vunpack.c.l.b16 %v1765
        %v1798 = vunpack.c.l.b16 %v1766
        %v1799 = vunpack.c.l.b16 %v1767
        %v1800 = vunpack.c.l.b16 %v1768
        %v1801 = vunpack.c.l.b16 %v1769
        %v1802 = vunpack.c.l.b16 %v1770
        %v1803 = vunpack.c.l.b16 %v1771
        %v1804 = vpack.c.b16 %v1789, %v1788
        %v1805 = vpack.c.b16 %v1791, %v1790
        %v1806 = vpack.c.b16 %v1793, %v1792
        %v1807 = vpack.c.b16 %v1795, %v1794
        %v1808 = vpack.c.b16 %v1797, %v1796
        %v1809 = vpack.c.b16 %v1799, %v1798
        %v1810 = vpack.c.b16 %v1801, %v1800
        %v1811 = vpack.c.b16 %v1803, %v1802
        %1820 = vmatpush.bf16.msra.mxu0 %v1811
        %1821 = vmatpush.bf16.msra.mxu0 %v1810
        %1822 = vmatpush.bf16.msra.mxu0 %v1809
        %1823 = vmatpush.bf16.msra.mxu0 %v1808
        %1824 = vmatpush.bf16.msra.mxu0 %v1807
        %1825 = vmatpush.bf16.msra.mxu0 %v1806
        %1826 = vmatpush.bf16.msra.mxu0 %v1805
        %1827 = vmatpush.bf16.msra.mxu0 %v1804
        %1828 = vmatmul.bf16.gmra.mxu0 %v1755
        %v1829 = vpop.f32.mrf.mxu0
        %v1830 = vadd.f32 0.0, %v1829
        %v1831 = vpop.f32.mrf.mxu0
        %1832 = vdwg.mxu0
        %v1833 = vadd.f32 %v1684, %v1830
        %v1834 = vld [vmem:[%s12] sm:$0x1]
        %v1836 = vperm.slane %v1834, 0
        %v1838 = vadd.f32 %v1833, %v1836
        %1839 = vst.msk [vmem:[%s477] sm:$0xff] %vm489, %v1838
        %s1840 = sand.u32 %s329, 1
        %s1841 = scalar_lea.sflag [#allocation4], %s1840
        %s1842 = sand.u32 %s329, 1
        %s1843 = smul.addr %s1842, 8
        %s1844 = scalar_lea.vmem [#allocation7], %s1843
        // Predicated region
        $region81: #{tpu_custom_call.1} parent=71 // pred_check
          %p1845 = pneg %p339
        $region82: #{tpu_custom_call.1} parent=71 // pred_check_branch
          %1847 = sbr.rel (%p1845) target = $region84
        $region83: #{tpu_custom_call.1} parent=71 // pred_region
          %1849 = vsyncadd %s1841, 0
          %s1850 = sadd.s32 %s34, %s33
          %s1851 = smul.addr %s1850, 8
          %s1852 = scalar_lea.hbm %s13, %s1851
          %s1854 = sshll.u32 %s1844, 4
          %s1855 = int_to_ptr.vmem [resolvable:$true] %s1854
          %s1856 = sshll.u32 %s1852, 4
          %s1857 = int_to_ptr.hbm [resolvable:$true] %s1856
          %1859 = dma.vmem_to_hbm [thread:$0]  %s1855, 128, %s1857, %s1841
        $region84: #{tpu_custom_call.1} parent=71 // pred_fallthru
          _
      $region72: #{tpu_custom_call.1} parent=5 // pred_fallthru
        _
      %p1860 = scmp.le.s32.totalorder 2, %s24
      // Predicated region
      $region85: #{tpu_custom_call.1} parent=5 // pred_check
        %p1861 = pneg %p1860
      $region86: #{tpu_custom_call.1} parent=5 // pred_check_branch
        %1863 = sbr.rel (%p1861) target = $region88
      $region87: #{tpu_custom_call.1} parent=5 // pred_region
        %s1864 = ssub.s32 %s24, 2
        // Predicated region
        $region89: #{tpu_custom_call.1} parent=87 // pred_check
          %p1865 = pneg %p345
        $region90: #{tpu_custom_call.1} parent=87 // pred_check_branch
          %1867 = sbr.rel (%p1865) target = $region92
        $region91: #{tpu_custom_call.1} parent=87 // pred_region
          %s1868 = sand.u32 %s330, 1
          %s1869 = scalar_lea.sflag [#allocation4], %s1868
          %s1870 = sand.u32 %s330, 1
          %s1871 = smul.addr %s1870, 8
          %s1872 = scalar_lea.vmem [#allocation7], %s1871
          %1874 = dma.done %s1869, 128
        $region92: #{tpu_custom_call.1} parent=87 // pred_fallthru
          _
      $region88: #{tpu_custom_call.1} parent=5 // pred_fallthru
        _
    $region6: #{tpu_custom_call.1} parent=1 // loop_footer
      %s28 = sadd.s32 1, %s24
    $region7: #{tpu_custom_call.1} parent=1 // loop_footer_branch
      %23 = sbr.rel target = $region3
    $region8: #{tpu_custom_call.1} parent=1 // loop_exit
      _
    %1875 = vsyncpa [#allocation3], 1
    %s1876 = scalar_lea.sflag [#allocation3], 1
    %1877 = vsyncpa %s1876, 1
    %1878 = vsyncpa [#allocation6], 1
    %1879 = vsyncpa [#allocation4], 1
    %s1880 = scalar_lea.sflag [#allocation4], 1
    %1881 = vsyncpa %s1880, 1

</llo_original>
